<compile_context>
chip_gen: v7x
topology: tpu7x:2x2x1
jax: 0.10.0
libtpu: 0.0.40
codegen_flags: <defaults>
</compile_context>

<pallas_src>
from functools import partial

import numpy as np
import jax
import jax.numpy as jnp
from jax.experimental import pallas as pl
from jax.experimental.pallas import tpu as pltpu  # noqa: F401  (TPU backend)

# ---- model hyperparameters (small, consistent with the module's __init__) ----
D_MODEL = 32
NHEAD = 4
HEAD_DIM = D_MODEL // NHEAD
DIM_FF = 64
NUM_LAYERS = 2
LENGTH = 8      # sequence length (== `length` in the module)
BATCH = 2
LN_EPS = 1e-5

ROWS_PER_LAYER = D_MODEL + DIM_FF   # 96 rows of the packed weight slab per layer
VEC_ROWS_PER_LAYER = 3              # rows of the packed vector slab per layer


# --------------------------- kernel -----------------------------------------

def _layer_norm(z, g, b):
    mu = jnp.mean(z, axis=-1, keepdims=True)
    var = jnp.mean((z - mu) ** 2, axis=-1, keepdims=True)
    return (z - mu) * jax.lax.rsqrt(var + LN_EPS) * g + b


def fused_transformer_kernel(x_ref, w_ref, vec_ref, mask_ref, out_ref, *,
                             num_layers, nhead):
    """x_ref: (B*S, D) activations (pos already added); w_ref: packed weight slab;
    vec_ref: packed bias/gamma/beta slab; mask_ref: (B*S, B*S) additive mask."""
    m, d_model = x_ref.shape
    head_dim = d_model // nhead
    dim_ff = (w_ref.shape[0] // num_layers) - d_model
    rows_per_layer = d_model + dim_ff

    x = x_ref[...].astype(jnp.float32)          # (B*S, D)
    mask = mask_ref[...].astype(jnp.float32)    # (B*S, B*S) block-diag additive mask
    vecs = vec_ref[...]                         # (8, 128) -- one vreg of biases/gains

    for l in range(num_layers):                 # static unroll over layers
        base = l * rows_per_layer
        # ---- unpack weights via static ref slices (no per-operand DMAs) ----
        wqkv = w_ref[base:base + d_model, 0:3 * d_model]                      # (D, 3D)
        wo = w_ref[base:base + d_model, 3 * d_model:4 * d_model]              # (D, D)
        w1 = w_ref[base + d_model:base + 2 * d_model, 0:dim_ff]               # (D, FF)
        w2 = w_ref[base + d_model:base + d_model + dim_ff,
                   dim_ff:dim_ff + d_model]                                   # (FF, D)

        vb = VEC_ROWS_PER_LAYER * l
        bqkv = vecs[vb:vb + 1, 0:3 * d_model]                                 # (1, 3D)
        bo = vecs[vb:vb + 1, 3 * d_model:4 * d_model]                         # (1, D)
        g1 = vecs[vb + 1:vb + 2, 0:d_model]
        be1 = vecs[vb + 1:vb + 2, d_model:2 * d_model]
        b1 = vecs[vb + 1:vb + 2, 2 * d_model:2 * d_model + dim_ff]            # (1, FF)
        b2 = vecs[vb + 2:vb + 3, 0:d_model]
        g2 = vecs[vb + 2:vb + 3, d_model:2 * d_model]
        be2 = vecs[vb + 2:vb + 3, 2 * d_model:3 * d_model]

        # ---- multi-head self-attention (packed QKV; Q weights/bias pre-scaled) ----
        qkv = jnp.dot(x, wqkv, preferred_element_type=jnp.float32) + bqkv     # (B*S, 3D)
        q = qkv[:, :d_model]
        k = qkv[:, d_model:2 * d_model]
        v = qkv[:, 2 * d_model:3 * d_model]
        kt = k.T                                # (D, B*S): one transpose per layer

        # per-head accumulation through wo (no lane-concat of head outputs)
        attn = jnp.broadcast_to(bo, (m, d_model)).astype(jnp.float32)
        for h in range(nhead):                  # static unroll over heads
            lo = h * head_dim
            qh = q[:, lo:lo + head_dim]                                       # (B*S, Hd)
            s = jnp.dot(qh, kt[lo:lo + head_dim, :],
                        preferred_element_type=jnp.float32) + mask            # (B*S, B*S)
            s = s - jnp.max(s, axis=-1, keepdims=True)    # keep: masks stack to ~-2e9
            p = jnp.exp(s)
            p = p * pl.reciprocal(jnp.sum(p, axis=-1, keepdims=True), approx=True)
            oh = jnp.dot(p, v[:, lo:lo + head_dim],
                         preferred_element_type=jnp.float32)                  # (B*S, Hd)
            attn = attn + jnp.dot(oh, wo[lo:lo + head_dim, :],
                                  preferred_element_type=jnp.float32)         # (B*S, D)

        # residual + LayerNorm1 (post-norm, PyTorch default norm_first=False)
        x = _layer_norm(x + attn, g1, be1)

        # ---- feed-forward: Linear -> ReLU -> Linear ----
        h1 = jnp.maximum(
            jnp.dot(x, w1, preferred_element_type=jnp.float32) + b1, 0.0)
        ffo = jnp.dot(h1, w2, preferred_element_type=jnp.float32) + b2
        x = _layer_norm(x + ffo, g2, be2)

    # final LayerNorm (TransformerEncoder `norm=nn.LayerNorm(d_model)`)
    fr = VEC_ROWS_PER_LAYER * num_layers
    g = vecs[fr:fr + 1, 0:d_model]
    b = vecs[fr:fr + 1, d_model:2 * d_model]
    out_ref[...] = _layer_norm(x, g, b).astype(out_ref.dtype)


# --------------------------- host-side packing (runs ONCE at init) -----------

def pack_params(layers, norm_g, norm_b):
    """PyTorch-layout params -> (weight slab (L*96,128), vector slab (8,128))."""
    scale = 1.0 / float(np.sqrt(HEAD_DIM))
    W = np.zeros((NUM_LAYERS * ROWS_PER_LAYER, 128), np.float32)
    V = np.zeros((8, 128), np.float32)   # NUM_LAYERS*3 + 1 = 7 rows, padded to 8
    for l, lp in enumerate(layers):
        (wqkv, bqkv, wo, bo, g1, be1, w1, b1, w2, b2, g2, be2) = [
            np.asarray(a, np.float32) for a in lp]
        wqkv_t = wqkv.T.copy()                       # (D, 3D)
        wqkv_t[:, :D_MODEL] *= scale                 # fold 1/sqrt(head_dim) into Q
        bqkv_s = bqkv.copy()
        bqkv_s[:D_MODEL] *= scale

        base = l * ROWS_PER_LAYER
        W[base:base + D_MODEL, 0:3 * D_MODEL] = wqkv_t
        W[base:base + D_MODEL, 3 * D_MODEL:4 * D_MODEL] = wo.T
        W[base + D_MODEL:base + 2 * D_MODEL, 0:DIM_FF] = w1.T
        W[base + D_MODEL:base + D_MODEL + DIM_FF, DIM_FF:DIM_FF + D_MODEL] = w2.T

        vb = VEC_ROWS_PER_LAYER * l
        V[vb, 0:3 * D_MODEL] = bqkv_s
        V[vb, 3 * D_MODEL:4 * D_MODEL] = bo
        V[vb + 1, 0:D_MODEL] = g1
        V[vb + 1, D_MODEL:2 * D_MODEL] = be1
        V[vb + 1, 2 * D_MODEL:2 * D_MODEL + DIM_FF] = b1
        V[vb + 2, 0:D_MODEL] = b2
        V[vb + 2, D_MODEL:2 * D_MODEL] = g2
        V[vb + 2, 2 * D_MODEL:3 * D_MODEL] = be2
    fr = VEC_ROWS_PER_LAYER * NUM_LAYERS
    V[fr, 0:D_MODEL] = np.asarray(norm_g, np.float32)
    V[fr, D_MODEL:2 * D_MODEL] = np.asarray(norm_b, np.float32)
    return jnp.asarray(W), jnp.asarray(V)


def build_big_mask(mask, batch):
    """(S,S) additive mask -> (B*S, B*S) block-diagonal mask (cross-batch = -1e9)."""
    S = mask.shape[0]
    big = np.full((batch * S, batch * S), -1e9, np.float32)
    m = np.asarray(mask, np.float32)
    for b in range(batch):
        big[b * S:(b + 1) * S, b * S:(b + 1) * S] = m
    return jnp.asarray(big)


# --------------------------- per-call wrapper ---------------------------------

@jax.jit
def transformer_forward(x, pos, w_slab, vec_slab, big_mask):
    """x: (B, S, D) float32. Returns (S, B, D) like nn.TransformerEncoder."""
    B, S, D = x.shape
    # positional add hoisted out of the kernel (fuses into surrounding XLA graph)
    x2d = (x + pos[None, :, :]).reshape(B * S, D)
    out = pl.pallas_call(
        partial(fused_transformer_kernel, num_layers=NUM_LAYERS, nhead=NHEAD),
        out_shape=jax.ShapeDtypeStruct((B * S, D), jnp.float32),
    )(x2d, w_slab, vec_slab, big_mask)
    # match PyTorch output layout: (S, B, D)
    return jnp.transpose(out.reshape(B, S, D), (1, 0, 2))


# --------------------------- parameter init ----------------------------------

def init_params(key):
    keys = jax.random.split(key, 1 + NUM_LAYERS)
    pos = 0.001 * jax.random.normal(keys[0], (LENGTH, D_MODEL), jnp.float32)

    layers = []
    for i in range(NUM_LAYERS):
        lk = jax.random.split(keys[1 + i], 4)
        wqkv = 0.05 * jax.random.normal(lk[0], (3 * D_MODEL, D_MODEL), jnp.float32)
        bqkv = jnp.zeros((3 * D_MODEL,), jnp.float32)
        wo = 0.05 * jax.random.normal(lk[1], (D_MODEL, D_MODEL), jnp.float32)
        bo = jnp.zeros((D_MODEL,), jnp.float32)
        g1 = jnp.ones((D_MODEL,), jnp.float32)
        be1 = jnp.zeros((D_MODEL,), jnp.float32)
        w1 = 0.05 * jax.random.normal(lk[2], (DIM_FF, D_MODEL), jnp.float32)
        b1 = jnp.zeros((DIM_FF,), jnp.float32)
        w2 = 0.05 * jax.random.normal(lk[3], (D_MODEL, DIM_FF), jnp.float32)
        b2 = jnp.zeros((D_MODEL,), jnp.float32)
        g2 = jnp.ones((D_MODEL,), jnp.float32)
        be2 = jnp.zeros((D_MODEL,), jnp.float32)
        layers.append((wqkv, bqkv, wo, bo, g1, be1, w1, b1, w2, b2, g2, be2))

    norm_g = jnp.ones((D_MODEL,), jnp.float32)
    norm_b = jnp.zeros((D_MODEL,), jnp.float32)
    return pos, layers, norm_g, norm_b


# --------------------------- main ---------------------------------------------

if __name__ == "__main__":
    key = jax.random.PRNGKey(0)
    kx, kp = jax.random.split(key)

    # input to the module: (batch, length, d_model)
    x = jax.random.normal(kx, (BATCH, LENGTH, D_MODEL), jnp.float32)
    # additive float attention mask (S, S) — causal, finite -1e9 for masked positions
    tril = np.tril(np.ones((LENGTH, LENGTH), dtype=bool))
    mask = np.where(tril, 0.0, -1e9).astype(np.float32)

    pos, layers, norm_g, norm_b = init_params(kp)
    # --- one-time prep: packed slabs + block-diagonal mask (off the per-call path)
    w_slab, vec_slab = pack_params(layers, norm_g, norm_b)
    big_mask = build_big_mask(mask, BATCH)

    out = transformer_forward(x, pos, w_slab, vec_slab, big_mask)
    out = jax.block_until_ready(out)

    assert out.shape == (LENGTH, BATCH, D_MODEL), out.shape
    assert bool(jnp.all(jnp.isfinite(out)))
    print("KERNEL_OK")
</pallas_src>

<mosaic_0001>
module attributes {stable_mosaic.version = 11 : i64} {
  func.func @fused_transformer_kernel(%arg0: memref<16x32xf32, #tpu.memory_space<vmem>>, %arg1: memref<192x128xf32, #tpu.memory_space<vmem>>, %arg2: memref<8x128xf32, #tpu.memory_space<vmem>>, %arg3: memref<16x16xf32, #tpu.memory_space<vmem>>, %arg4: memref<16x32xf32, #tpu.memory_space<vmem>>) attributes {dimension_semantics = [], scalar_prefetch = 0 : i64, scratch_operands = 0 : i64, tpu.core_type = #tpu.core_type<tc>} {
    %c0 = arith.constant 0 : index
    %c0_0 = arith.constant 0 : index
    %0 = vector.load %arg0[%c0, %c0_0] : memref<16x32xf32, #tpu.memory_space<vmem>>, vector<16x32xf32>
    %c0_1 = arith.constant 0 : index
    %c0_2 = arith.constant 0 : index
    %1 = vector.load %arg3[%c0_1, %c0_2] : memref<16x16xf32, #tpu.memory_space<vmem>>, vector<16x16xf32>
    %c0_3 = arith.constant 0 : index
    %c0_4 = arith.constant 0 : index
    %2 = vector.load %arg2[%c0_3, %c0_4] : memref<8x128xf32, #tpu.memory_space<vmem>>, vector<8x128xf32>
    %c0_5 = arith.constant 0 : index
    %c0_6 = arith.constant 0 : index
    %3 = vector.load %arg1[%c0_5, %c0_6] : memref<192x128xf32, #tpu.memory_space<vmem>>, vector<32x96xf32>
    %c0_7 = arith.constant 0 : index
    %c96 = arith.constant 96 : index
    %4 = vector.load %arg1[%c0_7, %c96] : memref<192x128xf32, #tpu.memory_space<vmem>>, vector<32x32xf32>
    %c32 = arith.constant 32 : index
    %c0_8 = arith.constant 0 : index
    %5 = vector.load %arg1[%c32, %c0_8] : memref<192x128xf32, #tpu.memory_space<vmem>>, vector<32x64xf32>
    %c32_9 = arith.constant 32 : index
    %c64 = arith.constant 64 : index
    %6 = vector.load %arg1[%c32_9, %c64] : memref<192x128xf32, #tpu.memory_space<vmem>>, vector<64x32xf32>
    %7 = vector.extract_strided_slice %2 {offsets = [0, 0], sizes = [1, 96], strides = [1, 1]} : vector<8x128xf32> to vector<1x96xf32>
    %8 = vector.extract_strided_slice %2 {offsets = [0, 96], sizes = [1, 32], strides = [1, 1]} : vector<8x128xf32> to vector<1x32xf32>
    %9 = vector.extract_strided_slice %2 {offsets = [1, 0], sizes = [1, 32], strides = [1, 1]} : vector<8x128xf32> to vector<1x32xf32>
    %10 = vector.extract_strided_slice %2 {offsets = [1, 32], sizes = [1, 32], strides = [1, 1]} : vector<8x128xf32> to vector<1x32xf32>
    %11 = vector.extract_strided_slice %2 {offsets = [1, 64], sizes = [1, 64], strides = [1, 1]} : vector<8x128xf32> to vector<1x64xf32>
    %12 = vector.extract_strided_slice %2 {offsets = [2, 0], sizes = [1, 32], strides = [1, 1]} : vector<8x128xf32> to vector<1x32xf32>
    %13 = vector.extract_strided_slice %2 {offsets = [2, 32], sizes = [1, 32], strides = [1, 1]} : vector<8x128xf32> to vector<1x32xf32>
    %14 = vector.extract_strided_slice %2 {offsets = [2, 64], sizes = [1, 32], strides = [1, 1]} : vector<8x128xf32> to vector<1x32xf32>
    %cst = arith.constant dense<0.000000e+00> : vector<16x96xf32>
    %15 = tpu.matmul %0, %3, %cst {dimension_numbers = #tpu.dot_dimension_numbers<[1], [0], [0], [1], [0, 0, 1, 1], [], []>} : vector<16x32xf32>, vector<32x96xf32>, vector<16x96xf32> -> vector<16x96xf32>
    %16 = vector.broadcast %7 : vector<1x96xf32> to vector<16x96xf32>
    %17 = arith.addf %15, %16 : vector<16x96xf32>
    %18 = vector.extract_strided_slice %17 {offsets = [0, 0], sizes = [16, 32], strides = [1, 1]} : vector<16x96xf32> to vector<16x32xf32>
    %19 = vector.extract_strided_slice %17 {offsets = [0, 32], sizes = [16, 32], strides = [1, 1]} : vector<16x96xf32> to vector<16x32xf32>
    %20 = vector.extract_strided_slice %17 {offsets = [0, 64], sizes = [16, 32], strides = [1, 1]} : vector<16x96xf32> to vector<16x32xf32>
    %21 = tpu.transpose %19, [1, 0] : vector<16x32xf32> -> vector<32x16xf32>
    %22 = vector.shape_cast %8 : vector<1x32xf32> to vector<1x32xf32>
    %23 = vector.broadcast %22 : vector<1x32xf32> to vector<16x32xf32>
    %24 = vector.extract_strided_slice %18 {offsets = [0, 0], sizes = [16, 8], strides = [1, 1]} : vector<16x32xf32> to vector<16x8xf32>
    %25 = vector.extract_strided_slice %21 {offsets = [0, 0], sizes = [8, 16], strides = [1, 1]} : vector<32x16xf32> to vector<8x16xf32>
    %cst_10 = arith.constant dense<0.000000e+00> : vector<16x16xf32>
    %26 = tpu.matmul %24, %25, %cst_10 {dimension_numbers = #tpu.dot_dimension_numbers<[1], [0], [0], [1], [0, 0, 1, 1], [], []>} : vector<16x8xf32>, vector<8x16xf32>, vector<16x16xf32> -> vector<16x16xf32>
    %27 = arith.addf %26, %1 : vector<16x16xf32>
    %cst_11 = arith.constant dense<0xFF800000> : vector<16xf32>
    %28 = vector.multi_reduction <maximumf>, %27, %cst_11 [1] : vector<16x16xf32> to vector<16xf32>
    %29 = vector.shape_cast %28 : vector<16xf32> to vector<16x1xf32>
    %30 = vector.broadcast %29 : vector<16x1xf32> to vector<16x16xf32>
    %31 = arith.subf %27, %30 : vector<16x16xf32>
    %32 = math.exp %31 : vector<16x16xf32>
    %cst_12 = arith.constant dense<0.000000e+00> : vector<16xf32>
    %33 = vector.multi_reduction <add>, %32, %cst_12 [1] : vector<16x16xf32> to vector<16xf32>
    %34 = vector.shape_cast %33 : vector<16xf32> to vector<16x1xf32>
    %35 = tpu.reciprocal %34 {approx = true} : vector<16x1xf32> -> vector<16x1xf32>
    %36 = vector.broadcast %35 : vector<16x1xf32> to vector<16x16xf32>
    %37 = arith.mulf %32, %36 : vector<16x16xf32>
    %38 = vector.extract_strided_slice %20 {offsets = [0, 0], sizes = [16, 8], strides = [1, 1]} : vector<16x32xf32> to vector<16x8xf32>
    %cst_13 = arith.constant dense<0.000000e+00> : vector<16x8xf32>
    %39 = tpu.matmul %37, %38, %cst_13 {dimension_numbers = #tpu.dot_dimension_numbers<[1], [0], [0], [1], [0, 0, 1, 1], [], []>} : vector<16x16xf32>, vector<16x8xf32>, vector<16x8xf32> -> vector<16x8xf32>
    %40 = vector.extract_strided_slice %4 {offsets = [0, 0], sizes = [8, 32], strides = [1, 1]} : vector<32x32xf32> to vector<8x32xf32>
    %cst_14 = arith.constant dense<0.000000e+00> : vector<16x32xf32>
    %41 = tpu.matmul %39, %40, %cst_14 {dimension_numbers = #tpu.dot_dimension_numbers<[1], [0], [0], [1], [0, 0, 1, 1], [], []>} : vector<16x8xf32>, vector<8x32xf32>, vector<16x32xf32> -> vector<16x32xf32>
    %42 = arith.addf %23, %41 : vector<16x32xf32>
    %43 = vector.extract_strided_slice %18 {offsets = [0, 8], sizes = [16, 8], strides = [1, 1]} : vector<16x32xf32> to vector<16x8xf32>
    %44 = vector.extract_strided_slice %21 {offsets = [8, 0], sizes = [8, 16], strides = [1, 1]} : vector<32x16xf32> to vector<8x16xf32>
    %cst_15 = arith.constant dense<0.000000e+00> : vector<16x16xf32>
    %45 = tpu.matmul %43, %44, %cst_15 {dimension_numbers = #tpu.dot_dimension_numbers<[1], [0], [0], [1], [0, 0, 1, 1], [], []>} : vector<16x8xf32>, vector<8x16xf32>, vector<16x16xf32> -> vector<16x16xf32>
    %46 = arith.addf %45, %1 : vector<16x16xf32>
    %cst_16 = arith.constant dense<0xFF800000> : vector<16xf32>
    %47 = vector.multi_reduction <maximumf>, %46, %cst_16 [1] : vector<16x16xf32> to vector<16xf32>
    %48 = vector.shape_cast %47 : vector<16xf32> to vector<16x1xf32>
    %49 = vector.broadcast %48 : vector<16x1xf32> to vector<16x16xf32>
    %50 = arith.subf %46, %49 : vector<16x16xf32>
    %51 = math.exp %50 : vector<16x16xf32>
    %cst_17 = arith.constant dense<0.000000e+00> : vector<16xf32>
    %52 = vector.multi_reduction <add>, %51, %cst_17 [1] : vector<16x16xf32> to vector<16xf32>
    %53 = vector.shape_cast %52 : vector<16xf32> to vector<16x1xf32>
    %54 = tpu.reciprocal %53 {approx = true} : vector<16x1xf32> -> vector<16x1xf32>
    %55 = vector.broadcast %54 : vector<16x1xf32> to vector<16x16xf32>
    %56 = arith.mulf %51, %55 : vector<16x16xf32>
    %57 = vector.extract_strided_slice %20 {offsets = [0, 8], sizes = [16, 8], strides = [1, 1]} : vector<16x32xf32> to vector<16x8xf32>
    %cst_18 = arith.constant dense<0.000000e+00> : vector<16x8xf32>
    %58 = tpu.matmul %56, %57, %cst_18 {dimension_numbers = #tpu.dot_dimension_numbers<[1], [0], [0], [1], [0, 0, 1, 1], [], []>} : vector<16x16xf32>, vector<16x8xf32>, vector<16x8xf32> -> vector<16x8xf32>
    %59 = vector.extract_strided_slice %4 {offsets = [8, 0], sizes = [8, 32], strides = [1, 1]} : vector<32x32xf32> to vector<8x32xf32>
    %cst_19 = arith.constant dense<0.000000e+00> : vector<16x32xf32>
    %60 = tpu.matmul %58, %59, %cst_19 {dimension_numbers = #tpu.dot_dimension_numbers<[1], [0], [0], [1], [0, 0, 1, 1], [], []>} : vector<16x8xf32>, vector<8x32xf32>, vector<16x32xf32> -> vector<16x32xf32>
    %61 = arith.addf %42, %60 : vector<16x32xf32>
    %62 = vector.extract_strided_slice %18 {offsets = [0, 16], sizes = [16, 8], strides = [1, 1]} : vector<16x32xf32> to vector<16x8xf32>
    %63 = vector.extract_strided_slice %21 {offsets = [16, 0], sizes = [8, 16], strides = [1, 1]} : vector<32x16xf32> to vector<8x16xf32>
    %cst_20 = arith.constant dense<0.000000e+00> : vector<16x16xf32>
    %64 = tpu.matmul %62, %63, %cst_20 {dimension_numbers = #tpu.dot_dimension_numbers<[1], [0], [0], [1], [0, 0, 1, 1], [], []>} : vector<16x8xf32>, vector<8x16xf32>, vector<16x16xf32> -> vector<16x16xf32>
    %65 = arith.addf %64, %1 : vector<16x16xf32>
    %cst_21 = arith.constant dense<0xFF800000> : vector<16xf32>
    %66 = vector.multi_reduction <maximumf>, %65, %cst_21 [1] : vector<16x16xf32> to vector<16xf32>
    %67 = vector.shape_cast %66 : vector<16xf32> to vector<16x1xf32>
    %68 = vector.broadcast %67 : vector<16x1xf32> to vector<16x16xf32>
    %69 = arith.subf %65, %68 : vector<16x16xf32>
    %70 = math.exp %69 : vector<16x16xf32>
    %cst_22 = arith.constant dense<0.000000e+00> : vector<16xf32>
    %71 = vector.multi_reduction <add>, %70, %cst_22 [1] : vector<16x16xf32> to vector<16xf32>
    %72 = vector.shape_cast %71 : vector<16xf32> to vector<16x1xf32>
    %73 = tpu.reciprocal %72 {approx = true} : vector<16x1xf32> -> vector<16x1xf32>
    %74 = vector.broadcast %73 : vector<16x1xf32> to vector<16x16xf32>
    %75 = arith.mulf %70, %74 : vector<16x16xf32>
    %76 = vector.extract_strided_slice %20 {offsets = [0, 16], sizes = [16, 8], strides = [1, 1]} : vector<16x32xf32> to vector<16x8xf32>
    %cst_23 = arith.constant dense<0.000000e+00> : vector<16x8xf32>
    %77 = tpu.matmul %75, %76, %cst_23 {dimension_numbers = #tpu.dot_dimension_numbers<[1], [0], [0], [1], [0, 0, 1, 1], [], []>} : vector<16x16xf32>, vector<16x8xf32>, vector<16x8xf32> -> vector<16x8xf32>
    %78 = vector.extract_strided_slice %4 {offsets = [16, 0], sizes = [8, 32], strides = [1, 1]} : vector<32x32xf32> to vector<8x32xf32>
    %cst_24 = arith.constant dense<0.000000e+00> : vector<16x32xf32>
    %79 = tpu.matmul %77, %78, %cst_24 {dimension_numbers = #tpu.dot_dimension_numbers<[1], [0], [0], [1], [0, 0, 1, 1], [], []>} : vector<16x8xf32>, vector<8x32xf32>, vector<16x32xf32> -> vector<16x32xf32>
    %80 = arith.addf %61, %79 : vector<16x32xf32>
    %81 = vector.extract_strided_slice %18 {offsets = [0, 24], sizes = [16, 8], strides = [1, 1]} : vector<16x32xf32> to vector<16x8xf32>
    %82 = vector.extract_strided_slice %21 {offsets = [24, 0], sizes = [8, 16], strides = [1, 1]} : vector<32x16xf32> to vector<8x16xf32>
    %cst_25 = arith.constant dense<0.000000e+00> : vector<16x16xf32>
    %83 = tpu.matmul %81, %82, %cst_25 {dimension_numbers = #tpu.dot_dimension_numbers<[1], [0], [0], [1], [0, 0, 1, 1], [], []>} : vector<16x8xf32>, vector<8x16xf32>, vector<16x16xf32> -> vector<16x16xf32>
    %84 = arith.addf %83, %1 : vector<16x16xf32>
    %cst_26 = arith.constant dense<0xFF800000> : vector<16xf32>
    %85 = vector.multi_reduction <maximumf>, %84, %cst_26 [1] : vector<16x16xf32> to vector<16xf32>
    %86 = vector.shape_cast %85 : vector<16xf32> to vector<16x1xf32>
    %87 = vector.broadcast %86 : vector<16x1xf32> to vector<16x16xf32>
    %88 = arith.subf %84, %87 : vector<16x16xf32>
    %89 = math.exp %88 : vector<16x16xf32>
    %cst_27 = arith.constant dense<0.000000e+00> : vector<16xf32>
    %90 = vector.multi_reduction <add>, %89, %cst_27 [1] : vector<16x16xf32> to vector<16xf32>
    %91 = vector.shape_cast %90 : vector<16xf32> to vector<16x1xf32>
    %92 = tpu.reciprocal %91 {approx = true} : vector<16x1xf32> -> vector<16x1xf32>
    %93 = vector.broadcast %92 : vector<16x1xf32> to vector<16x16xf32>
    %94 = arith.mulf %89, %93 : vector<16x16xf32>
    %95 = vector.extract_strided_slice %20 {offsets = [0, 24], sizes = [16, 8], strides = [1, 1]} : vector<16x32xf32> to vector<16x8xf32>
    %cst_28 = arith.constant dense<0.000000e+00> : vector<16x8xf32>
    %96 = tpu.matmul %94, %95, %cst_28 {dimension_numbers = #tpu.dot_dimension_numbers<[1], [0], [0], [1], [0, 0, 1, 1], [], []>} : vector<16x16xf32>, vector<16x8xf32>, vector<16x8xf32> -> vector<16x8xf32>
    %97 = vector.extract_strided_slice %4 {offsets = [24, 0], sizes = [8, 32], strides = [1, 1]} : vector<32x32xf32> to vector<8x32xf32>
    %cst_29 = arith.constant dense<0.000000e+00> : vector<16x32xf32>
    %98 = tpu.matmul %96, %97, %cst_29 {dimension_numbers = #tpu.dot_dimension_numbers<[1], [0], [0], [1], [0, 0, 1, 1], [], []>} : vector<16x8xf32>, vector<8x32xf32>, vector<16x32xf32> -> vector<16x32xf32>
    %99 = arith.addf %80, %98 : vector<16x32xf32>
    %100 = arith.addf %0, %99 : vector<16x32xf32>
    %cst_30 = arith.constant dense<0.000000e+00> : vector<16xf32>
    %101 = vector.multi_reduction <add>, %100, %cst_30 [1] : vector<16x32xf32> to vector<16xf32>
    %102 = vector.shape_cast %101 : vector<16xf32> to vector<16x1xf32>
    %cst_31 = arith.constant 3.200000e+01 : f32
    %103 = vector.broadcast %cst_31 : f32 to vector<16x1xf32>
    %104 = arith.divf %102, %103 : vector<16x1xf32>
    %105 = vector.broadcast %104 : vector<16x1xf32> to vector<16x32xf32>
    %106 = arith.subf %100, %105 : vector<16x32xf32>
    %107 = arith.mulf %106, %106 : vector<16x32xf32>
    %cst_32 = arith.constant dense<0.000000e+00> : vector<16xf32>
    %108 = vector.multi_reduction <add>, %107, %cst_32 [1] : vector<16x32xf32> to vector<16xf32>
    %109 = vector.shape_cast %108 : vector<16xf32> to vector<16x1xf32>
    %cst_33 = arith.constant 3.200000e+01 : f32
    %110 = vector.broadcast %cst_33 : f32 to vector<16x1xf32>
    %111 = arith.divf %109, %110 : vector<16x1xf32>
    %112 = vector.broadcast %104 : vector<16x1xf32> to vector<16x32xf32>
    %113 = arith.subf %100, %112 : vector<16x32xf32>
    %cst_34 = arith.constant 9.99999974E-6 : f32
    %114 = vector.broadcast %cst_34 : f32 to vector<16x1xf32>
    %115 = arith.addf %111, %114 : vector<16x1xf32>
    %116 = math.rsqrt %115 : vector<16x1xf32>
    %117 = vector.broadcast %116 : vector<16x1xf32> to vector<16x32xf32>
    %118 = arith.mulf %113, %117 : vector<16x32xf32>
    %119 = vector.broadcast %9 : vector<1x32xf32> to vector<16x32xf32>
    %120 = arith.mulf %118, %119 : vector<16x32xf32>
    %121 = vector.broadcast %10 : vector<1x32xf32> to vector<16x32xf32>
    %122 = arith.addf %120, %121 : vector<16x32xf32>
    %cst_35 = arith.constant dense<0.000000e+00> : vector<16x64xf32>
    %123 = tpu.matmul %122, %5, %cst_35 {dimension_numbers = #tpu.dot_dimension_numbers<[1], [0], [0], [1], [0, 0, 1, 1], [], []>} : vector<16x32xf32>, vector<32x64xf32>, vector<16x64xf32> -> vector<16x64xf32>
    %124 = vector.broadcast %11 : vector<1x64xf32> to vector<16x64xf32>
    %125 = arith.addf %123, %124 : vector<16x64xf32>
    %cst_36 = arith.constant 0.000000e+00 : f32
    %126 = vector.broadcast %cst_36 : f32 to vector<16x64xf32>
    %127 = arith.maximumf %125, %126 : vector<16x64xf32>
    %cst_37 = arith.constant dense<0.000000e+00> : vector<16x32xf32>
    %128 = tpu.matmul %127, %6, %cst_37 {dimension_numbers = #tpu.dot_dimension_numbers<[1], [0], [0], [1], [0, 0, 1, 1], [], []>} : vector<16x64xf32>, vector<64x32xf32>, vector<16x32xf32> -> vector<16x32xf32>
    %129 = vector.broadcast %12 : vector<1x32xf32> to vector<16x32xf32>
    %130 = arith.addf %128, %129 : vector<16x32xf32>
    %131 = arith.addf %122, %130 : vector<16x32xf32>
    %cst_38 = arith.constant dense<0.000000e+00> : vector<16xf32>
    %132 = vector.multi_reduction <add>, %131, %cst_38 [1] : vector<16x32xf32> to vector<16xf32>
    %133 = vector.shape_cast %132 : vector<16xf32> to vector<16x1xf32>
    %cst_39 = arith.constant 3.200000e+01 : f32
    %134 = vector.broadcast %cst_39 : f32 to vector<16x1xf32>
    %135 = arith.divf %133, %134 : vector<16x1xf32>
    %136 = vector.broadcast %135 : vector<16x1xf32> to vector<16x32xf32>
    %137 = arith.subf %131, %136 : vector<16x32xf32>
    %138 = arith.mulf %137, %137 : vector<16x32xf32>
    %cst_40 = arith.constant dense<0.000000e+00> : vector<16xf32>
    %139 = vector.multi_reduction <add>, %138, %cst_40 [1] : vector<16x32xf32> to vector<16xf32>
    %140 = vector.shape_cast %139 : vector<16xf32> to vector<16x1xf32>
    %cst_41 = arith.constant 3.200000e+01 : f32
    %141 = vector.broadcast %cst_41 : f32 to vector<16x1xf32>
    %142 = arith.divf %140, %141 : vector<16x1xf32>
    %143 = vector.broadcast %135 : vector<16x1xf32> to vector<16x32xf32>
    %144 = arith.subf %131, %143 : vector<16x32xf32>
    %cst_42 = arith.constant 9.99999974E-6 : f32
    %145 = vector.broadcast %cst_42 : f32 to vector<16x1xf32>
    %146 = arith.addf %142, %145 : vector<16x1xf32>
    %147 = math.rsqrt %146 : vector<16x1xf32>
    %148 = vector.broadcast %147 : vector<16x1xf32> to vector<16x32xf32>
    %149 = arith.mulf %144, %148 : vector<16x32xf32>
    %150 = vector.broadcast %13 : vector<1x32xf32> to vector<16x32xf32>
    %151 = arith.mulf %149, %150 : vector<16x32xf32>
    %152 = vector.broadcast %14 : vector<1x32xf32> to vector<16x32xf32>
    %153 = arith.addf %151, %152 : vector<16x32xf32>
    %c96_43 = arith.constant 96 : index
    %c0_44 = arith.constant 0 : index
    %154 = vector.load %arg1[%c96_43, %c0_44] : memref<192x128xf32, #tpu.memory_space<vmem>>, vector<32x96xf32>
    %c96_45 = arith.constant 96 : index
    %c96_46 = arith.constant 96 : index
    %155 = vector.load %arg1[%c96_45, %c96_46] : memref<192x128xf32, #tpu.memory_space<vmem>>, vector<32x32xf32>
    %c128 = arith.constant 128 : index
    %c0_47 = arith.constant 0 : index
    %156 = vector.load %arg1[%c128, %c0_47] : memref<192x128xf32, #tpu.memory_space<vmem>>, vector<32x64xf32>
    %c128_48 = arith.constant 128 : index
    %c64_49 = arith.constant 64 : index
    %157 = vector.load %arg1[%c128_48, %c64_49] : memref<192x128xf32, #tpu.memory_space<vmem>>, vector<64x32xf32>
    %158 = vector.extract_strided_slice %2 {offsets = [3, 0], sizes = [1, 96], strides = [1, 1]} : vector<8x128xf32> to vector<1x96xf32>
    %159 = vector.extract_strided_slice %2 {offsets = [3, 96], sizes = [1, 32], strides = [1, 1]} : vector<8x128xf32> to vector<1x32xf32>
    %160 = vector.extract_strided_slice %2 {offsets = [4, 0], sizes = [1, 32], strides = [1, 1]} : vector<8x128xf32> to vector<1x32xf32>
    %161 = vector.extract_strided_slice %2 {offsets = [4, 32], sizes = [1, 32], strides = [1, 1]} : vector<8x128xf32> to vector<1x32xf32>
    %162 = vector.extract_strided_slice %2 {offsets = [4, 64], sizes = [1, 64], strides = [1, 1]} : vector<8x128xf32> to vector<1x64xf32>
    %163 = vector.extract_strided_slice %2 {offsets = [5, 0], sizes = [1, 32], strides = [1, 1]} : vector<8x128xf32> to vector<1x32xf32>
    %164 = vector.extract_strided_slice %2 {offsets = [5, 32], sizes = [1, 32], strides = [1, 1]} : vector<8x128xf32> to vector<1x32xf32>
    %165 = vector.extract_strided_slice %2 {offsets = [5, 64], sizes = [1, 32], strides = [1, 1]} : vector<8x128xf32> to vector<1x32xf32>
    %cst_50 = arith.constant dense<0.000000e+00> : vector<16x96xf32>
    %166 = tpu.matmul %153, %154, %cst_50 {dimension_numbers = #tpu.dot_dimension_numbers<[1], [0], [0], [1], [0, 0, 1, 1], [], []>} : vector<16x32xf32>, vector<32x96xf32>, vector<16x96xf32> -> vector<16x96xf32>
    %167 = vector.broadcast %158 : vector<1x96xf32> to vector<16x96xf32>
    %168 = arith.addf %166, %167 : vector<16x96xf32>
    %169 = vector.extract_strided_slice %168 {offsets = [0, 0], sizes = [16, 32], strides = [1, 1]} : vector<16x96xf32> to vector<16x32xf32>
    %170 = vector.extract_strided_slice %168 {offsets = [0, 32], sizes = [16, 32], strides = [1, 1]} : vector<16x96xf32> to vector<16x32xf32>
    %171 = vector.extract_strided_slice %168 {offsets = [0, 64], sizes = [16, 32], strides = [1, 1]} : vector<16x96xf32> to vector<16x32xf32>
    %172 = tpu.transpose %170, [1, 0] : vector<16x32xf32> -> vector<32x16xf32>
    %173 = vector.shape_cast %159 : vector<1x32xf32> to vector<1x32xf32>
    %174 = vector.broadcast %173 : vector<1x32xf32> to vector<16x32xf32>
    %175 = vector.extract_strided_slice %169 {offsets = [0, 0], sizes = [16, 8], strides = [1, 1]} : vector<16x32xf32> to vector<16x8xf32>
    %176 = vector.extract_strided_slice %172 {offsets = [0, 0], sizes = [8, 16], strides = [1, 1]} : vector<32x16xf32> to vector<8x16xf32>
    %cst_51 = arith.constant dense<0.000000e+00> : vector<16x16xf32>
    %177 = tpu.matmul %175, %176, %cst_51 {dimension_numbers = #tpu.dot_dimension_numbers<[1], [0], [0], [1], [0, 0, 1, 1], [], []>} : vector<16x8xf32>, vector<8x16xf32>, vector<16x16xf32> -> vector<16x16xf32>
    %178 = arith.addf %177, %1 : vector<16x16xf32>
    %cst_52 = arith.constant dense<0xFF800000> : vector<16xf32>
    %179 = vector.multi_reduction <maximumf>, %178, %cst_52 [1] : vector<16x16xf32> to vector<16xf32>
    %180 = vector.shape_cast %179 : vector<16xf32> to vector<16x1xf32>
    %181 = vector.broadcast %180 : vector<16x1xf32> to vector<16x16xf32>
    %182 = arith.subf %178, %181 : vector<16x16xf32>
    %183 = math.exp %182 : vector<16x16xf32>
    %cst_53 = arith.constant dense<0.000000e+00> : vector<16xf32>
    %184 = vector.multi_reduction <add>, %183, %cst_53 [1] : vector<16x16xf32> to vector<16xf32>
    %185 = vector.shape_cast %184 : vector<16xf32> to vector<16x1xf32>
    %186 = tpu.reciprocal %185 {approx = true} : vector<16x1xf32> -> vector<16x1xf32>
    %187 = vector.broadcast %186 : vector<16x1xf32> to vector<16x16xf32>
    %188 = arith.mulf %183, %187 : vector<16x16xf32>
    %189 = vector.extract_strided_slice %171 {offsets = [0, 0], sizes = [16, 8], strides = [1, 1]} : vector<16x32xf32> to vector<16x8xf32>
    %cst_54 = arith.constant dense<0.000000e+00> : vector<16x8xf32>
    %190 = tpu.matmul %188, %189, %cst_54 {dimension_numbers = #tpu.dot_dimension_numbers<[1], [0], [0], [1], [0, 0, 1, 1], [], []>} : vector<16x16xf32>, vector<16x8xf32>, vector<16x8xf32> -> vector<16x8xf32>
    %191 = vector.extract_strided_slice %155 {offsets = [0, 0], sizes = [8, 32], strides = [1, 1]} : vector<32x32xf32> to vector<8x32xf32>
    %cst_55 = arith.constant dense<0.000000e+00> : vector<16x32xf32>
    %192 = tpu.matmul %190, %191, %cst_55 {dimension_numbers = #tpu.dot_dimension_numbers<[1], [0], [0], [1], [0, 0, 1, 1], [], []>} : vector<16x8xf32>, vector<8x32xf32>, vector<16x32xf32> -> vector<16x32xf32>
    %193 = arith.addf %174, %192 : vector<16x32xf32>
    %194 = vector.extract_strided_slice %169 {offsets = [0, 8], sizes = [16, 8], strides = [1, 1]} : vector<16x32xf32> to vector<16x8xf32>
    %195 = vector.extract_strided_slice %172 {offsets = [8, 0], sizes = [8, 16], strides = [1, 1]} : vector<32x16xf32> to vector<8x16xf32>
    %cst_56 = arith.constant dense<0.000000e+00> : vector<16x16xf32>
    %196 = tpu.matmul %194, %195, %cst_56 {dimension_numbers = #tpu.dot_dimension_numbers<[1], [0], [0], [1], [0, 0, 1, 1], [], []>} : vector<16x8xf32>, vector<8x16xf32>, vector<16x16xf32> -> vector<16x16xf32>
    %197 = arith.addf %196, %1 : vector<16x16xf32>
    %cst_57 = arith.constant dense<0xFF800000> : vector<16xf32>
    %198 = vector.multi_reduction <maximumf>, %197, %cst_57 [1] : vector<16x16xf32> to vector<16xf32>
    %199 = vector.shape_cast %198 : vector<16xf32> to vector<16x1xf32>
    %200 = vector.broadcast %199 : vector<16x1xf32> to vector<16x16xf32>
    %201 = arith.subf %197, %200 : vector<16x16xf32>
    %202 = math.exp %201 : vector<16x16xf32>
    %cst_58 = arith.constant dense<0.000000e+00> : vector<16xf32>
    %203 = vector.multi_reduction <add>, %202, %cst_58 [1] : vector<16x16xf32> to vector<16xf32>
    %204 = vector.shape_cast %203 : vector<16xf32> to vector<16x1xf32>
    %205 = tpu.reciprocal %204 {approx = true} : vector<16x1xf32> -> vector<16x1xf32>
    %206 = vector.broadcast %205 : vector<16x1xf32> to vector<16x16xf32>
    %207 = arith.mulf %202, %206 : vector<16x16xf32>
    %208 = vector.extract_strided_slice %171 {offsets = [0, 8], sizes = [16, 8], strides = [1, 1]} : vector<16x32xf32> to vector<16x8xf32>
    %cst_59 = arith.constant dense<0.000000e+00> : vector<16x8xf32>
    %209 = tpu.matmul %207, %208, %cst_59 {dimension_numbers = #tpu.dot_dimension_numbers<[1], [0], [0], [1], [0, 0, 1, 1], [], []>} : vector<16x16xf32>, vector<16x8xf32>, vector<16x8xf32> -> vector<16x8xf32>
    %210 = vector.extract_strided_slice %155 {offsets = [8, 0], sizes = [8, 32], strides = [1, 1]} : vector<32x32xf32> to vector<8x32xf32>
    %cst_60 = arith.constant dense<0.000000e+00> : vector<16x32xf32>
    %211 = tpu.matmul %209, %210, %cst_60 {dimension_numbers = #tpu.dot_dimension_numbers<[1], [0], [0], [1], [0, 0, 1, 1], [], []>} : vector<16x8xf32>, vector<8x32xf32>, vector<16x32xf32> -> vector<16x32xf32>
    %212 = arith.addf %193, %211 : vector<16x32xf32>
    %213 = vector.extract_strided_slice %169 {offsets = [0, 16], sizes = [16, 8], strides = [1, 1]} : vector<16x32xf32> to vector<16x8xf32>
    %214 = vector.extract_strided_slice %172 {offsets = [16, 0], sizes = [8, 16], strides = [1, 1]} : vector<32x16xf32> to vector<8x16xf32>
    %cst_61 = arith.constant dense<0.000000e+00> : vector<16x16xf32>
    %215 = tpu.matmul %213, %214, %cst_61 {dimension_numbers = #tpu.dot_dimension_numbers<[1], [0], [0], [1], [0, 0, 1, 1], [], []>} : vector<16x8xf32>, vector<8x16xf32>, vector<16x16xf32> -> vector<16x16xf32>
    %216 = arith.addf %215, %1 : vector<16x16xf32>
    %cst_62 = arith.constant dense<0xFF800000> : vector<16xf32>
    %217 = vector.multi_reduction <maximumf>, %216, %cst_62 [1] : vector<16x16xf32> to vector<16xf32>
    %218 = vector.shape_cast %217 : vector<16xf32> to vector<16x1xf32>
    %219 = vector.broadcast %218 : vector<16x1xf32> to vector<16x16xf32>
    %220 = arith.subf %216, %219 : vector<16x16xf32>
    %221 = math.exp %220 : vector<16x16xf32>
    %cst_63 = arith.constant dense<0.000000e+00> : vector<16xf32>
    %222 = vector.multi_reduction <add>, %221, %cst_63 [1] : vector<16x16xf32> to vector<16xf32>
    %223 = vector.shape_cast %222 : vector<16xf32> to vector<16x1xf32>
    %224 = tpu.reciprocal %223 {approx = true} : vector<16x1xf32> -> vector<16x1xf32>
    %225 = vector.broadcast %224 : vector<16x1xf32> to vector<16x16xf32>
    %226 = arith.mulf %221, %225 : vector<16x16xf32>
    %227 = vector.extract_strided_slice %171 {offsets = [0, 16], sizes = [16, 8], strides = [1, 1]} : vector<16x32xf32> to vector<16x8xf32>
    %cst_64 = arith.constant dense<0.000000e+00> : vector<16x8xf32>
    %228 = tpu.matmul %226, %227, %cst_64 {dimension_numbers = #tpu.dot_dimension_numbers<[1], [0], [0], [1], [0, 0, 1, 1], [], []>} : vector<16x16xf32>, vector<16x8xf32>, vector<16x8xf32> -> vector<16x8xf32>
    %229 = vector.extract_strided_slice %155 {offsets = [16, 0], sizes = [8, 32], strides = [1, 1]} : vector<32x32xf32> to vector<8x32xf32>
    %cst_65 = arith.constant dense<0.000000e+00> : vector<16x32xf32>
    %230 = tpu.matmul %228, %229, %cst_65 {dimension_numbers = #tpu.dot_dimension_numbers<[1], [0], [0], [1], [0, 0, 1, 1], [], []>} : vector<16x8xf32>, vector<8x32xf32>, vector<16x32xf32> -> vector<16x32xf32>
    %231 = arith.addf %212, %230 : vector<16x32xf32>
    %232 = vector.extract_strided_slice %169 {offsets = [0, 24], sizes = [16, 8], strides = [1, 1]} : vector<16x32xf32> to vector<16x8xf32>
    %233 = vector.extract_strided_slice %172 {offsets = [24, 0], sizes = [8, 16], strides = [1, 1]} : vector<32x16xf32> to vector<8x16xf32>
    %cst_66 = arith.constant dense<0.000000e+00> : vector<16x16xf32>
    %234 = tpu.matmul %232, %233, %cst_66 {dimension_numbers = #tpu.dot_dimension_numbers<[1], [0], [0], [1], [0, 0, 1, 1], [], []>} : vector<16x8xf32>, vector<8x16xf32>, vector<16x16xf32> -> vector<16x16xf32>
    %235 = arith.addf %234, %1 : vector<16x16xf32>
    %cst_67 = arith.constant dense<0xFF800000> : vector<16xf32>
    %236 = vector.multi_reduction <maximumf>, %235, %cst_67 [1] : vector<16x16xf32> to vector<16xf32>
    %237 = vector.shape_cast %236 : vector<16xf32> to vector<16x1xf32>
    %238 = vector.broadcast %237 : vector<16x1xf32> to vector<16x16xf32>
    %239 = arith.subf %235, %238 : vector<16x16xf32>
    %240 = math.exp %239 : vector<16x16xf32>
    %cst_68 = arith.constant dense<0.000000e+00> : vector<16xf32>
    %241 = vector.multi_reduction <add>, %240, %cst_68 [1] : vector<16x16xf32> to vector<16xf32>
    %242 = vector.shape_cast %241 : vector<16xf32> to vector<16x1xf32>
    %243 = tpu.reciprocal %242 {approx = true} : vector<16x1xf32> -> vector<16x1xf32>
    %244 = vector.broadcast %243 : vector<16x1xf32> to vector<16x16xf32>
    %245 = arith.mulf %240, %244 : vector<16x16xf32>
    %246 = vector.extract_strided_slice %171 {offsets = [0, 24], sizes = [16, 8], strides = [1, 1]} : vector<16x32xf32> to vector<16x8xf32>
    %cst_69 = arith.constant dense<0.000000e+00> : vector<16x8xf32>
    %247 = tpu.matmul %245, %246, %cst_69 {dimension_numbers = #tpu.dot_dimension_numbers<[1], [0], [0], [1], [0, 0, 1, 1], [], []>} : vector<16x16xf32>, vector<16x8xf32>, vector<16x8xf32> -> vector<16x8xf32>
    %248 = vector.extract_strided_slice %155 {offsets = [24, 0], sizes = [8, 32], strides = [1, 1]} : vector<32x32xf32> to vector<8x32xf32>
    %cst_70 = arith.constant dense<0.000000e+00> : vector<16x32xf32>
    %249 = tpu.matmul %247, %248, %cst_70 {dimension_numbers = #tpu.dot_dimension_numbers<[1], [0], [0], [1], [0, 0, 1, 1], [], []>} : vector<16x8xf32>, vector<8x32xf32>, vector<16x32xf32> -> vector<16x32xf32>
    %250 = arith.addf %231, %249 : vector<16x32xf32>
    %251 = arith.addf %153, %250 : vector<16x32xf32>
    %cst_71 = arith.constant dense<0.000000e+00> : vector<16xf32>
    %252 = vector.multi_reduction <add>, %251, %cst_71 [1] : vector<16x32xf32> to vector<16xf32>
    %253 = vector.shape_cast %252 : vector<16xf32> to vector<16x1xf32>
    %cst_72 = arith.constant 3.200000e+01 : f32
    %254 = vector.broadcast %cst_72 : f32 to vector<16x1xf32>
    %255 = arith.divf %253, %254 : vector<16x1xf32>
    %256 = vector.broadcast %255 : vector<16x1xf32> to vector<16x32xf32>
    %257 = arith.subf %251, %256 : vector<16x32xf32>
    %258 = arith.mulf %257, %257 : vector<16x32xf32>
    %cst_73 = arith.constant dense<0.000000e+00> : vector<16xf32>
    %259 = vector.multi_reduction <add>, %258, %cst_73 [1] : vector<16x32xf32> to vector<16xf32>
    %260 = vector.shape_cast %259 : vector<16xf32> to vector<16x1xf32>
    %cst_74 = arith.constant 3.200000e+01 : f32
    %261 = vector.broadcast %cst_74 : f32 to vector<16x1xf32>
    %262 = arith.divf %260, %261 : vector<16x1xf32>
    %263 = vector.broadcast %255 : vector<16x1xf32> to vector<16x32xf32>
    %264 = arith.subf %251, %263 : vector<16x32xf32>
    %cst_75 = arith.constant 9.99999974E-6 : f32
    %265 = vector.broadcast %cst_75 : f32 to vector<16x1xf32>
    %266 = arith.addf %262, %265 : vector<16x1xf32>
    %267 = math.rsqrt %266 : vector<16x1xf32>
    %268 = vector.broadcast %267 : vector<16x1xf32> to vector<16x32xf32>
    %269 = arith.mulf %264, %268 : vector<16x32xf32>
    %270 = vector.broadcast %160 : vector<1x32xf32> to vector<16x32xf32>
    %271 = arith.mulf %269, %270 : vector<16x32xf32>
    %272 = vector.broadcast %161 : vector<1x32xf32> to vector<16x32xf32>
    %273 = arith.addf %271, %272 : vector<16x32xf32>
    %cst_76 = arith.constant dense<0.000000e+00> : vector<16x64xf32>
    %274 = tpu.matmul %273, %156, %cst_76 {dimension_numbers = #tpu.dot_dimension_numbers<[1], [0], [0], [1], [0, 0, 1, 1], [], []>} : vector<16x32xf32>, vector<32x64xf32>, vector<16x64xf32> -> vector<16x64xf32>
    %275 = vector.broadcast %162 : vector<1x64xf32> to vector<16x64xf32>
    %276 = arith.addf %274, %275 : vector<16x64xf32>
    %cst_77 = arith.constant 0.000000e+00 : f32
    %277 = vector.broadcast %cst_77 : f32 to vector<16x64xf32>
    %278 = arith.maximumf %276, %277 : vector<16x64xf32>
    %cst_78 = arith.constant dense<0.000000e+00> : vector<16x32xf32>
    %279 = tpu.matmul %278, %157, %cst_78 {dimension_numbers = #tpu.dot_dimension_numbers<[1], [0], [0], [1], [0, 0, 1, 1], [], []>} : vector<16x64xf32>, vector<64x32xf32>, vector<16x32xf32> -> vector<16x32xf32>
    %280 = vector.broadcast %163 : vector<1x32xf32> to vector<16x32xf32>
    %281 = arith.addf %279, %280 : vector<16x32xf32>
    %282 = arith.addf %273, %281 : vector<16x32xf32>
    %cst_79 = arith.constant dense<0.000000e+00> : vector<16xf32>
    %283 = vector.multi_reduction <add>, %282, %cst_79 [1] : vector<16x32xf32> to vector<16xf32>
    %284 = vector.shape_cast %283 : vector<16xf32> to vector<16x1xf32>
    %cst_80 = arith.constant 3.200000e+01 : f32
    %285 = vector.broadcast %cst_80 : f32 to vector<16x1xf32>
    %286 = arith.divf %284, %285 : vector<16x1xf32>
    %287 = vector.broadcast %286 : vector<16x1xf32> to vector<16x32xf32>
    %288 = arith.subf %282, %287 : vector<16x32xf32>
    %289 = arith.mulf %288, %288 : vector<16x32xf32>
    %cst_81 = arith.constant dense<0.000000e+00> : vector<16xf32>
    %290 = vector.multi_reduction <add>, %289, %cst_81 [1] : vector<16x32xf32> to vector<16xf32>
    %291 = vector.shape_cast %290 : vector<16xf32> to vector<16x1xf32>
    %cst_82 = arith.constant 3.200000e+01 : f32
    %292 = vector.broadcast %cst_82 : f32 to vector<16x1xf32>
    %293 = arith.divf %291, %292 : vector<16x1xf32>
    %294 = vector.broadcast %286 : vector<16x1xf32> to vector<16x32xf32>
    %295 = arith.subf %282, %294 : vector<16x32xf32>
    %cst_83 = arith.constant 9.99999974E-6 : f32
    %296 = vector.broadcast %cst_83 : f32 to vector<16x1xf32>
    %297 = arith.addf %293, %296 : vector<16x1xf32>
    %298 = math.rsqrt %297 : vector<16x1xf32>
    %299 = vector.broadcast %298 : vector<16x1xf32> to vector<16x32xf32>
    %300 = arith.mulf %295, %299 : vector<16x32xf32>
    %301 = vector.broadcast %164 : vector<1x32xf32> to vector<16x32xf32>
    %302 = arith.mulf %300, %301 : vector<16x32xf32>
    %303 = vector.broadcast %165 : vector<1x32xf32> to vector<16x32xf32>
    %304 = arith.addf %302, %303 : vector<16x32xf32>
    %305 = vector.extract_strided_slice %2 {offsets = [6, 0], sizes = [1, 32], strides = [1, 1]} : vector<8x128xf32> to vector<1x32xf32>
    %306 = vector.extract_strided_slice %2 {offsets = [6, 32], sizes = [1, 32], strides = [1, 1]} : vector<8x128xf32> to vector<1x32xf32>
    %cst_84 = arith.constant dense<0.000000e+00> : vector<16xf32>
    %307 = vector.multi_reduction <add>, %304, %cst_84 [1] : vector<16x32xf32> to vector<16xf32>
    %308 = vector.shape_cast %307 : vector<16xf32> to vector<16x1xf32>
    %cst_85 = arith.constant 3.200000e+01 : f32
    %309 = vector.broadcast %cst_85 : f32 to vector<16x1xf32>
    %310 = arith.divf %308, %309 : vector<16x1xf32>
    %311 = vector.broadcast %310 : vector<16x1xf32> to vector<16x32xf32>
    %312 = arith.subf %304, %311 : vector<16x32xf32>
    %313 = arith.mulf %312, %312 : vector<16x32xf32>
    %cst_86 = arith.constant dense<0.000000e+00> : vector<16xf32>
    %314 = vector.multi_reduction <add>, %313, %cst_86 [1] : vector<16x32xf32> to vector<16xf32>
    %315 = vector.shape_cast %314 : vector<16xf32> to vector<16x1xf32>
    %cst_87 = arith.constant 3.200000e+01 : f32
    %316 = vector.broadcast %cst_87 : f32 to vector<16x1xf32>
    %317 = arith.divf %315, %316 : vector<16x1xf32>
    %318 = vector.broadcast %310 : vector<16x1xf32> to vector<16x32xf32>
    %319 = arith.subf %304, %318 : vector<16x32xf32>
    %cst_88 = arith.constant 9.99999974E-6 : f32
    %320 = vector.broadcast %cst_88 : f32 to vector<16x1xf32>
    %321 = arith.addf %317, %320 : vector<16x1xf32>
    %322 = math.rsqrt %321 : vector<16x1xf32>
    %323 = vector.broadcast %322 : vector<16x1xf32> to vector<16x32xf32>
    %324 = arith.mulf %319, %323 : vector<16x32xf32>
    %325 = vector.broadcast %305 : vector<1x32xf32> to vector<16x32xf32>
    %326 = arith.mulf %324, %325 : vector<16x32xf32>
    %327 = vector.broadcast %306 : vector<1x32xf32> to vector<16x32xf32>
    %328 = arith.addf %326, %327 : vector<16x32xf32>
    %c0_89 = arith.constant 0 : index
    %c0_90 = arith.constant 0 : index
    %329 = vector.load %arg4[%c0_89, %c0_90] : memref<16x32xf32, #tpu.memory_space<vmem>>, vector<16x32xf32>
    tpu.vector_store %arg4[%c0_89, %c0_90], %328 {strides = array<i32>} : memref<16x32xf32, #tpu.memory_space<vmem>>, vector<16x32xf32>,
    return
  }
}

</mosaic_0001>

<llo_original>
// kernel: transformer_forward.1
$region0: #{transformer_forward.1}
  #allocation0 [shape = 'u32[]', space=smem, size = 0x4, offset = 0x4, fixed_abs, tag = 'smem constant byte address 0x4 - core index']
  #allocation1 [shape = 'u32[144,128]{1,0:T(1,128)}', space=vmem, size = 0x12000, scoped, tag = 'internal scratch']
  %s0 = inlined_call_operand.vmem [shape: f32[16,32], index: 0, kind: input, shape index: {}]
  %s1 = inlined_call_operand.hbm [shape: f32[192,128], index: 1, kind: input, shape index: {}]
  %s2 = inlined_call_operand.vmem [shape: f32[8,128], index: 2, kind: input, shape index: {}]
  %s3 = inlined_call_operand.vmem [shape: f32[16,16], index: 3, kind: input, shape index: {}]
  %s4 = inlined_call_operand.vmem [shape: f32[16,32], index: 4, kind: output, shape index: {}]
  %s5 = sld [smem:[#allocation0]]
  $region30: #{transformer_forward.1} parent=0
    _
  %s7 = ssub.s32 1, %s5
  %s8 = scalar_select 0, %s7, %s5
  $region1: #{transformer_forward.1} parent=0
    #allocation2 [shape = 'u8[98304]{0}', space=vmem, size = 0x18000, scoped, tag = 'input window, operand 1, single buffered']
    #allocation3 [shape = 's32[1]{0}', space=sflag, size = 0x4, scoped, tag = 'scoped memory for transformer_forward.1']
    %9 = vsyncpa [#allocation3], 0
    // Predicated region
    $region2: #{transformer_forward.1} parent=1 // pred_check
      _
    $region3: #{transformer_forward.1} parent=1 // pred_check_branch
      %11 = sbr.rel (0) target = $region5
    $region4: #{transformer_forward.1} parent=1 // pred_region
      _
    $region5: #{transformer_forward.1} parent=1 // pred_fallthru
      _
    // Predicated region
    $region6: #{transformer_forward.1} parent=1 // pred_check
      _
    $region7: #{transformer_forward.1} parent=1 // pred_check_branch
      %13 = sbr.rel (0) target = $region9
    $region8: #{transformer_forward.1} parent=1 // pred_region
      %s15 = ssub.s32 3072, 3072
      %16 = vsyncadd [#allocation3], %s15
      %s17 = sshll.u32 [#allocation2], 4
      %s18 = int_to_ptr.vmem [resolvable:$true] %s17
      %23 = dma.hbm_to_vmem [thread:$0]  %s1, 3072, %s18, [#allocation3], 128, 128, 8
    $region9: #{transformer_forward.1} parent=1 // pred_fallthru
      _
    // Predicated region
    $region10: #{transformer_forward.1} parent=1 // pred_check
      _
    $region11: #{transformer_forward.1} parent=1 // pred_check_branch
      %25 = sbr.rel (0) target = $region13
    $region12: #{transformer_forward.1} parent=1 // pred_region
      _
    $region13: #{transformer_forward.1} parent=1 // pred_fallthru
      _
    // Predicated region
    $region14: #{transformer_forward.1} parent=1 // pred_check
      _
    $region15: #{transformer_forward.1} parent=1 // pred_check_branch
      %27 = sbr.rel (0) target = $region17
    $region16: #{transformer_forward.1} parent=1 // pred_region
      _
    $region17: #{transformer_forward.1} parent=1 // pred_fallthru
      _
    // Predicated region
    $region18: #{transformer_forward.1} parent=1 // pred_check
      _
    $region19: #{transformer_forward.1} parent=1 // pred_check_branch
      %29 = sbr.rel (0) target = $region21
    $region20: #{transformer_forward.1} parent=1 // pred_region
      %30 = dma.done [#allocation3], 3072
    $region21: #{transformer_forward.1} parent=1 // pred_fallthru
      _
    %v31 = vld [vmem:[%s0] sm:$0xff]
    %v32 = vld [vmem:[%s0 + $0x8] sm:$0xff]
    %v33 = vld [vmem:[%s3] sm:$0xff]
    %v34 = vld [vmem:[%s3 + $0x8] sm:$0xff]
    %v35 = vld [vmem:[%s2] sm:$0xff]
    %v36 = vld [vmem:[#allocation2] sm:$0xff]
    %v37 = vld [vmem:[#allocation2 + $0x8] sm:$0xff]
    %v38 = vld [vmem:[#allocation2 + $0x10] sm:$0xff]
    %v39 = vld [vmem:[#allocation2 + $0x18] sm:$0xff]
    %v40 = vld [vmem:[#allocation2 + $0x20] sm:$0xff]
    %v41 = vld [vmem:[#allocation2 + $0x28] sm:$0xff]
    %v42 = vld [vmem:[#allocation2 + $0x30] sm:$0xff]
    %v43 = vld [vmem:[#allocation2 + $0x38] sm:$0xff]
    %v44 = vld [vmem:[#allocation2 + $0x40] sm:$0xff]
    %v45 = vld [vmem:[#allocation2 + $0x48] sm:$0xff]
    %v46 = vld [vmem:[#allocation2 + $0x50] sm:$0xff]
    %v47 = vld [vmem:[#allocation2 + $0x58] sm:$0xff]
    %v48 = vlaneseq
    %v49 = vshrl.u32 %v48, 7
    %v50 = vsub.s32 0, %v49
    %v51 = vrot.slane %v35, %v50
    %vm52 = vcmask 261120
    %v54 = vsel %vm52, %v31, 0
    %v57 = vsel %vm52, %v32, 0
    %59 = vmatprep.subr.mxu0 0.0
    %60 = vmatpush1.msra.mxu0 %v36
    %61 = vmatprep.subr.mxu0 0.0
    %62 = vmatpush1.msra.mxu0 %v37
    %63 = vmatprep.subr.mxu0 0.0
    %64 = vmatpush1.msra.mxu0 %v38
    %65 = vmatprep.subr.mxu0 0.0
    %66 = vmatpush1.msra.mxu0 %v39
    %67 = vmatprep.subr.mxu0 0.0
    %68 = vmatpush1.msra.mxu0 0.0
    %69 = vmatprep.subr.mxu0 0.0
    %70 = vmatpush1.msra.mxu0 0.0
    %71 = vmatprep.subr.mxu0 0.0
    %72 = vmatpush1.msra.mxu0 0.0
    %73 = vmatprep.subr.mxu0 0.0
    %74 = vmatpush1.msra.mxu0 0.0
    %75 = vmatprep.subr.mxu0 0.0
    %76 = vmatpush1.msra.mxu0 0.0
    %77 = vmatprep.subr.mxu0 0.0
    %78 = vmatpush1.msra.mxu0 0.0
    %79 = vmatprep.subr.mxu0 0.0
    %80 = vmatpush1.msra.mxu0 0.0
    %81 = vmatprep.subr.mxu0 0.0
    %82 = vmatpush1.msra.mxu0 0.0
    %83 = vmatprep.subr.mxu0 0.0
    %84 = vmatpush1.msra.mxu0 0.0
    %85 = vmatprep.subr.mxu0 0.0
    %86 = vmatpush1.msra.mxu0 0.0
    %87 = vmatprep.subr.mxu0 0.0
    %88 = vmatpush1.msra.mxu0 0.0
    %89 = vmatprep.subr.mxu0 0.0
    %90 = vmatpush1.msra.mxu0 0.0
    %91 = vmatprep.subr.mxu0 0.0
    %92 = vmatpush1.msra.mxu0 0.0
    %93 = vmatprep.subr.mxu0 0.0
    %94 = vmatpush1.msra.mxu0 0.0
    %95 = vmatprep.subr.mxu0 0.0
    %96 = vmatpush1.msra.mxu0 0.0
    %97 = vmatprep.subr.mxu0 0.0
    %98 = vmatpush1.msra.mxu0 0.0
    %99 = vmatprep.subr.mxu0 0.0
    %100 = vmatpush1.msra.mxu0 0.0
    %101 = vmatprep.subr.mxu0 0.0
    %102 = vmatpush1.msra.mxu0 0.0
    %103 = vmatprep.subr.mxu0 0.0
    %104 = vmatpush1.msra.mxu0 0.0
    %105 = vmatprep.subr.mxu0 0.0
    %106 = vmatpush1.msra.mxu0 0.0
    %107 = vmatprep.subr.mxu0 0.0
    %108 = vmatpush1.msra.mxu0 0.0
    %109 = vmatprep.subr.mxu0 0.0
    %110 = vmatpush1.msra.mxu0 0.0
    %111 = vmatprep.subr.mxu0 0.0
    %112 = vmatpush1.msra.mxu0 0.0
    %113 = vmatprep.subr.mxu0 0.0
    %114 = vmatpush1.msra.mxu0 0.0
    %115 = vmatprep.subr.mxu0 0.0
    %116 = vmatpush1.msra.mxu0 0.0
    %117 = vmatprep.subr.mxu0 0.0
    %118 = vmatpush1.msra.mxu0 0.0
    %119 = vmatprep.subr.mxu0 0.0
    %120 = vmatpush1.msra.mxu0 0.0
    %121 = vmatprep.subr.mxu0 0.0
    %122 = vmatpush1.msra.mxu0 0.0
    %123 = vmatprep.mubr.f32.mxu0 0.0
    %124 = vmatmul.mubr.f32.gmra.mrb[0].mxu0 %v54
    %v125 = vpop.f32.mrb[0].mxu0
    %v126 = vadd.f32 %v51, %v125
    %v127 = vpop.f32.mrb[0].mxu0
    %128 = vmatprep.mubr.f32.mxu0 0.0
    %129 = vmatmul.mubr.f32.gmra.mrb[0].mxu0 %v57
    %v130 = vpop.f32.mrb[0].mxu0
    %v131 = vadd.f32 %v51, %v130
    %v132 = vpop.f32.mrb[0].mxu0
    %133 = vdwg.mxu0
    %136 = vrot.lane.b32.xlu0 %v126, 96
    %v137 = vpop.permute.xlu0 %136
    %138 = vrot.lane.b32.xlu0 %v131, 96
    %v139 = vpop.permute.xlu0 %138
    %vm140 = vcmask 64512
    %v141 = vsel %vm140, %v126, 0
    %v143 = vsel %vm140, %v131, 0
    %v145 = vsel %vm140, %v137, 0
    %v147 = vsel %vm140, %v139, 0
    %149 = vmatprep.subr.mxu0 0.0
    %150 = vmatpush1.xpose.msra.mxu0 %v145
    %151 = vmatprep.subr.mxu0 0.0
    %152 = vmatpush1.xpose.msra.mxu0 %v147
    %153 = vmatprep.subr.mxu0 0.0
    %154 = vmatpush1.xpose.msra.mxu0 0.0
    %155 = vmatprep.subr.mxu0 0.0
    %156 = vmatpush1.xpose.msra.mxu0 0.0
    %157 = vmatprep.subr.mxu0 0.0
    %158 = vmatpush1.xpose.msra.mxu0 0.0
    %159 = vmatprep.subr.mxu0 0.0
    %160 = vmatpush1.xpose.msra.mxu0 0.0
    %161 = vmatprep.subr.mxu0 0.0
    %162 = vmatpush1.xpose.msra.mxu0 0.0
    %163 = vmatprep.subr.mxu0 0.0
    %164 = vmatpush1.xpose.msra.mxu0 0.0
    %165 = vmatprep.subr.mxu0 0.0
    %166 = vmatpush1.xpose.msra.mxu0 0.0
    %167 = vmatprep.subr.mxu0 0.0
    %168 = vmatpush1.xpose.msra.mxu0 0.0
    %169 = vmatprep.subr.mxu0 0.0
    %170 = vmatpush1.xpose.msra.mxu0 0.0
    %171 = vmatprep.subr.mxu0 0.0
    %172 = vmatpush1.xpose.msra.mxu0 0.0
    %173 = vmatprep.subr.mxu0 0.0
    %174 = vmatpush1.xpose.msra.mxu0 0.0
    %175 = vmatprep.subr.mxu0 0.0
    %176 = vmatpush1.xpose.msra.mxu0 0.0
    %177 = vmatprep.subr.mxu0 0.0
    %178 = vmatpush1.xpose.msra.mxu0 0.0
    %179 = vmatprep.subr.mxu0 0.0
    %180 = vmatpush1.xpose.msra.mxu0 0.0
    %181 = vmatprep.subr.mxu0 0.0
    %182 = vmatpush1.xpose.msra.mxu0 0.0
    %183 = vmatprep.subr.mxu0 0.0
    %184 = vmatpush1.xpose.msra.mxu0 0.0
    %185 = vmatprep.subr.mxu0 0.0
    %186 = vmatpush1.xpose.msra.mxu0 0.0
    %187 = vmatprep.subr.mxu0 0.0
    %188 = vmatpush1.xpose.msra.mxu0 0.0
    %189 = vmatprep.subr.mxu0 0.0
    %190 = vmatpush1.xpose.msra.mxu0 0.0
    %191 = vmatprep.subr.mxu0 0.0
    %192 = vmatpush1.xpose.msra.mxu0 0.0
    %193 = vmatprep.subr.mxu0 0.0
    %194 = vmatpush1.xpose.msra.mxu0 0.0
    %195 = vmatprep.subr.mxu0 0.0
    %196 = vmatpush1.xpose.msra.mxu0 0.0
    %197 = vmatprep.subr.mxu0 0.0
    %198 = vmatpush1.xpose.msra.mxu0 0.0
    %199 = vmatprep.subr.mxu0 0.0
    %200 = vmatpush1.xpose.msra.mxu0 0.0
    %201 = vmatprep.subr.mxu0 0.0
    %202 = vmatpush1.xpose.msra.mxu0 0.0
    %203 = vmatprep.subr.mxu0 0.0
    %204 = vmatpush1.xpose.msra.mxu0 0.0
    %205 = vmatprep.subr.mxu0 0.0
    %206 = vmatpush1.xpose.msra.mxu0 0.0
    %207 = vmatprep.subr.mxu0 0.0
    %208 = vmatpush1.xpose.msra.mxu0 0.0
    %209 = vmatprep.subr.mxu0 0.0
    %210 = vmatpush1.xpose.msra.mxu0 0.0
    %211 = vmatprep.subr.mxu0 0.0
    %212 = vmatpush1.xpose.msra.mxu0 0.0
    %213 = vmatprep.mubr.f32.mxu0 0.0
    %214 = vmatmul.mubr.f32.gmra.mrb[0].mxu0 %v141
    %v215 = vpop.f32.mrb[0].mxu0
    %v216 = vadd.f32 %v33, %v215
    %v217 = vpop.f32.mrb[0].mxu0
    %218 = vmatprep.mubr.f32.mxu0 0.0
    %219 = vmatmul.mubr.f32.gmra.mrb[0].mxu0 %v143
    %v220 = vpop.f32.mrb[0].mxu0
    %v221 = vadd.f32 %v34, %v220
    %v222 = vpop.f32.mrb[0].mxu0
    %223 = vdwg.mxu0
    %vm224 = vcmask 130048
    %v225 = vsel %vm224, %v216, -inf
    %226 = vmax.xlane.f32.xlu0 %v225
    %v227 = vpop.xlane.xlu0 %226
    %v228 = vsel %vm224, %v221, -inf
    %229 = vmax.xlane.f32.xlu0 %v228
    %v230 = vpop.xlane.xlu0 %229
    %v231 = vsub.f32 %v216, %v227
    %v232 = vsub.f32 %v221, %v230
    %v233 = vmul.f32 %v231, 1.442695
    %v234 = vpow.pop %v233
    %v235 = vmul.f32 %v232, 1.442695
    %v236 = vpow.pop %v235
    %v237 = vsel %vm224, %v234, 0.0
    %238 = vadd.xlane.f32.xlu0 %v237
    %v239 = vpop.xlane.xlu0 %238
    %v240 = vsel %vm224, %v236, 0.0
    %241 = vadd.xlane.f32.xlu0 %v240
    %v242 = vpop.xlane.xlu0 %241
    %v243 = vrcp.pop %v239
    %v244 = vrcp.pop %v242
    %v245 = vmul.f32 %v234, %v243
    %v246 = vmul.f32 %v236, %v244
    %247 = vrot.lane.b32.xlu0 %v126, 64
    %v248 = vpop.permute.xlu0 %247
    %249 = vrot.lane.b32.xlu0 %v131, 64
    %v250 = vpop.permute.xlu0 %249
    %v254 = vsel %vm224, %v245, 0
    %v257 = vsel %vm224, %v246, 0
    %259 = vmatprep.subr.mxu0 0.0
    %260 = vmatpush1.msra.mxu0 %v248
    %261 = vmatprep.subr.mxu0 0.0
    %262 = vmatpush1.msra.mxu0 %v250
    %263 = vmatprep.subr.mxu0 0.0
    %264 = vmatpush1.msra.mxu0 0.0
    %265 = vmatprep.subr.mxu0 0.0
    %266 = vmatpush1.msra.mxu0 0.0
    %267 = vmatprep.subr.mxu0 0.0
    %268 = vmatpush1.msra.mxu0 0.0
    %269 = vmatprep.subr.mxu0 0.0
    %270 = vmatpush1.msra.mxu0 0.0
    %271 = vmatprep.subr.mxu0 0.0
    %272 = vmatpush1.msra.mxu0 0.0
    %273 = vmatprep.subr.mxu0 0.0
    %274 = vmatpush1.msra.mxu0 0.0
    %275 = vmatprep.subr.mxu0 0.0
    %276 = vmatpush1.msra.mxu0 0.0
    %277 = vmatprep.subr.mxu0 0.0
    %278 = vmatpush1.msra.mxu0 0.0
    %279 = vmatprep.subr.mxu0 0.0
    %280 = vmatpush1.msra.mxu0 0.0
    %281 = vmatprep.subr.mxu0 0.0
    %282 = vmatpush1.msra.mxu0 0.0
    %283 = vmatprep.subr.mxu0 0.0
    %284 = vmatpush1.msra.mxu0 0.0
    %285 = vmatprep.subr.mxu0 0.0
    %286 = vmatpush1.msra.mxu0 0.0
    %287 = vmatprep.subr.mxu0 0.0
    %288 = vmatpush1.msra.mxu0 0.0
    %289 = vmatprep.subr.mxu0 0.0
    %290 = vmatpush1.msra.mxu0 0.0
    %291 = vmatprep.subr.mxu0 0.0
    %292 = vmatpush1.msra.mxu0 0.0
    %293 = vmatprep.subr.mxu0 0.0
    %294 = vmatpush1.msra.mxu0 0.0
    %295 = vmatprep.subr.mxu0 0.0
    %296 = vmatpush1.msra.mxu0 0.0
    %297 = vmatprep.subr.mxu0 0.0
    %298 = vmatpush1.msra.mxu0 0.0
    %299 = vmatprep.subr.mxu0 0.0
    %300 = vmatpush1.msra.mxu0 0.0
    %301 = vmatprep.subr.mxu0 0.0
    %302 = vmatpush1.msra.mxu0 0.0
    %303 = vmatprep.subr.mxu0 0.0
    %304 = vmatpush1.msra.mxu0 0.0
    %305 = vmatprep.subr.mxu0 0.0
    %306 = vmatpush1.msra.mxu0 0.0
    %307 = vmatprep.subr.mxu0 0.0
    %308 = vmatpush1.msra.mxu0 0.0
    %309 = vmatprep.subr.mxu0 0.0
    %310 = vmatpush1.msra.mxu0 0.0
    %311 = vmatprep.subr.mxu0 0.0
    %312 = vmatpush1.msra.mxu0 0.0
    %313 = vmatprep.subr.mxu0 0.0
    %314 = vmatpush1.msra.mxu0 0.0
    %315 = vmatprep.subr.mxu0 0.0
    %316 = vmatpush1.msra.mxu0 0.0
    %317 = vmatprep.subr.mxu0 0.0
    %318 = vmatpush1.msra.mxu0 0.0
    %319 = vmatprep.subr.mxu0 0.0
    %320 = vmatpush1.msra.mxu0 0.0
    %321 = vmatprep.subr.mxu0 0.0
    %322 = vmatpush1.msra.mxu0 0.0
    %323 = vmatprep.mubr.f32.mxu0 0.0
    %324 = vmatmul.mubr.f32.gmra.mrb[0].mxu0 %v254
    %v325 = vpop.f32.mrb[0].mxu0
    %v326 = vadd.f32 0.0, %v325
    %v327 = vpop.f32.mrb[0].mxu0
    %328 = vmatprep.mubr.f32.mxu0 0.0
    %329 = vmatmul.mubr.f32.gmra.mrb[0].mxu0 %v257
    %v330 = vpop.f32.mrb[0].mxu0
    %v331 = vadd.f32 0.0, %v330
    %v332 = vpop.f32.mrb[0].mxu0
    %333 = vdwg.mxu0
    %335 = vrot.lane.b32.xlu0 %v36, 32
    %v336 = vpop.permute.xlu0 %335
    %v339 = vsel %vm140, %v326, 0
    %v342 = vsel %vm140, %v331, 0
    %344 = vmatprep.subr.mxu0 0.0
    %345 = vmatpush1.msra.mxu0 %v336
    %346 = vmatprep.subr.mxu0 0.0
    %347 = vmatpush1.msra.mxu0 0.0
    %348 = vmatprep.subr.mxu0 0.0
    %349 = vmatpush1.msra.mxu0 0.0
    %350 = vmatprep.subr.mxu0 0.0
    %351 = vmatpush1.msra.mxu0 0.0
    %352 = vmatprep.subr.mxu0 0.0
    %353 = vmatpush1.msra.mxu0 0.0
    %354 = vmatprep.subr.mxu0 0.0
    %355 = vmatpush1.msra.mxu0 0.0
    %356 = vmatprep.subr.mxu0 0.0
    %357 = vmatpush1.msra.mxu0 0.0
    %358 = vmatprep.subr.mxu0 0.0
    %359 = vmatpush1.msra.mxu0 0.0
    %360 = vmatprep.subr.mxu0 0.0
    %361 = vmatpush1.msra.mxu0 0.0
    %362 = vmatprep.subr.mxu0 0.0
    %363 = vmatpush1.msra.mxu0 0.0
    %364 = vmatprep.subr.mxu0 0.0
    %365 = vmatpush1.msra.mxu0 0.0
    %366 = vmatprep.subr.mxu0 0.0
    %367 = vmatpush1.msra.mxu0 0.0
    %368 = vmatprep.subr.mxu0 0.0
    %369 = vmatpush1.msra.mxu0 0.0
    %370 = vmatprep.subr.mxu0 0.0
    %371 = vmatpush1.msra.mxu0 0.0
    %372 = vmatprep.subr.mxu0 0.0
    %373 = vmatpush1.msra.mxu0 0.0
    %374 = vmatprep.subr.mxu0 0.0
    %375 = vmatpush1.msra.mxu0 0.0
    %376 = vmatprep.subr.mxu0 0.0
    %377 = vmatpush1.msra.mxu0 0.0
    %378 = vmatprep.subr.mxu0 0.0
    %379 = vmatpush1.msra.mxu0 0.0
    %380 = vmatprep.subr.mxu0 0.0
    %381 = vmatpush1.msra.mxu0 0.0
    %382 = vmatprep.subr.mxu0 0.0
    %383 = vmatpush1.msra.mxu0 0.0
    %384 = vmatprep.subr.mxu0 0.0
    %385 = vmatpush1.msra.mxu0 0.0
    %386 = vmatprep.subr.mxu0 0.0
    %387 = vmatpush1.msra.mxu0 0.0
    %388 = vmatprep.subr.mxu0 0.0
    %389 = vmatpush1.msra.mxu0 0.0
    %390 = vmatprep.subr.mxu0 0.0
    %391 = vmatpush1.msra.mxu0 0.0
    %392 = vmatprep.subr.mxu0 0.0
    %393 = vmatpush1.msra.mxu0 0.0
    %394 = vmatprep.subr.mxu0 0.0
    %395 = vmatpush1.msra.mxu0 0.0
    %396 = vmatprep.subr.mxu0 0.0
    %397 = vmatpush1.msra.mxu0 0.0
    %398 = vmatprep.subr.mxu0 0.0
    %399 = vmatpush1.msra.mxu0 0.0
    %400 = vmatprep.subr.mxu0 0.0
    %401 = vmatpush1.msra.mxu0 0.0
    %402 = vmatprep.subr.mxu0 0.0
    %403 = vmatpush1.msra.mxu0 0.0
    %404 = vmatprep.subr.mxu0 0.0
    %405 = vmatpush1.msra.mxu0 0.0
    %406 = vmatprep.subr.mxu0 0.0
    %407 = vmatpush1.msra.mxu0 0.0
    %408 = vmatprep.mubr.f32.mxu0 0.0
    %409 = vmatmul.mubr.f32.gmra.mrb[0].mxu0 %v339
    %v410 = vpop.f32.mrb[0].mxu0
    %v411 = vadd.f32 0.0, %v410
    %v412 = vpop.f32.mrb[0].mxu0
    %413 = vmatprep.mubr.f32.mxu0 0.0
    %414 = vmatmul.mubr.f32.gmra.mrb[0].mxu0 %v342
    %v415 = vpop.f32.mrb[0].mxu0
    %v416 = vadd.f32 0.0, %v415
    %v417 = vpop.f32.mrb[0].mxu0
    %418 = vdwg.mxu0
    %421 = vrot.lane.b32.xlu0 %v411, 96
    %v422 = vpop.permute.xlu0 %421
    %423 = vrot.lane.b32.xlu0 %v416, 96
    %v424 = vpop.permute.xlu0 %423
    %v427 = vadd.f32 %v51, %v422
    %v428 = vadd.f32 %v51, %v424
    %429 = vrot.lane.b32.xlu0 %v126, 120
    %v430 = vpop.permute.xlu0 %429
    %431 = vrot.lane.b32.xlu0 %v131, 120
    %v432 = vpop.permute.xlu0 %431
    %433 = vrot.lane.b32.xlu0 %v126, 88
    %v434 = vpop.permute.xlu0 %433
    %435 = vrot.lane.b32.xlu0 %v131, 88
    %v436 = vpop.permute.xlu0 %435
    %v437 = vsel %vm140, %v430, 0
    %v439 = vsel %vm140, %v432, 0
    %v441 = vsel %vm140, %v434, 0
    %v443 = vsel %vm140, %v436, 0
    %445 = vmatprep.subr.mxu0 0.0
    %446 = vmatpush1.xpose.msra.mxu0 %v441
    %447 = vmatprep.subr.mxu0 0.0
    %448 = vmatpush1.xpose.msra.mxu0 %v443
    %449 = vmatprep.subr.mxu0 0.0
    %450 = vmatpush1.xpose.msra.mxu0 0.0
    %451 = vmatprep.subr.mxu0 0.0
    %452 = vmatpush1.xpose.msra.mxu0 0.0
    %453 = vmatprep.subr.mxu0 0.0
    %454 = vmatpush1.xpose.msra.mxu0 0.0
    %455 = vmatprep.subr.mxu0 0.0
    %456 = vmatpush1.xpose.msra.mxu0 0.0
    %457 = vmatprep.subr.mxu0 0.0
    %458 = vmatpush1.xpose.msra.mxu0 0.0
    %459 = vmatprep.subr.mxu0 0.0
    %460 = vmatpush1.xpose.msra.mxu0 0.0
    %461 = vmatprep.subr.mxu0 0.0
    %462 = vmatpush1.xpose.msra.mxu0 0.0
    %463 = vmatprep.subr.mxu0 0.0
    %464 = vmatpush1.xpose.msra.mxu0 0.0
    %465 = vmatprep.subr.mxu0 0.0
    %466 = vmatpush1.xpose.msra.mxu0 0.0
    %467 = vmatprep.subr.mxu0 0.0
    %468 = vmatpush1.xpose.msra.mxu0 0.0
    %469 = vmatprep.subr.mxu0 0.0
    %470 = vmatpush1.xpose.msra.mxu0 0.0
    %471 = vmatprep.subr.mxu0 0.0
    %472 = vmatpush1.xpose.msra.mxu0 0.0
    %473 = vmatprep.subr.mxu0 0.0
    %474 = vmatpush1.xpose.msra.mxu0 0.0
    %475 = vmatprep.subr.mxu0 0.0
    %476 = vmatpush1.xpose.msra.mxu0 0.0
    %477 = vmatprep.subr.mxu0 0.0
    %478 = vmatpush1.xpose.msra.mxu0 0.0
    %479 = vmatprep.subr.mxu0 0.0
    %480 = vmatpush1.xpose.msra.mxu0 0.0
    %481 = vmatprep.subr.mxu0 0.0
    %482 = vmatpush1.xpose.msra.mxu0 0.0
    %483 = vmatprep.subr.mxu0 0.0
    %484 = vmatpush1.xpose.msra.mxu0 0.0
    %485 = vmatprep.subr.mxu0 0.0
    %486 = vmatpush1.xpose.msra.mxu0 0.0
    %487 = vmatprep.subr.mxu0 0.0
    %488 = vmatpush1.xpose.msra.mxu0 0.0
    %489 = vmatprep.subr.mxu0 0.0
    %490 = vmatpush1.xpose.msra.mxu0 0.0
    %491 = vmatprep.subr.mxu0 0.0
    %492 = vmatpush1.xpose.msra.mxu0 0.0
    %493 = vmatprep.subr.mxu0 0.0
    %494 = vmatpush1.xpose.msra.mxu0 0.0
    %495 = vmatprep.subr.mxu0 0.0
    %496 = vmatpush1.xpose.msra.mxu0 0.0
    %497 = vmatprep.subr.mxu0 0.0
    %498 = vmatpush1.xpose.msra.mxu0 0.0
    %499 = vmatprep.subr.mxu0 0.0
    %500 = vmatpush1.xpose.msra.mxu0 0.0
    %501 = vmatprep.subr.mxu0 0.0
    %502 = vmatpush1.xpose.msra.mxu0 0.0
    %503 = vmatprep.subr.mxu0 0.0
    %504 = vmatpush1.xpose.msra.mxu0 0.0
    %505 = vmatprep.subr.mxu0 0.0
    %506 = vmatpush1.xpose.msra.mxu0 0.0
    %507 = vmatprep.subr.mxu0 0.0
    %508 = vmatpush1.xpose.msra.mxu0 0.0
    %509 = vmatprep.mubr.f32.mxu0 0.0
    %510 = vmatmul.mubr.f32.gmra.mrb[0].mxu0 %v437
    %v511 = vpop.f32.mrb[0].mxu0
    %v512 = vadd.f32 %v33, %v511
    %v513 = vpop.f32.mrb[0].mxu0
    %514 = vmatprep.mubr.f32.mxu0 0.0
    %515 = vmatmul.mubr.f32.gmra.mrb[0].mxu0 %v439
    %v516 = vpop.f32.mrb[0].mxu0
    %v517 = vadd.f32 %v34, %v516
    %v518 = vpop.f32.mrb[0].mxu0
    %519 = vdwg.mxu0
    %v520 = vsel %vm224, %v512, -inf
    %521 = vmax.xlane.f32.xlu0 %v520
    %v522 = vpop.xlane.xlu0 %521
    %v523 = vsel %vm224, %v517, -inf
    %524 = vmax.xlane.f32.xlu0 %v523
    %v525 = vpop.xlane.xlu0 %524
    %v526 = vsub.f32 %v512, %v522
    %v527 = vsub.f32 %v517, %v525
    %v528 = vmul.f32 %v526, 1.442695
    %v529 = vpow.pop %v528
    %v530 = vmul.f32 %v527, 1.442695
    %v531 = vpow.pop %v530
    %v532 = vsel %vm224, %v529, 0.0
    %533 = vadd.xlane.f32.xlu0 %v532
    %v534 = vpop.xlane.xlu0 %533
    %v535 = vsel %vm224, %v531, 0.0
    %536 = vadd.xlane.f32.xlu0 %v535
    %v537 = vpop.xlane.xlu0 %536
    %v538 = vrcp.pop %v534
    %v539 = vrcp.pop %v537
    %v540 = vmul.f32 %v529, %v538
    %v541 = vmul.f32 %v531, %v539
    %542 = vrot.lane.b32.xlu0 %v126, 56
    %v543 = vpop.permute.xlu0 %542
    %544 = vrot.lane.b32.xlu0 %v131, 56
    %v545 = vpop.permute.xlu0 %544
    %v549 = vsel %vm224, %v540, 0
    %v552 = vsel %vm224, %v541, 0
    %554 = vmatprep.subr.mxu0 0.0
    %555 = vmatpush1.msra.mxu0 %v543
    %556 = vmatprep.subr.mxu0 0.0
    %557 = vmatpush1.msra.mxu0 %v545
    %558 = vmatprep.subr.mxu0 0.0
    %559 = vmatpush1.msra.mxu0 0.0
    %560 = vmatprep.subr.mxu0 0.0
    %561 = vmatpush1.msra.mxu0 0.0
    %562 = vmatprep.subr.mxu0 0.0
    %563 = vmatpush1.msra.mxu0 0.0
    %564 = vmatprep.subr.mxu0 0.0
    %565 = vmatpush1.msra.mxu0 0.0
    %566 = vmatprep.subr.mxu0 0.0
    %567 = vmatpush1.msra.mxu0 0.0
    %568 = vmatprep.subr.mxu0 0.0
    %569 = vmatpush1.msra.mxu0 0.0
    %570 = vmatprep.subr.mxu0 0.0
    %571 = vmatpush1.msra.mxu0 0.0
    %572 = vmatprep.subr.mxu0 0.0
    %573 = vmatpush1.msra.mxu0 0.0
    %574 = vmatprep.subr.mxu0 0.0
    %575 = vmatpush1.msra.mxu0 0.0
    %576 = vmatprep.subr.mxu0 0.0
    %577 = vmatpush1.msra.mxu0 0.0
    %578 = vmatprep.subr.mxu0 0.0
    %579 = vmatpush1.msra.mxu0 0.0
    %580 = vmatprep.subr.mxu0 0.0
    %581 = vmatpush1.msra.mxu0 0.0
    %582 = vmatprep.subr.mxu0 0.0
    %583 = vmatpush1.msra.mxu0 0.0
    %584 = vmatprep.subr.mxu0 0.0
    %585 = vmatpush1.msra.mxu0 0.0
    %586 = vmatprep.subr.mxu0 0.0
    %587 = vmatpush1.msra.mxu0 0.0
    %588 = vmatprep.subr.mxu0 0.0
    %589 = vmatpush1.msra.mxu0 0.0
    %590 = vmatprep.subr.mxu0 0.0
    %591 = vmatpush1.msra.mxu0 0.0
    %592 = vmatprep.subr.mxu0 0.0
    %593 = vmatpush1.msra.mxu0 0.0
    %594 = vmatprep.subr.mxu0 0.0
    %595 = vmatpush1.msra.mxu0 0.0
    %596 = vmatprep.subr.mxu0 0.0
    %597 = vmatpush1.msra.mxu0 0.0
    %598 = vmatprep.subr.mxu0 0.0
    %599 = vmatpush1.msra.mxu0 0.0
    %600 = vmatprep.subr.mxu0 0.0
    %601 = vmatpush1.msra.mxu0 0.0
    %602 = vmatprep.subr.mxu0 0.0
    %603 = vmatpush1.msra.mxu0 0.0
    %604 = vmatprep.subr.mxu0 0.0
    %605 = vmatpush1.msra.mxu0 0.0
    %606 = vmatprep.subr.mxu0 0.0
    %607 = vmatpush1.msra.mxu0 0.0
    %608 = vmatprep.subr.mxu0 0.0
    %609 = vmatpush1.msra.mxu0 0.0
    %610 = vmatprep.subr.mxu0 0.0
    %611 = vmatpush1.msra.mxu0 0.0
    %612 = vmatprep.subr.mxu0 0.0
    %613 = vmatpush1.msra.mxu0 0.0
    %614 = vmatprep.subr.mxu0 0.0
    %615 = vmatpush1.msra.mxu0 0.0
    %616 = vmatprep.subr.mxu0 0.0
    %617 = vmatpush1.msra.mxu0 0.0
    %618 = vmatprep.mubr.f32.mxu0 0.0
    %619 = vmatmul.mubr.f32.gmra.mrb[0].mxu0 %v549
    %v620 = vpop.f32.mrb[0].mxu0
    %v621 = vadd.f32 0.0, %v620
    %v622 = vpop.f32.mrb[0].mxu0
    %623 = vmatprep.mubr.f32.mxu0 0.0
    %624 = vmatmul.mubr.f32.gmra.mrb[0].mxu0 %v552
    %v625 = vpop.f32.mrb[0].mxu0
    %v626 = vadd.f32 0.0, %v625
    %v627 = vpop.f32.mrb[0].mxu0
    %628 = vdwg.mxu0
    %630 = vrot.lane.b32.xlu0 %v37, 32
    %v631 = vpop.permute.xlu0 %630
    %v634 = vsel %vm140, %v621, 0
    %v637 = vsel %vm140, %v626, 0
    %639 = vmatprep.subr.mxu0 0.0
    %640 = vmatpush1.msra.mxu0 %v631
    %641 = vmatprep.subr.mxu0 0.0
    %642 = vmatpush1.msra.mxu0 0.0
    %643 = vmatprep.subr.mxu0 0.0
    %644 = vmatpush1.msra.mxu0 0.0
    %645 = vmatprep.subr.mxu0 0.0
    %646 = vmatpush1.msra.mxu0 0.0
    %647 = vmatprep.subr.mxu0 0.0
    %648 = vmatpush1.msra.mxu0 0.0
    %649 = vmatprep.subr.mxu0 0.0
    %650 = vmatpush1.msra.mxu0 0.0
    %651 = vmatprep.subr.mxu0 0.0
    %652 = vmatpush1.msra.mxu0 0.0
    %653 = vmatprep.subr.mxu0 0.0
    %654 = vmatpush1.msra.mxu0 0.0
    %655 = vmatprep.subr.mxu0 0.0
    %656 = vmatpush1.msra.mxu0 0.0
    %657 = vmatprep.subr.mxu0 0.0
    %658 = vmatpush1.msra.mxu0 0.0
    %659 = vmatprep.subr.mxu0 0.0
    %660 = vmatpush1.msra.mxu0 0.0
    %661 = vmatprep.subr.mxu0 0.0
    %662 = vmatpush1.msra.mxu0 0.0
    %663 = vmatprep.subr.mxu0 0.0
    %664 = vmatpush1.msra.mxu0 0.0
    %665 = vmatprep.subr.mxu0 0.0
    %666 = vmatpush1.msra.mxu0 0.0
    %667 = vmatprep.subr.mxu0 0.0
    %668 = vmatpush1.msra.mxu0 0.0
    %669 = vmatprep.subr.mxu0 0.0
    %670 = vmatpush1.msra.mxu0 0.0
    %671 = vmatprep.subr.mxu0 0.0
    %672 = vmatpush1.msra.mxu0 0.0
    %673 = vmatprep.subr.mxu0 0.0
    %674 = vmatpush1.msra.mxu0 0.0
    %675 = vmatprep.subr.mxu0 0.0
    %676 = vmatpush1.msra.mxu0 0.0
    %677 = vmatprep.subr.mxu0 0.0
    %678 = vmatpush1.msra.mxu0 0.0
    %679 = vmatprep.subr.mxu0 0.0
    %680 = vmatpush1.msra.mxu0 0.0
    %681 = vmatprep.subr.mxu0 0.0
    %682 = vmatpush1.msra.mxu0 0.0
    %683 = vmatprep.subr.mxu0 0.0
    %684 = vmatpush1.msra.mxu0 0.0
    %685 = vmatprep.subr.mxu0 0.0
    %686 = vmatpush1.msra.mxu0 0.0
    %687 = vmatprep.subr.mxu0 0.0
    %688 = vmatpush1.msra.mxu0 0.0
    %689 = vmatprep.subr.mxu0 0.0
    %690 = vmatpush1.msra.mxu0 0.0
    %691 = vmatprep.subr.mxu0 0.0
    %692 = vmatpush1.msra.mxu0 0.0
    %693 = vmatprep.subr.mxu0 0.0
    %694 = vmatpush1.msra.mxu0 0.0
    %695 = vmatprep.subr.mxu0 0.0
    %696 = vmatpush1.msra.mxu0 0.0
    %697 = vmatprep.subr.mxu0 0.0
    %698 = vmatpush1.msra.mxu0 0.0
    %699 = vmatprep.subr.mxu0 0.0
    %700 = vmatpush1.msra.mxu0 0.0
    %701 = vmatprep.subr.mxu0 0.0
    %702 = vmatpush1.msra.mxu0 0.0
    %703 = vmatprep.mubr.f32.mxu0 0.0
    %704 = vmatmul.mubr.f32.gmra.mrb[0].mxu0 %v634
    %v705 = vpop.f32.mrb[0].mxu0
    %v706 = vadd.f32 0.0, %v705
    %v707 = vpop.f32.mrb[0].mxu0
    %708 = vmatprep.mubr.f32.mxu0 0.0
    %709 = vmatmul.mubr.f32.gmra.mrb[0].mxu0 %v637
    %v710 = vpop.f32.mrb[0].mxu0
    %v711 = vadd.f32 0.0, %v710
    %v712 = vpop.f32.mrb[0].mxu0
    %713 = vdwg.mxu0
    %716 = vrot.lane.b32.xlu0 %v706, 96
    %v717 = vpop.permute.xlu0 %716
    %718 = vrot.lane.b32.xlu0 %v711, 96
    %v719 = vpop.permute.xlu0 %718
    %v722 = vadd.f32 %v427, %v717
    %v723 = vadd.f32 %v428, %v719
    %724 = vrot.lane.b32.xlu0 %v126, 112
    %v725 = vpop.permute.xlu0 %724
    %726 = vrot.lane.b32.xlu0 %v131, 112
    %v727 = vpop.permute.xlu0 %726
    %728 = vrot.lane.b32.xlu0 %v126, 80
    %v729 = vpop.permute.xlu0 %728
    %730 = vrot.lane.b32.xlu0 %v131, 80
    %v731 = vpop.permute.xlu0 %730
    %v732 = vsel %vm140, %v725, 0
    %v734 = vsel %vm140, %v727, 0
    %v736 = vsel %vm140, %v729, 0
    %v738 = vsel %vm140, %v731, 0
    %740 = vmatprep.subr.mxu0 0.0
    %741 = vmatpush1.xpose.msra.mxu0 %v736
    %742 = vmatprep.subr.mxu0 0.0
    %743 = vmatpush1.xpose.msra.mxu0 %v738
    %744 = vmatprep.subr.mxu0 0.0
    %745 = vmatpush1.xpose.msra.mxu0 0.0
    %746 = vmatprep.subr.mxu0 0.0
    %747 = vmatpush1.xpose.msra.mxu0 0.0
    %748 = vmatprep.subr.mxu0 0.0
    %749 = vmatpush1.xpose.msra.mxu0 0.0
    %750 = vmatprep.subr.mxu0 0.0
    %751 = vmatpush1.xpose.msra.mxu0 0.0
    %752 = vmatprep.subr.mxu0 0.0
    %753 = vmatpush1.xpose.msra.mxu0 0.0
    %754 = vmatprep.subr.mxu0 0.0
    %755 = vmatpush1.xpose.msra.mxu0 0.0
    %756 = vmatprep.subr.mxu0 0.0
    %757 = vmatpush1.xpose.msra.mxu0 0.0
    %758 = vmatprep.subr.mxu0 0.0
    %759 = vmatpush1.xpose.msra.mxu0 0.0
    %760 = vmatprep.subr.mxu0 0.0
    %761 = vmatpush1.xpose.msra.mxu0 0.0
    %762 = vmatprep.subr.mxu0 0.0
    %763 = vmatpush1.xpose.msra.mxu0 0.0
    %764 = vmatprep.subr.mxu0 0.0
    %765 = vmatpush1.xpose.msra.mxu0 0.0
    %766 = vmatprep.subr.mxu0 0.0
    %767 = vmatpush1.xpose.msra.mxu0 0.0
    %768 = vmatprep.subr.mxu0 0.0
    %769 = vmatpush1.xpose.msra.mxu0 0.0
    %770 = vmatprep.subr.mxu0 0.0
    %771 = vmatpush1.xpose.msra.mxu0 0.0
    %772 = vmatprep.subr.mxu0 0.0
    %773 = vmatpush1.xpose.msra.mxu0 0.0
    %774 = vmatprep.subr.mxu0 0.0
    %775 = vmatpush1.xpose.msra.mxu0 0.0
    %776 = vmatprep.subr.mxu0 0.0
    %777 = vmatpush1.xpose.msra.mxu0 0.0
    %778 = vmatprep.subr.mxu0 0.0
    %779 = vmatpush1.xpose.msra.mxu0 0.0
    %780 = vmatprep.subr.mxu0 0.0
    %781 = vmatpush1.xpose.msra.mxu0 0.0
    %782 = vmatprep.subr.mxu0 0.0
    %783 = vmatpush1.xpose.msra.mxu0 0.0
    %784 = vmatprep.subr.mxu0 0.0
    %785 = vmatpush1.xpose.msra.mxu0 0.0
    %786 = vmatprep.subr.mxu0 0.0
    %787 = vmatpush1.xpose.msra.mxu0 0.0
    %788 = vmatprep.subr.mxu0 0.0
    %789 = vmatpush1.xpose.msra.mxu0 0.0
    %790 = vmatprep.subr.mxu0 0.0
    %791 = vmatpush1.xpose.msra.mxu0 0.0
    %792 = vmatprep.subr.mxu0 0.0
    %793 = vmatpush1.xpose.msra.mxu0 0.0
    %794 = vmatprep.subr.mxu0 0.0
    %795 = vmatpush1.xpose.msra.mxu0 0.0
    %796 = vmatprep.subr.mxu0 0.0
    %797 = vmatpush1.xpose.msra.mxu0 0.0
    %798 = vmatprep.subr.mxu0 0.0
    %799 = vmatpush1.xpose.msra.mxu0 0.0
    %800 = vmatprep.subr.mxu0 0.0
    %801 = vmatpush1.xpose.msra.mxu0 0.0
    %802 = vmatprep.subr.mxu0 0.0
    %803 = vmatpush1.xpose.msra.mxu0 0.0
    %804 = vmatprep.mubr.f32.mxu0 0.0
    %805 = vmatmul.mubr.f32.gmra.mrb[0].mxu0 %v732
    %v806 = vpop.f32.mrb[0].mxu0
    %v807 = vadd.f32 %v33, %v806
    %v808 = vpop.f32.mrb[0].mxu0
    %809 = vmatprep.mubr.f32.mxu0 0.0
    %810 = vmatmul.mubr.f32.gmra.mrb[0].mxu0 %v734
    %v811 = vpop.f32.mrb[0].mxu0
    %v812 = vadd.f32 %v34, %v811
    %v813 = vpop.f32.mrb[0].mxu0
    %814 = vdwg.mxu0
    %v815 = vsel %vm224, %v807, -inf
    %816 = vmax.xlane.f32.xlu0 %v815
    %v817 = vpop.xlane.xlu0 %816
    %v818 = vsel %vm224, %v812, -inf
    %819 = vmax.xlane.f32.xlu0 %v818
    %v820 = vpop.xlane.xlu0 %819
    %v821 = vsub.f32 %v807, %v817
    %v822 = vsub.f32 %v812, %v820
    %v823 = vmul.f32 %v821, 1.442695
    %v824 = vpow.pop %v823
    %v825 = vmul.f32 %v822, 1.442695
    %v826 = vpow.pop %v825
    %v827 = vsel %vm224, %v824, 0.0
    %828 = vadd.xlane.f32.xlu0 %v827
    %v829 = vpop.xlane.xlu0 %828
    %v830 = vsel %vm224, %v826, 0.0
    %831 = vadd.xlane.f32.xlu0 %v830
    %v832 = vpop.xlane.xlu0 %831
    %v833 = vrcp.pop %v829
    %v834 = vrcp.pop %v832
    %v835 = vmul.f32 %v824, %v833
    %v836 = vmul.f32 %v826, %v834
    %837 = vrot.lane.b32.xlu0 %v126, 48
    %v838 = vpop.permute.xlu0 %837
    %839 = vrot.lane.b32.xlu0 %v131, 48
    %v840 = vpop.permute.xlu0 %839
    %v844 = vsel %vm224, %v835, 0
    %v847 = vsel %vm224, %v836, 0
    %849 = vmatprep.subr.mxu0 0.0
    %850 = vmatpush1.msra.mxu0 %v838
    %851 = vmatprep.subr.mxu0 0.0
    %852 = vmatpush1.msra.mxu0 %v840
    %853 = vmatprep.subr.mxu0 0.0
    %854 = vmatpush1.msra.mxu0 0.0
    %855 = vmatprep.subr.mxu0 0.0
    %856 = vmatpush1.msra.mxu0 0.0
    %857 = vmatprep.subr.mxu0 0.0
    %858 = vmatpush1.msra.mxu0 0.0
    %859 = vmatprep.subr.mxu0 0.0
    %860 = vmatpush1.msra.mxu0 0.0
    %861 = vmatprep.subr.mxu0 0.0
    %862 = vmatpush1.msra.mxu0 0.0
    %863 = vmatprep.subr.mxu0 0.0
    %864 = vmatpush1.msra.mxu0 0.0
    %865 = vmatprep.subr.mxu0 0.0
    %866 = vmatpush1.msra.mxu0 0.0
    %867 = vmatprep.subr.mxu0 0.0
    %868 = vmatpush1.msra.mxu0 0.0
    %869 = vmatprep.subr.mxu0 0.0
    %870 = vmatpush1.msra.mxu0 0.0
    %871 = vmatprep.subr.mxu0 0.0
    %872 = vmatpush1.msra.mxu0 0.0
    %873 = vmatprep.subr.mxu0 0.0
    %874 = vmatpush1.msra.mxu0 0.0
    %875 = vmatprep.subr.mxu0 0.0
    %876 = vmatpush1.msra.mxu0 0.0
    %877 = vmatprep.subr.mxu0 0.0
    %878 = vmatpush1.msra.mxu0 0.0
    %879 = vmatprep.subr.mxu0 0.0
    %880 = vmatpush1.msra.mxu0 0.0
    %881 = vmatprep.subr.mxu0 0.0
    %882 = vmatpush1.msra.mxu0 0.0
    %883 = vmatprep.subr.mxu0 0.0
    %884 = vmatpush1.msra.mxu0 0.0
    %885 = vmatprep.subr.mxu0 0.0
    %886 = vmatpush1.msra.mxu0 0.0
    %887 = vmatprep.subr.mxu0 0.0
    %888 = vmatpush1.msra.mxu0 0.0
    %889 = vmatprep.subr.mxu0 0.0
    %890 = vmatpush1.msra.mxu0 0.0
    %891 = vmatprep.subr.mxu0 0.0
    %892 = vmatpush1.msra.mxu0 0.0
    %893 = vmatprep.subr.mxu0 0.0
    %894 = vmatpush1.msra.mxu0 0.0
    %895 = vmatprep.subr.mxu0 0.0
    %896 = vmatpush1.msra.mxu0 0.0
    %897 = vmatprep.subr.mxu0 0.0
    %898 = vmatpush1.msra.mxu0 0.0
    %899 = vmatprep.subr.mxu0 0.0
    %900 = vmatpush1.msra.mxu0 0.0
    %901 = vmatprep.subr.mxu0 0.0
    %902 = vmatpush1.msra.mxu0 0.0
    %903 = vmatprep.subr.mxu0 0.0
    %904 = vmatpush1.msra.mxu0 0.0
    %905 = vmatprep.subr.mxu0 0.0
    %906 = vmatpush1.msra.mxu0 0.0
    %907 = vmatprep.subr.mxu0 0.0
    %908 = vmatpush1.msra.mxu0 0.0
    %909 = vmatprep.subr.mxu0 0.0
    %910 = vmatpush1.msra.mxu0 0.0
    %911 = vmatprep.subr.mxu0 0.0
    %912 = vmatpush1.msra.mxu0 0.0
    %913 = vmatprep.mubr.f32.mxu0 0.0
    %914 = vmatmul.mubr.f32.gmra.mrb[0].mxu0 %v844
    %v915 = vpop.f32.mrb[0].mxu0
    %v916 = vadd.f32 0.0, %v915
    %v917 = vpop.f32.mrb[0].mxu0
    %918 = vmatprep.mubr.f32.mxu0 0.0
    %919 = vmatmul.mubr.f32.gmra.mrb[0].mxu0 %v847
    %v920 = vpop.f32.mrb[0].mxu0
    %v921 = vadd.f32 0.0, %v920
    %v922 = vpop.f32.mrb[0].mxu0
    %923 = vdwg.mxu0
    %925 = vrot.lane.b32.xlu0 %v38, 32
    %v926 = vpop.permute.xlu0 %925
    %v929 = vsel %vm140, %v916, 0
    %v932 = vsel %vm140, %v921, 0
    %934 = vmatprep.subr.mxu0 0.0
    %935 = vmatpush1.msra.mxu0 %v926
    %936 = vmatprep.subr.mxu0 0.0
    %937 = vmatpush1.msra.mxu0 0.0
    %938 = vmatprep.subr.mxu0 0.0
    %939 = vmatpush1.msra.mxu0 0.0
    %940 = vmatprep.subr.mxu0 0.0
    %941 = vmatpush1.msra.mxu0 0.0
    %942 = vmatprep.subr.mxu0 0.0
    %943 = vmatpush1.msra.mxu0 0.0
    %944 = vmatprep.subr.mxu0 0.0
    %945 = vmatpush1.msra.mxu0 0.0
    %946 = vmatprep.subr.mxu0 0.0
    %947 = vmatpush1.msra.mxu0 0.0
    %948 = vmatprep.subr.mxu0 0.0
    %949 = vmatpush1.msra.mxu0 0.0
    %950 = vmatprep.subr.mxu0 0.0
    %951 = vmatpush1.msra.mxu0 0.0
    %952 = vmatprep.subr.mxu0 0.0
    %953 = vmatpush1.msra.mxu0 0.0
    %954 = vmatprep.subr.mxu0 0.0
    %955 = vmatpush1.msra.mxu0 0.0
    %956 = vmatprep.subr.mxu0 0.0
    %957 = vmatpush1.msra.mxu0 0.0
    %958 = vmatprep.subr.mxu0 0.0
    %959 = vmatpush1.msra.mxu0 0.0
    %960 = vmatprep.subr.mxu0 0.0
    %961 = vmatpush1.msra.mxu0 0.0
    %962 = vmatprep.subr.mxu0 0.0
    %963 = vmatpush1.msra.mxu0 0.0
    %964 = vmatprep.subr.mxu0 0.0
    %965 = vmatpush1.msra.mxu0 0.0
    %966 = vmatprep.subr.mxu0 0.0
    %967 = vmatpush1.msra.mxu0 0.0
    %968 = vmatprep.subr.mxu0 0.0
    %969 = vmatpush1.msra.mxu0 0.0
    %970 = vmatprep.subr.mxu0 0.0
    %971 = vmatpush1.msra.mxu0 0.0
    %972 = vmatprep.subr.mxu0 0.0
    %973 = vmatpush1.msra.mxu0 0.0
    %974 = vmatprep.subr.mxu0 0.0
    %975 = vmatpush1.msra.mxu0 0.0
    %976 = vmatprep.subr.mxu0 0.0
    %977 = vmatpush1.msra.mxu0 0.0
    %978 = vmatprep.subr.mxu0 0.0
    %979 = vmatpush1.msra.mxu0 0.0
    %980 = vmatprep.subr.mxu0 0.0
    %981 = vmatpush1.msra.mxu0 0.0
    %982 = vmatprep.subr.mxu0 0.0
    %983 = vmatpush1.msra.mxu0 0.0
    %984 = vmatprep.subr.mxu0 0.0
    %985 = vmatpush1.msra.mxu0 0.0
    %986 = vmatprep.subr.mxu0 0.0
    %987 = vmatpush1.msra.mxu0 0.0
    %988 = vmatprep.subr.mxu0 0.0
    %989 = vmatpush1.msra.mxu0 0.0
    %990 = vmatprep.subr.mxu0 0.0
    %991 = vmatpush1.msra.mxu0 0.0
    %992 = vmatprep.subr.mxu0 0.0
    %993 = vmatpush1.msra.mxu0 0.0
    %994 = vmatprep.subr.mxu0 0.0
    %995 = vmatpush1.msra.mxu0 0.0
    %996 = vmatprep.subr.mxu0 0.0
    %997 = vmatpush1.msra.mxu0 0.0
    %998 = vmatprep.mubr.f32.mxu0 0.0
    %999 = vmatmul.mubr.f32.gmra.mrb[0].mxu0 %v929
    %v1000 = vpop.f32.mrb[0].mxu0
    %v1001 = vadd.f32 0.0, %v1000
    %v1002 = vpop.f32.mrb[0].mxu0
    %1003 = vmatprep.mubr.f32.mxu0 0.0
    %1004 = vmatmul.mubr.f32.gmra.mrb[0].mxu0 %v932
    %v1005 = vpop.f32.mrb[0].mxu0
    %v1006 = vadd.f32 0.0, %v1005
    %v1007 = vpop.f32.mrb[0].mxu0
    %1008 = vdwg.mxu0
    %1011 = vrot.lane.b32.xlu0 %v1001, 96
    %v1012 = vpop.permute.xlu0 %1011
    %1013 = vrot.lane.b32.xlu0 %v1006, 96
    %v1014 = vpop.permute.xlu0 %1013
    %v1017 = vadd.f32 %v722, %v1012
    %v1018 = vadd.f32 %v723, %v1014
    %1019 = vrot.lane.b32.xlu0 %v126, 104
    %v1020 = vpop.permute.xlu0 %1019
    %1021 = vrot.lane.b32.xlu0 %v131, 104
    %v1022 = vpop.permute.xlu0 %1021
    %1023 = vrot.lane.b32.xlu0 %v126, 72
    %v1024 = vpop.permute.xlu0 %1023
    %1025 = vrot.lane.b32.xlu0 %v131, 72
    %v1026 = vpop.permute.xlu0 %1025
    %v1027 = vsel %vm140, %v1020, 0
    %v1029 = vsel %vm140, %v1022, 0
    %v1031 = vsel %vm140, %v1024, 0
    %v1033 = vsel %vm140, %v1026, 0
    %1035 = vmatprep.subr.mxu0 0.0
    %1036 = vmatpush1.xpose.msra.mxu0 %v1031
    %1037 = vmatprep.subr.mxu0 0.0
    %1038 = vmatpush1.xpose.msra.mxu0 %v1033
    %1039 = vmatprep.subr.mxu0 0.0
    %1040 = vmatpush1.xpose.msra.mxu0 0.0
    %1041 = vmatprep.subr.mxu0 0.0
    %1042 = vmatpush1.xpose.msra.mxu0 0.0
    %1043 = vmatprep.subr.mxu0 0.0
    %1044 = vmatpush1.xpose.msra.mxu0 0.0
    %1045 = vmatprep.subr.mxu0 0.0
    %1046 = vmatpush1.xpose.msra.mxu0 0.0
    %1047 = vmatprep.subr.mxu0 0.0
    %1048 = vmatpush1.xpose.msra.mxu0 0.0
    %1049 = vmatprep.subr.mxu0 0.0
    %1050 = vmatpush1.xpose.msra.mxu0 0.0
    %1051 = vmatprep.subr.mxu0 0.0
    %1052 = vmatpush1.xpose.msra.mxu0 0.0
    %1053 = vmatprep.subr.mxu0 0.0
    %1054 = vmatpush1.xpose.msra.mxu0 0.0
    %1055 = vmatprep.subr.mxu0 0.0
    %1056 = vmatpush1.xpose.msra.mxu0 0.0
    %1057 = vmatprep.subr.mxu0 0.0
    %1058 = vmatpush1.xpose.msra.mxu0 0.0
    %1059 = vmatprep.subr.mxu0 0.0
    %1060 = vmatpush1.xpose.msra.mxu0 0.0
    %1061 = vmatprep.subr.mxu0 0.0
    %1062 = vmatpush1.xpose.msra.mxu0 0.0
    %1063 = vmatprep.subr.mxu0 0.0
    %1064 = vmatpush1.xpose.msra.mxu0 0.0
    %1065 = vmatprep.subr.mxu0 0.0
    %1066 = vmatpush1.xpose.msra.mxu0 0.0
    %1067 = vmatprep.subr.mxu0 0.0
    %1068 = vmatpush1.xpose.msra.mxu0 0.0
    %1069 = vmatprep.subr.mxu0 0.0
    %1070 = vmatpush1.xpose.msra.mxu0 0.0
    %1071 = vmatprep.subr.mxu0 0.0
    %1072 = vmatpush1.xpose.msra.mxu0 0.0
    %1073 = vmatprep.subr.mxu0 0.0
    %1074 = vmatpush1.xpose.msra.mxu0 0.0
    %1075 = vmatprep.subr.mxu0 0.0
    %1076 = vmatpush1.xpose.msra.mxu0 0.0
    %1077 = vmatprep.subr.mxu0 0.0
    %1078 = vmatpush1.xpose.msra.mxu0 0.0
    %1079 = vmatprep.subr.mxu0 0.0
    %1080 = vmatpush1.xpose.msra.mxu0 0.0
    %1081 = vmatprep.subr.mxu0 0.0
    %1082 = vmatpush1.xpose.msra.mxu0 0.0
    %1083 = vmatprep.subr.mxu0 0.0
    %1084 = vmatpush1.xpose.msra.mxu0 0.0
    %1085 = vmatprep.subr.mxu0 0.0
    %1086 = vmatpush1.xpose.msra.mxu0 0.0
    %1087 = vmatprep.subr.mxu0 0.0
    %1088 = vmatpush1.xpose.msra.mxu0 0.0
    %1089 = vmatprep.subr.mxu0 0.0
    %1090 = vmatpush1.xpose.msra.mxu0 0.0
    %1091 = vmatprep.subr.mxu0 0.0
    %1092 = vmatpush1.xpose.msra.mxu0 0.0
    %1093 = vmatprep.subr.mxu0 0.0
    %1094 = vmatpush1.xpose.msra.mxu0 0.0
    %1095 = vmatprep.subr.mxu0 0.0
    %1096 = vmatpush1.xpose.msra.mxu0 0.0
    %1097 = vmatprep.subr.mxu0 0.0
    %1098 = vmatpush1.xpose.msra.mxu0 0.0
    %1099 = vmatprep.mubr.f32.mxu0 0.0
    %1100 = vmatmul.mubr.f32.gmra.mrb[0].mxu0 %v1027
    %v1101 = vpop.f32.mrb[0].mxu0
    %v1102 = vadd.f32 %v33, %v1101
    %v1103 = vpop.f32.mrb[0].mxu0
    %1104 = vmatprep.mubr.f32.mxu0 0.0
    %1105 = vmatmul.mubr.f32.gmra.mrb[0].mxu0 %v1029
    %v1106 = vpop.f32.mrb[0].mxu0
    %v1107 = vadd.f32 %v34, %v1106
    %v1108 = vpop.f32.mrb[0].mxu0
    %1109 = vdwg.mxu0
    %v1110 = vsel %vm224, %v1102, -inf
    %1111 = vmax.xlane.f32.xlu0 %v1110
    %v1112 = vpop.xlane.xlu0 %1111
    %v1113 = vsel %vm224, %v1107, -inf
    %1114 = vmax.xlane.f32.xlu0 %v1113
    %v1115 = vpop.xlane.xlu0 %1114
    %v1116 = vsub.f32 %v1102, %v1112
    %v1117 = vsub.f32 %v1107, %v1115
    %v1118 = vmul.f32 %v1116, 1.442695
    %v1119 = vpow.pop %v1118
    %v1120 = vmul.f32 %v1117, 1.442695
    %v1121 = vpow.pop %v1120
    %v1122 = vsel %vm224, %v1119, 0.0
    %1123 = vadd.xlane.f32.xlu0 %v1122
    %v1124 = vpop.xlane.xlu0 %1123
    %v1125 = vsel %vm224, %v1121, 0.0
    %1126 = vadd.xlane.f32.xlu0 %v1125
    %v1127 = vpop.xlane.xlu0 %1126
    %v1128 = vrcp.pop %v1124
    %v1129 = vrcp.pop %v1127
    %v1130 = vmul.f32 %v1119, %v1128
    %v1131 = vmul.f32 %v1121, %v1129
    %1132 = vrot.lane.b32.xlu0 %v126, 40
    %v1133 = vpop.permute.xlu0 %1132
    %1134 = vrot.lane.b32.xlu0 %v131, 40
    %v1135 = vpop.permute.xlu0 %1134
    %v1139 = vsel %vm224, %v1130, 0
    %v1142 = vsel %vm224, %v1131, 0
    %1144 = vmatprep.subr.mxu0 0.0
    %1145 = vmatpush1.msra.mxu0 %v1133
    %1146 = vmatprep.subr.mxu0 0.0
    %1147 = vmatpush1.msra.mxu0 %v1135
    %1148 = vmatprep.subr.mxu0 0.0
    %1149 = vmatpush1.msra.mxu0 0.0
    %1150 = vmatprep.subr.mxu0 0.0
    %1151 = vmatpush1.msra.mxu0 0.0
    %1152 = vmatprep.subr.mxu0 0.0
    %1153 = vmatpush1.msra.mxu0 0.0
    %1154 = vmatprep.subr.mxu0 0.0
    %1155 = vmatpush1.msra.mxu0 0.0
    %1156 = vmatprep.subr.mxu0 0.0
    %1157 = vmatpush1.msra.mxu0 0.0
    %1158 = vmatprep.subr.mxu0 0.0
    %1159 = vmatpush1.msra.mxu0 0.0
    %1160 = vmatprep.subr.mxu0 0.0
    %1161 = vmatpush1.msra.mxu0 0.0
    %1162 = vmatprep.subr.mxu0 0.0
    %1163 = vmatpush1.msra.mxu0 0.0
    %1164 = vmatprep.subr.mxu0 0.0
    %1165 = vmatpush1.msra.mxu0 0.0
    %1166 = vmatprep.subr.mxu0 0.0
    %1167 = vmatpush1.msra.mxu0 0.0
    %1168 = vmatprep.subr.mxu0 0.0
    %1169 = vmatpush1.msra.mxu0 0.0
    %1170 = vmatprep.subr.mxu0 0.0
    %1171 = vmatpush1.msra.mxu0 0.0
    %1172 = vmatprep.subr.mxu0 0.0
    %1173 = vmatpush1.msra.mxu0 0.0
    %1174 = vmatprep.subr.mxu0 0.0
    %1175 = vmatpush1.msra.mxu0 0.0
    %1176 = vmatprep.subr.mxu0 0.0
    %1177 = vmatpush1.msra.mxu0 0.0
    %1178 = vmatprep.subr.mxu0 0.0
    %1179 = vmatpush1.msra.mxu0 0.0
    %1180 = vmatprep.subr.mxu0 0.0
    %1181 = vmatpush1.msra.mxu0 0.0
    %1182 = vmatprep.subr.mxu0 0.0
    %1183 = vmatpush1.msra.mxu0 0.0
    %1184 = vmatprep.subr.mxu0 0.0
    %1185 = vmatpush1.msra.mxu0 0.0
    %1186 = vmatprep.subr.mxu0 0.0
    %1187 = vmatpush1.msra.mxu0 0.0
    %1188 = vmatprep.subr.mxu0 0.0
    %1189 = vmatpush1.msra.mxu0 0.0
    %1190 = vmatprep.subr.mxu0 0.0
    %1191 = vmatpush1.msra.mxu0 0.0
    %1192 = vmatprep.subr.mxu0 0.0
    %1193 = vmatpush1.msra.mxu0 0.0
    %1194 = vmatprep.subr.mxu0 0.0
    %1195 = vmatpush1.msra.mxu0 0.0
    %1196 = vmatprep.subr.mxu0 0.0
    %1197 = vmatpush1.msra.mxu0 0.0
    %1198 = vmatprep.subr.mxu0 0.0
    %1199 = vmatpush1.msra.mxu0 0.0
    %1200 = vmatprep.subr.mxu0 0.0
    %1201 = vmatpush1.msra.mxu0 0.0
    %1202 = vmatprep.subr.mxu0 0.0
    %1203 = vmatpush1.msra.mxu0 0.0
    %1204 = vmatprep.subr.mxu0 0.0
    %1205 = vmatpush1.msra.mxu0 0.0
    %1206 = vmatprep.subr.mxu0 0.0
    %1207 = vmatpush1.msra.mxu0 0.0
    %1208 = vmatprep.mubr.f32.mxu0 0.0
    %1209 = vmatmul.mubr.f32.gmra.mrb[0].mxu0 %v1139
    %v1210 = vpop.f32.mrb[0].mxu0
    %v1211 = vadd.f32 0.0, %v1210
    %v1212 = vpop.f32.mrb[0].mxu0
    %1213 = vmatprep.mubr.f32.mxu0 0.0
    %1214 = vmatmul.mubr.f32.gmra.mrb[0].mxu0 %v1142
    %v1215 = vpop.f32.mrb[0].mxu0
    %v1216 = vadd.f32 0.0, %v1215
    %v1217 = vpop.f32.mrb[0].mxu0
    %1218 = vdwg.mxu0
    %1220 = vrot.lane.b32.xlu0 %v39, 32
    %v1221 = vpop.permute.xlu0 %1220
    %v1224 = vsel %vm140, %v1211, 0
    %v1227 = vsel %vm140, %v1216, 0
    %1229 = vmatprep.subr.mxu0 0.0
    %1230 = vmatpush1.msra.mxu0 %v1221
    %1231 = vmatprep.subr.mxu0 0.0
    %1232 = vmatpush1.msra.mxu0 0.0
    %1233 = vmatprep.subr.mxu0 0.0
    %1234 = vmatpush1.msra.mxu0 0.0
    %1235 = vmatprep.subr.mxu0 0.0
    %1236 = vmatpush1.msra.mxu0 0.0
    %1237 = vmatprep.subr.mxu0 0.0
    %1238 = vmatpush1.msra.mxu0 0.0
    %1239 = vmatprep.subr.mxu0 0.0
    %1240 = vmatpush1.msra.mxu0 0.0
    %1241 = vmatprep.subr.mxu0 0.0
    %1242 = vmatpush1.msra.mxu0 0.0
    %1243 = vmatprep.subr.mxu0 0.0
    %1244 = vmatpush1.msra.mxu0 0.0
    %1245 = vmatprep.subr.mxu0 0.0
    %1246 = vmatpush1.msra.mxu0 0.0
    %1247 = vmatprep.subr.mxu0 0.0
    %1248 = vmatpush1.msra.mxu0 0.0
    %1249 = vmatprep.subr.mxu0 0.0
    %1250 = vmatpush1.msra.mxu0 0.0
    %1251 = vmatprep.subr.mxu0 0.0
    %1252 = vmatpush1.msra.mxu0 0.0
    %1253 = vmatprep.subr.mxu0 0.0
    %1254 = vmatpush1.msra.mxu0 0.0
    %1255 = vmatprep.subr.mxu0 0.0
    %1256 = vmatpush1.msra.mxu0 0.0
    %1257 = vmatprep.subr.mxu0 0.0
    %1258 = vmatpush1.msra.mxu0 0.0
    %1259 = vmatprep.subr.mxu0 0.0
    %1260 = vmatpush1.msra.mxu0 0.0
    %1261 = vmatprep.subr.mxu0 0.0
    %1262 = vmatpush1.msra.mxu0 0.0
    %1263 = vmatprep.subr.mxu0 0.0
    %1264 = vmatpush1.msra.mxu0 0.0
    %1265 = vmatprep.subr.mxu0 0.0
    %1266 = vmatpush1.msra.mxu0 0.0
    %1267 = vmatprep.subr.mxu0 0.0
    %1268 = vmatpush1.msra.mxu0 0.0
    %1269 = vmatprep.subr.mxu0 0.0
    %1270 = vmatpush1.msra.mxu0 0.0
    %1271 = vmatprep.subr.mxu0 0.0
    %1272 = vmatpush1.msra.mxu0 0.0
    %1273 = vmatprep.subr.mxu0 0.0
    %1274 = vmatpush1.msra.mxu0 0.0
    %1275 = vmatprep.subr.mxu0 0.0
    %1276 = vmatpush1.msra.mxu0 0.0
    %1277 = vmatprep.subr.mxu0 0.0
    %1278 = vmatpush1.msra.mxu0 0.0
    %1279 = vmatprep.subr.mxu0 0.0
    %1280 = vmatpush1.msra.mxu0 0.0
    %1281 = vmatprep.subr.mxu0 0.0
    %1282 = vmatpush1.msra.mxu0 0.0
    %1283 = vmatprep.subr.mxu0 0.0
    %1284 = vmatpush1.msra.mxu0 0.0
    %1285 = vmatprep.subr.mxu0 0.0
    %1286 = vmatpush1.msra.mxu0 0.0
    %1287 = vmatprep.subr.mxu0 0.0
    %1288 = vmatpush1.msra.mxu0 0.0
    %1289 = vmatprep.subr.mxu0 0.0
    %1290 = vmatpush1.msra.mxu0 0.0
    %1291 = vmatprep.subr.mxu0 0.0
    %1292 = vmatpush1.msra.mxu0 0.0
    %1293 = vmatprep.mubr.f32.mxu0 0.0
    %1294 = vmatmul.mubr.f32.gmra.mrb[0].mxu0 %v1224
    %v1295 = vpop.f32.mrb[0].mxu0
    %v1296 = vadd.f32 0.0, %v1295
    %v1297 = vpop.f32.mrb[0].mxu0
    %1298 = vmatprep.mubr.f32.mxu0 0.0
    %1299 = vmatmul.mubr.f32.gmra.mrb[0].mxu0 %v1227
    %v1300 = vpop.f32.mrb[0].mxu0
    %v1301 = vadd.f32 0.0, %v1300
    %v1302 = vpop.f32.mrb[0].mxu0
    %1303 = vdwg.mxu0
    %1306 = vrot.lane.b32.xlu0 %v1296, 96
    %v1307 = vpop.permute.xlu0 %1306
    %1308 = vrot.lane.b32.xlu0 %v1301, 96
    %v1309 = vpop.permute.xlu0 %1308
    %v1312 = vadd.f32 %v1017, %v1307
    %v1313 = vadd.f32 %v1018, %v1309
    %1316 = vrot.lane.b32.xlu0 %v1312, 32
    %v1317 = vpop.permute.xlu0 %1316
    %1318 = vrot.lane.b32.xlu0 %v1313, 32
    %v1319 = vpop.permute.xlu0 %1318
    %v1322 = vadd.f32 %v31, %v1317
    %v1323 = vadd.f32 %v32, %v1319
    %v1324 = vsel %vm52, %v1322, 0.0
    %1325 = vadd.xlane.f32.xlu0 %v1324
    %v1326 = vpop.xlane.xlu0 %1325
    %v1327 = vsel %vm52, %v1323, 0.0
    %1328 = vadd.xlane.f32.xlu0 %v1327
    %v1329 = vpop.xlane.xlu0 %1328
    %v1330 = vrcp.pop 32.0
    %v1331 = vmul.f32 %v1326, %v1330
    %v1332 = vmul.f32 %v1329, %v1330
    %v1333 = vsub.f32 %v1322, %v1331
    %v1334 = vsub.f32 %v1323, %v1332
    %v1335 = vmul.f32 %v1333, %v1333
    %v1336 = vmul.f32 %v1334, %v1334
    %v1337 = vsel %vm52, %v1335, 0.0
    %1338 = vadd.xlane.f32.xlu0 %v1337
    %v1339 = vpop.xlane.xlu0 %1338
    %v1340 = vsel %vm52, %v1336, 0.0
    %1341 = vadd.xlane.f32.xlu0 %v1340
    %v1342 = vpop.xlane.xlu0 %1341
    %v1343 = vmul.f32 %v1339, %v1330
    %v1344 = vmul.f32 %v1342, %v1330
    %v1345 = vadd.f32 %v1343, 1e-05
    %v1346 = vadd.f32 %v1344, 1e-05
    %v1347 = vrsqrt.pop %v1345
    %v1348 = vrsqrt.pop %v1346
    %v1349 = vmul.f32 %v1333, %v1347
    %v1350 = vmul.f32 %v1334, %v1348
    %v1351 = vlaneseq
    %v1352 = vshrl.u32 %v1351, 7
    %v1353 = vsub.s32 1, %v1352
    %v1354 = vrot.slane %v35, %v1353
    %v1355 = vmul.f32 %v1349, %v1354
    %v1356 = vmul.f32 %v1350, %v1354
    %1358 = vrot.lane.b32.xlu0 %v1354, 96
    %v1359 = vpop.permute.xlu0 %1358
    %v1361 = vadd.f32 %v1355, %v1359
    %v1362 = vadd.f32 %v1356, %v1359
    %1363 = vrot.lane.b32.xlu0 %v1354, 64
    %v1364 = vpop.permute.xlu0 %1363
    %v1367 = vsel %vm52, %v1361, 0
    %v1370 = vsel %vm52, %v1362, 0
    %1372 = vmatprep.subr.mxu0 0.0
    %1373 = vmatpush1.msra.mxu0 %v40
    %1374 = vmatprep.subr.mxu0 0.0
    %1375 = vmatpush1.msra.mxu0 %v41
    %1376 = vmatprep.subr.mxu0 0.0
    %1377 = vmatpush1.msra.mxu0 %v42
    %1378 = vmatprep.subr.mxu0 0.0
    %1379 = vmatpush1.msra.mxu0 %v43
    %1380 = vmatprep.subr.mxu0 0.0
    %1381 = vmatpush1.msra.mxu0 0.0
    %1382 = vmatprep.subr.mxu0 0.0
    %1383 = vmatpush1.msra.mxu0 0.0
    %1384 = vmatprep.subr.mxu0 0.0
    %1385 = vmatpush1.msra.mxu0 0.0
    %1386 = vmatprep.subr.mxu0 0.0
    %1387 = vmatpush1.msra.mxu0 0.0
    %1388 = vmatprep.subr.mxu0 0.0
    %1389 = vmatpush1.msra.mxu0 0.0
    %1390 = vmatprep.subr.mxu0 0.0
    %1391 = vmatpush1.msra.mxu0 0.0
    %1392 = vmatprep.subr.mxu0 0.0
    %1393 = vmatpush1.msra.mxu0 0.0
    %1394 = vmatprep.subr.mxu0 0.0
    %1395 = vmatpush1.msra.mxu0 0.0
    %1396 = vmatprep.subr.mxu0 0.0
    %1397 = vmatpush1.msra.mxu0 0.0
    %1398 = vmatprep.subr.mxu0 0.0
    %1399 = vmatpush1.msra.mxu0 0.0
    %1400 = vmatprep.subr.mxu0 0.0
    %1401 = vmatpush1.msra.mxu0 0.0
    %1402 = vmatprep.subr.mxu0 0.0
    %1403 = vmatpush1.msra.mxu0 0.0
    %1404 = vmatprep.subr.mxu0 0.0
    %1405 = vmatpush1.msra.mxu0 0.0
    %1406 = vmatprep.subr.mxu0 0.0
    %1407 = vmatpush1.msra.mxu0 0.0
    %1408 = vmatprep.subr.mxu0 0.0
    %1409 = vmatpush1.msra.mxu0 0.0
    %1410 = vmatprep.subr.mxu0 0.0
    %1411 = vmatpush1.msra.mxu0 0.0
    %1412 = vmatprep.subr.mxu0 0.0
    %1413 = vmatpush1.msra.mxu0 0.0
    %1414 = vmatprep.subr.mxu0 0.0
    %1415 = vmatpush1.msra.mxu0 0.0
    %1416 = vmatprep.subr.mxu0 0.0
    %1417 = vmatpush1.msra.mxu0 0.0
    %1418 = vmatprep.subr.mxu0 0.0
    %1419 = vmatpush1.msra.mxu0 0.0
    %1420 = vmatprep.subr.mxu0 0.0
    %1421 = vmatpush1.msra.mxu0 0.0
    %1422 = vmatprep.subr.mxu0 0.0
    %1423 = vmatpush1.msra.mxu0 0.0
    %1424 = vmatprep.subr.mxu0 0.0
    %1425 = vmatpush1.msra.mxu0 0.0
    %1426 = vmatprep.subr.mxu0 0.0
    %1427 = vmatpush1.msra.mxu0 0.0
    %1428 = vmatprep.subr.mxu0 0.0
    %1429 = vmatpush1.msra.mxu0 0.0
    %1430 = vmatprep.subr.mxu0 0.0
    %1431 = vmatpush1.msra.mxu0 0.0
    %1432 = vmatprep.subr.mxu0 0.0
    %1433 = vmatpush1.msra.mxu0 0.0
    %1434 = vmatprep.subr.mxu0 0.0
    %1435 = vmatpush1.msra.mxu0 0.0
    %1436 = vmatprep.mubr.f32.mxu0 0.0
    %1437 = vmatmul.mubr.f32.gmra.mrb[0].mxu0 %v1367
    %v1438 = vpop.f32.mrb[0].mxu0
    %v1439 = vadd.f32 %v1364, %v1438
    %v1440 = vpop.f32.mrb[0].mxu0
    %1441 = vmatprep.mubr.f32.mxu0 0.0
    %1442 = vmatmul.mubr.f32.gmra.mrb[0].mxu0 %v1370
    %v1443 = vpop.f32.mrb[0].mxu0
    %v1444 = vadd.f32 %v1364, %v1443
    %v1445 = vpop.f32.mrb[0].mxu0
    %1446 = vdwg.mxu0
    %v1447 = vmax.f32 %v1439, 0.0
    %v1448 = vmax.f32 %v1444, 0.0
    %v1449 = vlaneseq
    %v1450 = vshrl.u32 %v1449, 7
    %v1451 = vsub.s32 2, %v1450
    %v1452 = vrot.slane %v35, %v1451
    %1461 = vrot.lane.b32.xlu0 %v40, 64
    %v1462 = vpop.permute.xlu0 %1461
    %1463 = vrot.lane.b32.xlu0 %v41, 64
    %v1464 = vpop.permute.xlu0 %1463
    %1465 = vrot.lane.b32.xlu0 %v42, 64
    %v1466 = vpop.permute.xlu0 %1465
    %1467 = vrot.lane.b32.xlu0 %v43, 64
    %v1468 = vpop.permute.xlu0 %1467
    %1469 = vrot.lane.b32.xlu0 %v44, 64
    %v1470 = vpop.permute.xlu0 %1469
    %1471 = vrot.lane.b32.xlu0 %v45, 64
    %v1472 = vpop.permute.xlu0 %1471
    %1473 = vrot.lane.b32.xlu0 %v46, 64
    %v1474 = vpop.permute.xlu0 %1473
    %1475 = vrot.lane.b32.xlu0 %v47, 64
    %v1476 = vpop.permute.xlu0 %1475
    %vm1485 = vcmask 523264
    %v1487 = vsel %vm1485, %v1447, 0
    %v1490 = vsel %vm1485, %v1448, 0
    %1492 = vmatprep.subr.mxu0 0.0
    %1493 = vmatpush1.msra.mxu0 %v1462
    %1494 = vmatprep.subr.mxu0 0.0
    %1495 = vmatpush1.msra.mxu0 %v1464
    %1496 = vmatprep.subr.mxu0 0.0
    %1497 = vmatpush1.msra.mxu0 %v1466
    %1498 = vmatprep.subr.mxu0 0.0
    %1499 = vmatpush1.msra.mxu0 %v1468
    %1500 = vmatprep.subr.mxu0 0.0
    %1501 = vmatpush1.msra.mxu0 %v1470
    %1502 = vmatprep.subr.mxu0 0.0
    %1503 = vmatpush1.msra.mxu0 %v1472
    %1504 = vmatprep.subr.mxu0 0.0
    %1505 = vmatpush1.msra.mxu0 %v1474
    %1506 = vmatprep.subr.mxu0 0.0
    %1507 = vmatpush1.msra.mxu0 %v1476
    %1508 = vmatprep.subr.mxu0 0.0
    %1509 = vmatpush1.msra.mxu0 0.0
    %1510 = vmatprep.subr.mxu0 0.0
    %1511 = vmatpush1.msra.mxu0 0.0
    %1512 = vmatprep.subr.mxu0 0.0
    %1513 = vmatpush1.msra.mxu0 0.0
    %1514 = vmatprep.subr.mxu0 0.0
    %1515 = vmatpush1.msra.mxu0 0.0
    %1516 = vmatprep.subr.mxu0 0.0
    %1517 = vmatpush1.msra.mxu0 0.0
    %1518 = vmatprep.subr.mxu0 0.0
    %1519 = vmatpush1.msra.mxu0 0.0
    %1520 = vmatprep.subr.mxu0 0.0
    %1521 = vmatpush1.msra.mxu0 0.0
    %1522 = vmatprep.subr.mxu0 0.0
    %1523 = vmatpush1.msra.mxu0 0.0
    %1524 = vmatprep.subr.mxu0 0.0
    %1525 = vmatpush1.msra.mxu0 0.0
    %1526 = vmatprep.subr.mxu0 0.0
    %1527 = vmatpush1.msra.mxu0 0.0
    %1528 = vmatprep.subr.mxu0 0.0
    %1529 = vmatpush1.msra.mxu0 0.0
    %1530 = vmatprep.subr.mxu0 0.0
    %1531 = vmatpush1.msra.mxu0 0.0
    %1532 = vmatprep.subr.mxu0 0.0
    %1533 = vmatpush1.msra.mxu0 0.0
    %1534 = vmatprep.subr.mxu0 0.0
    %1535 = vmatpush1.msra.mxu0 0.0
    %1536 = vmatprep.subr.mxu0 0.0
    %1537 = vmatpush1.msra.mxu0 0.0
    %1538 = vmatprep.subr.mxu0 0.0
    %1539 = vmatpush1.msra.mxu0 0.0
    %1540 = vmatprep.subr.mxu0 0.0
    %1541 = vmatpush1.msra.mxu0 0.0
    %1542 = vmatprep.subr.mxu0 0.0
    %1543 = vmatpush1.msra.mxu0 0.0
    %1544 = vmatprep.subr.mxu0 0.0
    %1545 = vmatpush1.msra.mxu0 0.0
    %1546 = vmatprep.subr.mxu0 0.0
    %1547 = vmatpush1.msra.mxu0 0.0
    %1548 = vmatprep.subr.mxu0 0.0
    %1549 = vmatpush1.msra.mxu0 0.0
    %1550 = vmatprep.subr.mxu0 0.0
    %1551 = vmatpush1.msra.mxu0 0.0
    %1552 = vmatprep.subr.mxu0 0.0
    %1553 = vmatpush1.msra.mxu0 0.0
    %1554 = vmatprep.subr.mxu0 0.0
    %1555 = vmatpush1.msra.mxu0 0.0
    %1556 = vmatprep.mubr.f32.mxu0 0.0
    %1557 = vmatmul.mubr.f32.gmra.mrb[0].mxu0 %v1487
    %v1558 = vpop.f32.mrb[0].mxu0
    %v1559 = vadd.f32 %v1452, %v1558
    %v1560 = vpop.f32.mrb[0].mxu0
    %1561 = vmatprep.mubr.f32.mxu0 0.0
    %1562 = vmatmul.mubr.f32.gmra.mrb[0].mxu0 %v1490
    %v1563 = vpop.f32.mrb[0].mxu0
    %v1564 = vadd.f32 %v1452, %v1563
    %v1565 = vpop.f32.mrb[0].mxu0
    %1566 = vdwg.mxu0
    %v1567 = vadd.f32 %v1361, %v1559
    %v1568 = vadd.f32 %v1362, %v1564
    %v1569 = vsel %vm52, %v1567, 0.0
    %1570 = vadd.xlane.f32.xlu0 %v1569
    %v1571 = vpop.xlane.xlu0 %1570
    %v1572 = vsel %vm52, %v1568, 0.0
    %1573 = vadd.xlane.f32.xlu0 %v1572
    %v1574 = vpop.xlane.xlu0 %1573
    %v1575 = vmul.f32 %v1571, %v1330
    %v1576 = vmul.f32 %v1574, %v1330
    %v1577 = vsub.f32 %v1567, %v1575
    %v1578 = vsub.f32 %v1568, %v1576
    %v1579 = vmul.f32 %v1577, %v1577
    %v1580 = vmul.f32 %v1578, %v1578
    %v1581 = vsel %vm52, %v1579, 0.0
    %1582 = vadd.xlane.f32.xlu0 %v1581
    %v1583 = vpop.xlane.xlu0 %1582
    %v1584 = vsel %vm52, %v1580, 0.0
    %1585 = vadd.xlane.f32.xlu0 %v1584
    %v1586 = vpop.xlane.xlu0 %1585
    %v1587 = vmul.f32 %v1583, %v1330
    %v1588 = vmul.f32 %v1586, %v1330
    %v1589 = vadd.f32 %v1587, 1e-05
    %v1590 = vadd.f32 %v1588, 1e-05
    %v1591 = vrsqrt.pop %v1589
    %v1592 = vrsqrt.pop %v1590
    %v1593 = vmul.f32 %v1577, %v1591
    %v1594 = vmul.f32 %v1578, %v1592
    %1596 = vrot.lane.b32.xlu0 %v1452, 96
    %v1597 = vpop.permute.xlu0 %1596
    %v1599 = vmul.f32 %v1593, %v1597
    %v1600 = vmul.f32 %v1594, %v1597
    %1601 = vrot.lane.b32.xlu0 %v1452, 64
    %v1602 = vpop.permute.xlu0 %1601
    %v1604 = vadd.f32 %v1599, %v1602
    %v1605 = vadd.f32 %v1600, %v1602
    %v1606 = vld [vmem:[#allocation2 + $0x60] sm:$0xff]
    %v1607 = vld [vmem:[#allocation2 + $0x68] sm:$0xff]
    %v1608 = vld [vmem:[#allocation2 + $0x70] sm:$0xff]
    %v1609 = vld [vmem:[#allocation2 + $0x78] sm:$0xff]
    %v1610 = vld [vmem:[#allocation2 + $0x80] sm:$0xff]
    %v1611 = vld [vmem:[#allocation2 + $0x88] sm:$0xff]
    %v1612 = vld [vmem:[#allocation2 + $0x90] sm:$0xff]
    %v1613 = vld [vmem:[#allocation2 + $0x98] sm:$0xff]
    %v1614 = vld [vmem:[#allocation2 + $0x80] sm:$0xff]
    %v1615 = vld [vmem:[#allocation2 + $0x88] sm:$0xff]
    %v1616 = vld [vmem:[#allocation2 + $0x90] sm:$0xff]
    %v1617 = vld [vmem:[#allocation2 + $0x98] sm:$0xff]
    %v1618 = vld [vmem:[#allocation2 + $0xa0] sm:$0xff]
    %v1619 = vld [vmem:[#allocation2 + $0xa8] sm:$0xff]
    %v1620 = vld [vmem:[#allocation2 + $0xb0] sm:$0xff]
    %v1621 = vld [vmem:[#allocation2 + $0xb8] sm:$0xff]
    %v1622 = vlaneseq
    %v1623 = vshrl.u32 %v1622, 7
    %v1624 = vsub.s32 3, %v1623
    %v1625 = vrot.slane %v35, %v1624
    %v1627 = vsel %vm52, %v1604, 0
    %v1630 = vsel %vm52, %v1605, 0
    %1632 = vmatprep.subr.mxu0 0.0
    %1633 = vmatpush1.msra.mxu0 %v1606
    %1634 = vmatprep.subr.mxu0 0.0
    %1635 = vmatpush1.msra.mxu0 %v1607
    %1636 = vmatprep.subr.mxu0 0.0
    %1637 = vmatpush1.msra.mxu0 %v1608
    %1638 = vmatprep.subr.mxu0 0.0
    %1639 = vmatpush1.msra.mxu0 %v1609
    %1640 = vmatprep.subr.mxu0 0.0
    %1641 = vmatpush1.msra.mxu0 0.0
    %1642 = vmatprep.subr.mxu0 0.0
    %1643 = vmatpush1.msra.mxu0 0.0
    %1644 = vmatprep.subr.mxu0 0.0
    %1645 = vmatpush1.msra.mxu0 0.0
    %1646 = vmatprep.subr.mxu0 0.0
    %1647 = vmatpush1.msra.mxu0 0.0
    %1648 = vmatprep.subr.mxu0 0.0
    %1649 = vmatpush1.msra.mxu0 0.0
    %1650 = vmatprep.subr.mxu0 0.0
    %1651 = vmatpush1.msra.mxu0 0.0
    %1652 = vmatprep.subr.mxu0 0.0
    %1653 = vmatpush1.msra.mxu0 0.0
    %1654 = vmatprep.subr.mxu0 0.0
    %1655 = vmatpush1.msra.mxu0 0.0
    %1656 = vmatprep.subr.mxu0 0.0
    %1657 = vmatpush1.msra.mxu0 0.0
    %1658 = vmatprep.subr.mxu0 0.0
    %1659 = vmatpush1.msra.mxu0 0.0
    %1660 = vmatprep.subr.mxu0 0.0
    %1661 = vmatpush1.msra.mxu0 0.0
    %1662 = vmatprep.subr.mxu0 0.0
    %1663 = vmatpush1.msra.mxu0 0.0
    %1664 = vmatprep.subr.mxu0 0.0
    %1665 = vmatpush1.msra.mxu0 0.0
    %1666 = vmatprep.subr.mxu0 0.0
    %1667 = vmatpush1.msra.mxu0 0.0
    %1668 = vmatprep.subr.mxu0 0.0
    %1669 = vmatpush1.msra.mxu0 0.0
    %1670 = vmatprep.subr.mxu0 0.0
    %1671 = vmatpush1.msra.mxu0 0.0
    %1672 = vmatprep.subr.mxu0 0.0
    %1673 = vmatpush1.msra.mxu0 0.0
    %1674 = vmatprep.subr.mxu0 0.0
    %1675 = vmatpush1.msra.mxu0 0.0
    %1676 = vmatprep.subr.mxu0 0.0
    %1677 = vmatpush1.msra.mxu0 0.0
    %1678 = vmatprep.subr.mxu0 0.0
    %1679 = vmatpush1.msra.mxu0 0.0
    %1680 = vmatprep.subr.mxu0 0.0
    %1681 = vmatpush1.msra.mxu0 0.0
    %1682 = vmatprep.subr.mxu0 0.0
    %1683 = vmatpush1.msra.mxu0 0.0
    %1684 = vmatprep.subr.mxu0 0.0
    %1685 = vmatpush1.msra.mxu0 0.0
    %1686 = vmatprep.subr.mxu0 0.0
    %1687 = vmatpush1.msra.mxu0 0.0
    %1688 = vmatprep.subr.mxu0 0.0
    %1689 = vmatpush1.msra.mxu0 0.0
    %1690 = vmatprep.subr.mxu0 0.0
    %1691 = vmatpush1.msra.mxu0 0.0
    %1692 = vmatprep.subr.mxu0 0.0
    %1693 = vmatpush1.msra.mxu0 0.0
    %1694 = vmatprep.subr.mxu0 0.0
    %1695 = vmatpush1.msra.mxu0 0.0
    %1696 = vmatprep.mubr.f32.mxu0 0.0
    %1697 = vmatmul.mubr.f32.gmra.mrb[0].mxu0 %v1627
    %v1698 = vpop.f32.mrb[0].mxu0
    %v1699 = vadd.f32 %v1625, %v1698
    %v1700 = vpop.f32.mrb[0].mxu0
    %1701 = vmatprep.mubr.f32.mxu0 0.0
    %1702 = vmatmul.mubr.f32.gmra.mrb[0].mxu0 %v1630
    %v1703 = vpop.f32.mrb[0].mxu0
    %v1704 = vadd.f32 %v1625, %v1703
    %v1705 = vpop.f32.mrb[0].mxu0
    %1706 = vdwg.mxu0
    %1709 = vrot.lane.b32.xlu0 %v1699, 96
    %v1710 = vpop.permute.xlu0 %1709
    %1711 = vrot.lane.b32.xlu0 %v1704, 96
    %v1712 = vpop.permute.xlu0 %1711
    %v1713 = vsel %vm140, %v1699, 0
    %v1715 = vsel %vm140, %v1704, 0
    %v1717 = vsel %vm140, %v1710, 0
    %v1719 = vsel %vm140, %v1712, 0
    %1721 = vmatprep.subr.mxu0 0.0
    %1722 = vmatpush1.xpose.msra.mxu0 %v1717
    %1723 = vmatprep.subr.mxu0 0.0
    %1724 = vmatpush1.xpose.msra.mxu0 %v1719
    %1725 = vmatprep.subr.mxu0 0.0
    %1726 = vmatpush1.xpose.msra.mxu0 0.0
    %1727 = vmatprep.subr.mxu0 0.0
    %1728 = vmatpush1.xpose.msra.mxu0 0.0
    %1729 = vmatprep.subr.mxu0 0.0
    %1730 = vmatpush1.xpose.msra.mxu0 0.0
    %1731 = vmatprep.subr.mxu0 0.0
    %1732 = vmatpush1.xpose.msra.mxu0 0.0
    %1733 = vmatprep.subr.mxu0 0.0
    %1734 = vmatpush1.xpose.msra.mxu0 0.0
    %1735 = vmatprep.subr.mxu0 0.0
    %1736 = vmatpush1.xpose.msra.mxu0 0.0
    %1737 = vmatprep.subr.mxu0 0.0
    %1738 = vmatpush1.xpose.msra.mxu0 0.0
    %1739 = vmatprep.subr.mxu0 0.0
    %1740 = vmatpush1.xpose.msra.mxu0 0.0
    %1741 = vmatprep.subr.mxu0 0.0
    %1742 = vmatpush1.xpose.msra.mxu0 0.0
    %1743 = vmatprep.subr.mxu0 0.0
    %1744 = vmatpush1.xpose.msra.mxu0 0.0
    %1745 = vmatprep.subr.mxu0 0.0
    %1746 = vmatpush1.xpose.msra.mxu0 0.0
    %1747 = vmatprep.subr.mxu0 0.0
    %1748 = vmatpush1.xpose.msra.mxu0 0.0
    %1749 = vmatprep.subr.mxu0 0.0
    %1750 = vmatpush1.xpose.msra.mxu0 0.0
    %1751 = vmatprep.subr.mxu0 0.0
    %1752 = vmatpush1.xpose.msra.mxu0 0.0
    %1753 = vmatprep.subr.mxu0 0.0
    %1754 = vmatpush1.xpose.msra.mxu0 0.0
    %1755 = vmatprep.subr.mxu0 0.0
    %1756 = vmatpush1.xpose.msra.mxu0 0.0
    %1757 = vmatprep.subr.mxu0 0.0
    %1758 = vmatpush1.xpose.msra.mxu0 0.0
    %1759 = vmatprep.subr.mxu0 0.0
    %1760 = vmatpush1.xpose.msra.mxu0 0.0
    %1761 = vmatprep.subr.mxu0 0.0
    %1762 = vmatpush1.xpose.msra.mxu0 0.0
    %1763 = vmatprep.subr.mxu0 0.0
    %1764 = vmatpush1.xpose.msra.mxu0 0.0
    %1765 = vmatprep.subr.mxu0 0.0
    %1766 = vmatpush1.xpose.msra.mxu0 0.0
    %1767 = vmatprep.subr.mxu0 0.0
    %1768 = vmatpush1.xpose.msra.mxu0 0.0
    %1769 = vmatprep.subr.mxu0 0.0
    %1770 = vmatpush1.xpose.msra.mxu0 0.0
    %1771 = vmatprep.subr.mxu0 0.0
    %1772 = vmatpush1.xpose.msra.mxu0 0.0
    %1773 = vmatprep.subr.mxu0 0.0
    %1774 = vmatpush1.xpose.msra.mxu0 0.0
    %1775 = vmatprep.subr.mxu0 0.0
    %1776 = vmatpush1.xpose.msra.mxu0 0.0
    %1777 = vmatprep.subr.mxu0 0.0
    %1778 = vmatpush1.xpose.msra.mxu0 0.0
    %1779 = vmatprep.subr.mxu0 0.0
    %1780 = vmatpush1.xpose.msra.mxu0 0.0
    %1781 = vmatprep.subr.mxu0 0.0
    %1782 = vmatpush1.xpose.msra.mxu0 0.0
    %1783 = vmatprep.subr.mxu0 0.0
    %1784 = vmatpush1.xpose.msra.mxu0 0.0
    %1785 = vmatprep.mubr.f32.mxu0 0.0
    %1786 = vmatmul.mubr.f32.gmra.mrb[0].mxu0 %v1713
    %v1787 = vpop.f32.mrb[0].mxu0
    %v1788 = vadd.f32 %v33, %v1787
    %v1789 = vpop.f32.mrb[0].mxu0
    %1790 = vmatprep.mubr.f32.mxu0 0.0
    %1791 = vmatmul.mubr.f32.gmra.mrb[0].mxu0 %v1715
    %v1792 = vpop.f32.mrb[0].mxu0
    %v1793 = vadd.f32 %v34, %v1792
    %v1794 = vpop.f32.mrb[0].mxu0
    %1795 = vdwg.mxu0
    %v1796 = vsel %vm224, %v1788, -inf
    %1797 = vmax.xlane.f32.xlu0 %v1796
    %v1798 = vpop.xlane.xlu0 %1797
    %v1799 = vsel %vm224, %v1793, -inf
    %1800 = vmax.xlane.f32.xlu0 %v1799
    %v1801 = vpop.xlane.xlu0 %1800
    %v1802 = vsub.f32 %v1788, %v1798
    %v1803 = vsub.f32 %v1793, %v1801
    %v1804 = vmul.f32 %v1802, 1.442695
    %v1805 = vpow.pop %v1804
    %v1806 = vmul.f32 %v1803, 1.442695
    %v1807 = vpow.pop %v1806
    %v1808 = vsel %vm224, %v1805, 0.0
    %1809 = vadd.xlane.f32.xlu0 %v1808
    %v1810 = vpop.xlane.xlu0 %1809
    %v1811 = vsel %vm224, %v1807, 0.0
    %1812 = vadd.xlane.f32.xlu0 %v1811
    %v1813 = vpop.xlane.xlu0 %1812
    %v1814 = vrcp.pop %v1810
    %v1815 = vrcp.pop %v1813
    %v1816 = vmul.f32 %v1805, %v1814
    %v1817 = vmul.f32 %v1807, %v1815
    %1818 = vrot.lane.b32.xlu0 %v1699, 64
    %v1819 = vpop.permute.xlu0 %1818
    %1820 = vrot.lane.b32.xlu0 %v1704, 64
    %v1821 = vpop.permute.xlu0 %1820
    %v1825 = vsel %vm224, %v1816, 0
    %v1828 = vsel %vm224, %v1817, 0
    %1830 = vmatprep.subr.mxu0 0.0
    %1831 = vmatpush1.msra.mxu0 %v1819
    %1832 = vmatprep.subr.mxu0 0.0
    %1833 = vmatpush1.msra.mxu0 %v1821
    %1834 = vmatprep.subr.mxu0 0.0
    %1835 = vmatpush1.msra.mxu0 0.0
    %1836 = vmatprep.subr.mxu0 0.0
    %1837 = vmatpush1.msra.mxu0 0.0
    %1838 = vmatprep.subr.mxu0 0.0
    %1839 = vmatpush1.msra.mxu0 0.0
    %1840 = vmatprep.subr.mxu0 0.0
    %1841 = vmatpush1.msra.mxu0 0.0
    %1842 = vmatprep.subr.mxu0 0.0
    %1843 = vmatpush1.msra.mxu0 0.0
    %1844 = vmatprep.subr.mxu0 0.0
    %1845 = vmatpush1.msra.mxu0 0.0
    %1846 = vmatprep.subr.mxu0 0.0
    %1847 = vmatpush1.msra.mxu0 0.0
    %1848 = vmatprep.subr.mxu0 0.0
    %1849 = vmatpush1.msra.mxu0 0.0
    %1850 = vmatprep.subr.mxu0 0.0
    %1851 = vmatpush1.msra.mxu0 0.0
    %1852 = vmatprep.subr.mxu0 0.0
    %1853 = vmatpush1.msra.mxu0 0.0
    %1854 = vmatprep.subr.mxu0 0.0
    %1855 = vmatpush1.msra.mxu0 0.0
    %1856 = vmatprep.subr.mxu0 0.0
    %1857 = vmatpush1.msra.mxu0 0.0
    %1858 = vmatprep.subr.mxu0 0.0
    %1859 = vmatpush1.msra.mxu0 0.0
    %1860 = vmatprep.subr.mxu0 0.0
    %1861 = vmatpush1.msra.mxu0 0.0
    %1862 = vmatprep.subr.mxu0 0.0
    %1863 = vmatpush1.msra.mxu0 0.0
    %1864 = vmatprep.subr.mxu0 0.0
    %1865 = vmatpush1.msra.mxu0 0.0
    %1866 = vmatprep.subr.mxu0 0.0
    %1867 = vmatpush1.msra.mxu0 0.0
    %1868 = vmatprep.subr.mxu0 0.0
    %1869 = vmatpush1.msra.mxu0 0.0
    %1870 = vmatprep.subr.mxu0 0.0
    %1871 = vmatpush1.msra.mxu0 0.0
    %1872 = vmatprep.subr.mxu0 0.0
    %1873 = vmatpush1.msra.mxu0 0.0
    %1874 = vmatprep.subr.mxu0 0.0
    %1875 = vmatpush1.msra.mxu0 0.0
    %1876 = vmatprep.subr.mxu0 0.0
    %1877 = vmatpush1.msra.mxu0 0.0
    %1878 = vmatprep.subr.mxu0 0.0
    %1879 = vmatpush1.msra.mxu0 0.0
    %1880 = vmatprep.subr.mxu0 0.0
    %1881 = vmatpush1.msra.mxu0 0.0
    %1882 = vmatprep.subr.mxu0 0.0
    %1883 = vmatpush1.msra.mxu0 0.0
    %1884 = vmatprep.subr.mxu0 0.0
    %1885 = vmatpush1.msra.mxu0 0.0
    %1886 = vmatprep.subr.mxu0 0.0
    %1887 = vmatpush1.msra.mxu0 0.0
    %1888 = vmatprep.subr.mxu0 0.0
    %1889 = vmatpush1.msra.mxu0 0.0
    %1890 = vmatprep.subr.mxu0 0.0
    %1891 = vmatpush1.msra.mxu0 0.0
    %1892 = vmatprep.subr.mxu0 0.0
    %1893 = vmatpush1.msra.mxu0 0.0
    %1894 = vmatprep.mubr.f32.mxu0 0.0
    %1895 = vmatmul.mubr.f32.gmra.mrb[0].mxu0 %v1825
    %v1896 = vpop.f32.mrb[0].mxu0
    %v1897 = vadd.f32 0.0, %v1896
    %v1898 = vpop.f32.mrb[0].mxu0
    %1899 = vmatprep.mubr.f32.mxu0 0.0
    %1900 = vmatmul.mubr.f32.gmra.mrb[0].mxu0 %v1828
    %v1901 = vpop.f32.mrb[0].mxu0
    %v1902 = vadd.f32 0.0, %v1901
    %v1903 = vpop.f32.mrb[0].mxu0
    %1904 = vdwg.mxu0
    %1906 = vrot.lane.b32.xlu0 %v1606, 32
    %v1907 = vpop.permute.xlu0 %1906
    %v1910 = vsel %vm140, %v1897, 0
    %v1913 = vsel %vm140, %v1902, 0
    %1915 = vmatprep.subr.mxu0 0.0
    %1916 = vmatpush1.msra.mxu0 %v1907
    %1917 = vmatprep.subr.mxu0 0.0
    %1918 = vmatpush1.msra.mxu0 0.0
    %1919 = vmatprep.subr.mxu0 0.0
    %1920 = vmatpush1.msra.mxu0 0.0
    %1921 = vmatprep.subr.mxu0 0.0
    %1922 = vmatpush1.msra.mxu0 0.0
    %1923 = vmatprep.subr.mxu0 0.0
    %1924 = vmatpush1.msra.mxu0 0.0
    %1925 = vmatprep.subr.mxu0 0.0
    %1926 = vmatpush1.msra.mxu0 0.0
    %1927 = vmatprep.subr.mxu0 0.0
    %1928 = vmatpush1.msra.mxu0 0.0
    %1929 = vmatprep.subr.mxu0 0.0
    %1930 = vmatpush1.msra.mxu0 0.0
    %1931 = vmatprep.subr.mxu0 0.0
    %1932 = vmatpush1.msra.mxu0 0.0
    %1933 = vmatprep.subr.mxu0 0.0
    %1934 = vmatpush1.msra.mxu0 0.0
    %1935 = vmatprep.subr.mxu0 0.0
    %1936 = vmatpush1.msra.mxu0 0.0
    %1937 = vmatprep.subr.mxu0 0.0
    %1938 = vmatpush1.msra.mxu0 0.0
    %1939 = vmatprep.subr.mxu0 0.0
    %1940 = vmatpush1.msra.mxu0 0.0
    %1941 = vmatprep.subr.mxu0 0.0
    %1942 = vmatpush1.msra.mxu0 0.0
    %1943 = vmatprep.subr.mxu0 0.0
    %1944 = vmatpush1.msra.mxu0 0.0
    %1945 = vmatprep.subr.mxu0 0.0
    %1946 = vmatpush1.msra.mxu0 0.0
    %1947 = vmatprep.subr.mxu0 0.0
    %1948 = vmatpush1.msra.mxu0 0.0
    %1949 = vmatprep.subr.mxu0 0.0
    %1950 = vmatpush1.msra.mxu0 0.0
    %1951 = vmatprep.subr.mxu0 0.0
    %1952 = vmatpush1.msra.mxu0 0.0
    %1953 = vmatprep.subr.mxu0 0.0
    %1954 = vmatpush1.msra.mxu0 0.0
    %1955 = vmatprep.subr.mxu0 0.0
    %1956 = vmatpush1.msra.mxu0 0.0
    %1957 = vmatprep.subr.mxu0 0.0
    %1958 = vmatpush1.msra.mxu0 0.0
    %1959 = vmatprep.subr.mxu0 0.0
    %1960 = vmatpush1.msra.mxu0 0.0
    %1961 = vmatprep.subr.mxu0 0.0
    %1962 = vmatpush1.msra.mxu0 0.0
    %1963 = vmatprep.subr.mxu0 0.0
    %1964 = vmatpush1.msra.mxu0 0.0
    %1965 = vmatprep.subr.mxu0 0.0
    %1966 = vmatpush1.msra.mxu0 0.0
    %1967 = vmatprep.subr.mxu0 0.0
    %1968 = vmatpush1.msra.mxu0 0.0
    %1969 = vmatprep.subr.mxu0 0.0
    %1970 = vmatpush1.msra.mxu0 0.0
    %1971 = vmatprep.subr.mxu0 0.0
    %1972 = vmatpush1.msra.mxu0 0.0
    %1973 = vmatprep.subr.mxu0 0.0
    %1974 = vmatpush1.msra.mxu0 0.0
    %1975 = vmatprep.subr.mxu0 0.0
    %1976 = vmatpush1.msra.mxu0 0.0
    %1977 = vmatprep.subr.mxu0 0.0
    %1978 = vmatpush1.msra.mxu0 0.0
    %1979 = vmatprep.mubr.f32.mxu0 0.0
    %1980 = vmatmul.mubr.f32.gmra.mrb[0].mxu0 %v1910
    %v1981 = vpop.f32.mrb[0].mxu0
    %v1982 = vadd.f32 0.0, %v1981
    %v1983 = vpop.f32.mrb[0].mxu0
    %1984 = vmatprep.mubr.f32.mxu0 0.0
    %1985 = vmatmul.mubr.f32.gmra.mrb[0].mxu0 %v1913
    %v1986 = vpop.f32.mrb[0].mxu0
    %v1987 = vadd.f32 0.0, %v1986
    %v1988 = vpop.f32.mrb[0].mxu0
    %1989 = vdwg.mxu0
    %1992 = vrot.lane.b32.xlu0 %v1982, 96
    %v1993 = vpop.permute.xlu0 %1992
    %1994 = vrot.lane.b32.xlu0 %v1987, 96
    %v1995 = vpop.permute.xlu0 %1994
    %v1998 = vadd.f32 %v1625, %v1993
    %v1999 = vadd.f32 %v1625, %v1995
    %2000 = vrot.lane.b32.xlu0 %v1699, 120
    %v2001 = vpop.permute.xlu0 %2000
    %2002 = vrot.lane.b32.xlu0 %v1704, 120
    %v2003 = vpop.permute.xlu0 %2002
    %2004 = vrot.lane.b32.xlu0 %v1699, 88
    %v2005 = vpop.permute.xlu0 %2004
    %2006 = vrot.lane.b32.xlu0 %v1704, 88
    %v2007 = vpop.permute.xlu0 %2006
    %v2008 = vsel %vm140, %v2001, 0
    %v2010 = vsel %vm140, %v2003, 0
    %v2012 = vsel %vm140, %v2005, 0
    %v2014 = vsel %vm140, %v2007, 0
    %2016 = vmatprep.subr.mxu0 0.0
    %2017 = vmatpush1.xpose.msra.mxu0 %v2012
    %2018 = vmatprep.subr.mxu0 0.0
    %2019 = vmatpush1.xpose.msra.mxu0 %v2014
    %2020 = vmatprep.subr.mxu0 0.0
    %2021 = vmatpush1.xpose.msra.mxu0 0.0
    %2022 = vmatprep.subr.mxu0 0.0
    %2023 = vmatpush1.xpose.msra.mxu0 0.0
    %2024 = vmatprep.subr.mxu0 0.0
    %2025 = vmatpush1.xpose.msra.mxu0 0.0
    %2026 = vmatprep.subr.mxu0 0.0
    %2027 = vmatpush1.xpose.msra.mxu0 0.0
    %2028 = vmatprep.subr.mxu0 0.0
    %2029 = vmatpush1.xpose.msra.mxu0 0.0
    %2030 = vmatprep.subr.mxu0 0.0
    %2031 = vmatpush1.xpose.msra.mxu0 0.0
    %2032 = vmatprep.subr.mxu0 0.0
    %2033 = vmatpush1.xpose.msra.mxu0 0.0
    %2034 = vmatprep.subr.mxu0 0.0
    %2035 = vmatpush1.xpose.msra.mxu0 0.0
    %2036 = vmatprep.subr.mxu0 0.0
    %2037 = vmatpush1.xpose.msra.mxu0 0.0
    %2038 = vmatprep.subr.mxu0 0.0
    %2039 = vmatpush1.xpose.msra.mxu0 0.0
    %2040 = vmatprep.subr.mxu0 0.0
    %2041 = vmatpush1.xpose.msra.mxu0 0.0
    %2042 = vmatprep.subr.mxu0 0.0
    %2043 = vmatpush1.xpose.msra.mxu0 0.0
    %2044 = vmatprep.subr.mxu0 0.0
    %2045 = vmatpush1.xpose.msra.mxu0 0.0
    %2046 = vmatprep.subr.mxu0 0.0
    %2047 = vmatpush1.xpose.msra.mxu0 0.0
    %2048 = vmatprep.subr.mxu0 0.0
    %2049 = vmatpush1.xpose.msra.mxu0 0.0
    %2050 = vmatprep.subr.mxu0 0.0
    %2051 = vmatpush1.xpose.msra.mxu0 0.0
    %2052 = vmatprep.subr.mxu0 0.0
    %2053 = vmatpush1.xpose.msra.mxu0 0.0
    %2054 = vmatprep.subr.mxu0 0.0
    %2055 = vmatpush1.xpose.msra.mxu0 0.0
    %2056 = vmatprep.subr.mxu0 0.0
    %2057 = vmatpush1.xpose.msra.mxu0 0.0
    %2058 = vmatprep.subr.mxu0 0.0
    %2059 = vmatpush1.xpose.msra.mxu0 0.0
    %2060 = vmatprep.subr.mxu0 0.0
    %2061 = vmatpush1.xpose.msra.mxu0 0.0
    %2062 = vmatprep.subr.mxu0 0.0
    %2063 = vmatpush1.xpose.msra.mxu0 0.0
    %2064 = vmatprep.subr.mxu0 0.0
    %2065 = vmatpush1.xpose.msra.mxu0 0.0
    %2066 = vmatprep.subr.mxu0 0.0
    %2067 = vmatpush1.xpose.msra.mxu0 0.0
    %2068 = vmatprep.subr.mxu0 0.0
    %2069 = vmatpush1.xpose.msra.mxu0 0.0
    %2070 = vmatprep.subr.mxu0 0.0
    %2071 = vmatpush1.xpose.msra.mxu0 0.0
    %2072 = vmatprep.subr.mxu0 0.0
    %2073 = vmatpush1.xpose.msra.mxu0 0.0
    %2074 = vmatprep.subr.mxu0 0.0
    %2075 = vmatpush1.xpose.msra.mxu0 0.0
    %2076 = vmatprep.subr.mxu0 0.0
    %2077 = vmatpush1.xpose.msra.mxu0 0.0
    %2078 = vmatprep.subr.mxu0 0.0
    %2079 = vmatpush1.xpose.msra.mxu0 0.0
    %2080 = vmatprep.mubr.f32.mxu0 0.0
    %2081 = vmatmul.mubr.f32.gmra.mrb[0].mxu0 %v2008
    %v2082 = vpop.f32.mrb[0].mxu0
    %v2083 = vadd.f32 %v33, %v2082
    %v2084 = vpop.f32.mrb[0].mxu0
    %2085 = vmatprep.mubr.f32.mxu0 0.0
    %2086 = vmatmul.mubr.f32.gmra.mrb[0].mxu0 %v2010
    %v2087 = vpop.f32.mrb[0].mxu0
    %v2088 = vadd.f32 %v34, %v2087
    %v2089 = vpop.f32.mrb[0].mxu0
    %2090 = vdwg.mxu0
    %v2091 = vsel %vm224, %v2083, -inf
    %2092 = vmax.xlane.f32.xlu0 %v2091
    %v2093 = vpop.xlane.xlu0 %2092
    %v2094 = vsel %vm224, %v2088, -inf
    %2095 = vmax.xlane.f32.xlu0 %v2094
    %v2096 = vpop.xlane.xlu0 %2095
    %v2097 = vsub.f32 %v2083, %v2093
    %v2098 = vsub.f32 %v2088, %v2096
    %v2099 = vmul.f32 %v2097, 1.442695
    %v2100 = vpow.pop %v2099
    %v2101 = vmul.f32 %v2098, 1.442695
    %v2102 = vpow.pop %v2101
    %v2103 = vsel %vm224, %v2100, 0.0
    %2104 = vadd.xlane.f32.xlu0 %v2103
    %v2105 = vpop.xlane.xlu0 %2104
    %v2106 = vsel %vm224, %v2102, 0.0
    %2107 = vadd.xlane.f32.xlu0 %v2106
    %v2108 = vpop.xlane.xlu0 %2107
    %v2109 = vrcp.pop %v2105
    %v2110 = vrcp.pop %v2108
    %v2111 = vmul.f32 %v2100, %v2109
    %v2112 = vmul.f32 %v2102, %v2110
    %2113 = vrot.lane.b32.xlu0 %v1699, 56
    %v2114 = vpop.permute.xlu0 %2113
    %2115 = vrot.lane.b32.xlu0 %v1704, 56
    %v2116 = vpop.permute.xlu0 %2115
    %v2120 = vsel %vm224, %v2111, 0
    %v2123 = vsel %vm224, %v2112, 0
    %2125 = vmatprep.subr.mxu0 0.0
    %2126 = vmatpush1.msra.mxu0 %v2114
    %2127 = vmatprep.subr.mxu0 0.0
    %2128 = vmatpush1.msra.mxu0 %v2116
    %2129 = vmatprep.subr.mxu0 0.0
    %2130 = vmatpush1.msra.mxu0 0.0
    %2131 = vmatprep.subr.mxu0 0.0
    %2132 = vmatpush1.msra.mxu0 0.0
    %2133 = vmatprep.subr.mxu0 0.0
    %2134 = vmatpush1.msra.mxu0 0.0
    %2135 = vmatprep.subr.mxu0 0.0
    %2136 = vmatpush1.msra.mxu0 0.0
    %2137 = vmatprep.subr.mxu0 0.0
    %2138 = vmatpush1.msra.mxu0 0.0
    %2139 = vmatprep.subr.mxu0 0.0
    %2140 = vmatpush1.msra.mxu0 0.0
    %2141 = vmatprep.subr.mxu0 0.0
    %2142 = vmatpush1.msra.mxu0 0.0
    %2143 = vmatprep.subr.mxu0 0.0
    %2144 = vmatpush1.msra.mxu0 0.0
    %2145 = vmatprep.subr.mxu0 0.0
    %2146 = vmatpush1.msra.mxu0 0.0
    %2147 = vmatprep.subr.mxu0 0.0
    %2148 = vmatpush1.msra.mxu0 0.0
    %2149 = vmatprep.subr.mxu0 0.0
    %2150 = vmatpush1.msra.mxu0 0.0
    %2151 = vmatprep.subr.mxu0 0.0
    %2152 = vmatpush1.msra.mxu0 0.0
    %2153 = vmatprep.subr.mxu0 0.0
    %2154 = vmatpush1.msra.mxu0 0.0
    %2155 = vmatprep.subr.mxu0 0.0
    %2156 = vmatpush1.msra.mxu0 0.0
    %2157 = vmatprep.subr.mxu0 0.0
    %2158 = vmatpush1.msra.mxu0 0.0
    %2159 = vmatprep.subr.mxu0 0.0
    %2160 = vmatpush1.msra.mxu0 0.0
    %2161 = vmatprep.subr.mxu0 0.0
    %2162 = vmatpush1.msra.mxu0 0.0
    %2163 = vmatprep.subr.mxu0 0.0
    %2164 = vmatpush1.msra.mxu0 0.0
    %2165 = vmatprep.subr.mxu0 0.0
    %2166 = vmatpush1.msra.mxu0 0.0
    %2167 = vmatprep.subr.mxu0 0.0
    %2168 = vmatpush1.msra.mxu0 0.0
    %2169 = vmatprep.subr.mxu0 0.0
    %2170 = vmatpush1.msra.mxu0 0.0
    %2171 = vmatprep.subr.mxu0 0.0
    %2172 = vmatpush1.msra.mxu0 0.0
    %2173 = vmatprep.subr.mxu0 0.0
    %2174 = vmatpush1.msra.mxu0 0.0
    %2175 = vmatprep.subr.mxu0 0.0
    %2176 = vmatpush1.msra.mxu0 0.0
    %2177 = vmatprep.subr.mxu0 0.0
    %2178 = vmatpush1.msra.mxu0 0.0
    %2179 = vmatprep.subr.mxu0 0.0
    %2180 = vmatpush1.msra.mxu0 0.0
    %2181 = vmatprep.subr.mxu0 0.0
    %2182 = vmatpush1.msra.mxu0 0.0
    %2183 = vmatprep.subr.mxu0 0.0
    %2184 = vmatpush1.msra.mxu0 0.0
    %2185 = vmatprep.subr.mxu0 0.0
    %2186 = vmatpush1.msra.mxu0 0.0
    %2187 = vmatprep.subr.mxu0 0.0
    %2188 = vmatpush1.msra.mxu0 0.0
    %2189 = vmatprep.mubr.f32.mxu0 0.0
    %2190 = vmatmul.mubr.f32.gmra.mrb[0].mxu0 %v2120
    %v2191 = vpop.f32.mrb[0].mxu0
    %v2192 = vadd.f32 0.0, %v2191
    %v2193 = vpop.f32.mrb[0].mxu0
    %2194 = vmatprep.mubr.f32.mxu0 0.0
    %2195 = vmatmul.mubr.f32.gmra.mrb[0].mxu0 %v2123
    %v2196 = vpop.f32.mrb[0].mxu0
    %v2197 = vadd.f32 0.0, %v2196
    %v2198 = vpop.f32.mrb[0].mxu0
    %2199 = vdwg.mxu0
    %2201 = vrot.lane.b32.xlu0 %v1607, 32
    %v2202 = vpop.permute.xlu0 %2201
    %v2205 = vsel %vm140, %v2192, 0
    %v2208 = vsel %vm140, %v2197, 0
    %2210 = vmatprep.subr.mxu0 0.0
    %2211 = vmatpush1.msra.mxu0 %v2202
    %2212 = vmatprep.subr.mxu0 0.0
    %2213 = vmatpush1.msra.mxu0 0.0
    %2214 = vmatprep.subr.mxu0 0.0
    %2215 = vmatpush1.msra.mxu0 0.0
    %2216 = vmatprep.subr.mxu0 0.0
    %2217 = vmatpush1.msra.mxu0 0.0
    %2218 = vmatprep.subr.mxu0 0.0
    %2219 = vmatpush1.msra.mxu0 0.0
    %2220 = vmatprep.subr.mxu0 0.0
    %2221 = vmatpush1.msra.mxu0 0.0
    %2222 = vmatprep.subr.mxu0 0.0
    %2223 = vmatpush1.msra.mxu0 0.0
    %2224 = vmatprep.subr.mxu0 0.0
    %2225 = vmatpush1.msra.mxu0 0.0
    %2226 = vmatprep.subr.mxu0 0.0
    %2227 = vmatpush1.msra.mxu0 0.0
    %2228 = vmatprep.subr.mxu0 0.0
    %2229 = vmatpush1.msra.mxu0 0.0
    %2230 = vmatprep.subr.mxu0 0.0
    %2231 = vmatpush1.msra.mxu0 0.0
    %2232 = vmatprep.subr.mxu0 0.0
    %2233 = vmatpush1.msra.mxu0 0.0
    %2234 = vmatprep.subr.mxu0 0.0
    %2235 = vmatpush1.msra.mxu0 0.0
    %2236 = vmatprep.subr.mxu0 0.0
    %2237 = vmatpush1.msra.mxu0 0.0
    %2238 = vmatprep.subr.mxu0 0.0
    %2239 = vmatpush1.msra.mxu0 0.0
    %2240 = vmatprep.subr.mxu0 0.0
    %2241 = vmatpush1.msra.mxu0 0.0
    %2242 = vmatprep.subr.mxu0 0.0
    %2243 = vmatpush1.msra.mxu0 0.0
    %2244 = vmatprep.subr.mxu0 0.0
    %2245 = vmatpush1.msra.mxu0 0.0
    %2246 = vmatprep.subr.mxu0 0.0
    %2247 = vmatpush1.msra.mxu0 0.0
    %2248 = vmatprep.subr.mxu0 0.0
    %2249 = vmatpush1.msra.mxu0 0.0
    %2250 = vmatprep.subr.mxu0 0.0
    %2251 = vmatpush1.msra.mxu0 0.0
    %2252 = vmatprep.subr.mxu0 0.0
    %2253 = vmatpush1.msra.mxu0 0.0
    %2254 = vmatprep.subr.mxu0 0.0
    %2255 = vmatpush1.msra.mxu0 0.0
    %2256 = vmatprep.subr.mxu0 0.0
    %2257 = vmatpush1.msra.mxu0 0.0
    %2258 = vmatprep.subr.mxu0 0.0
    %2259 = vmatpush1.msra.mxu0 0.0
    %2260 = vmatprep.subr.mxu0 0.0
    %2261 = vmatpush1.msra.mxu0 0.0
    %2262 = vmatprep.subr.mxu0 0.0
    %2263 = vmatpush1.msra.mxu0 0.0
    %2264 = vmatprep.subr.mxu0 0.0
    %2265 = vmatpush1.msra.mxu0 0.0
    %2266 = vmatprep.subr.mxu0 0.0
    %2267 = vmatpush1.msra.mxu0 0.0
    %2268 = vmatprep.subr.mxu0 0.0
    %2269 = vmatpush1.msra.mxu0 0.0
    %2270 = vmatprep.subr.mxu0 0.0
    %2271 = vmatpush1.msra.mxu0 0.0
    %2272 = vmatprep.subr.mxu0 0.0
    %2273 = vmatpush1.msra.mxu0 0.0
    %2274 = vmatprep.mubr.f32.mxu0 0.0
    %2275 = vmatmul.mubr.f32.gmra.mrb[0].mxu0 %v2205
    %v2276 = vpop.f32.mrb[0].mxu0
    %v2277 = vadd.f32 0.0, %v2276
    %v2278 = vpop.f32.mrb[0].mxu0
    %2279 = vmatprep.mubr.f32.mxu0 0.0
    %2280 = vmatmul.mubr.f32.gmra.mrb[0].mxu0 %v2208
    %v2281 = vpop.f32.mrb[0].mxu0
    %v2282 = vadd.f32 0.0, %v2281
    %v2283 = vpop.f32.mrb[0].mxu0
    %2284 = vdwg.mxu0
    %2287 = vrot.lane.b32.xlu0 %v2277, 96
    %v2288 = vpop.permute.xlu0 %2287
    %2289 = vrot.lane.b32.xlu0 %v2282, 96
    %v2290 = vpop.permute.xlu0 %2289
    %v2293 = vadd.f32 %v1998, %v2288
    %v2294 = vadd.f32 %v1999, %v2290
    %2295 = vrot.lane.b32.xlu0 %v1699, 112
    %v2296 = vpop.permute.xlu0 %2295
    %2297 = vrot.lane.b32.xlu0 %v1704, 112
    %v2298 = vpop.permute.xlu0 %2297
    %2299 = vrot.lane.b32.xlu0 %v1699, 80
    %v2300 = vpop.permute.xlu0 %2299
    %2301 = vrot.lane.b32.xlu0 %v1704, 80
    %v2302 = vpop.permute.xlu0 %2301
    %v2303 = vsel %vm140, %v2296, 0
    %v2305 = vsel %vm140, %v2298, 0
    %v2307 = vsel %vm140, %v2300, 0
    %v2309 = vsel %vm140, %v2302, 0
    %2311 = vmatprep.subr.mxu0 0.0
    %2312 = vmatpush1.xpose.msra.mxu0 %v2307
    %2313 = vmatprep.subr.mxu0 0.0
    %2314 = vmatpush1.xpose.msra.mxu0 %v2309
    %2315 = vmatprep.subr.mxu0 0.0
    %2316 = vmatpush1.xpose.msra.mxu0 0.0
    %2317 = vmatprep.subr.mxu0 0.0
    %2318 = vmatpush1.xpose.msra.mxu0 0.0
    %2319 = vmatprep.subr.mxu0 0.0
    %2320 = vmatpush1.xpose.msra.mxu0 0.0
    %2321 = vmatprep.subr.mxu0 0.0
    %2322 = vmatpush1.xpose.msra.mxu0 0.0
    %2323 = vmatprep.subr.mxu0 0.0
    %2324 = vmatpush1.xpose.msra.mxu0 0.0
    %2325 = vmatprep.subr.mxu0 0.0
    %2326 = vmatpush1.xpose.msra.mxu0 0.0
    %2327 = vmatprep.subr.mxu0 0.0
    %2328 = vmatpush1.xpose.msra.mxu0 0.0
    %2329 = vmatprep.subr.mxu0 0.0
    %2330 = vmatpush1.xpose.msra.mxu0 0.0
    %2331 = vmatprep.subr.mxu0 0.0
    %2332 = vmatpush1.xpose.msra.mxu0 0.0
    %2333 = vmatprep.subr.mxu0 0.0
    %2334 = vmatpush1.xpose.msra.mxu0 0.0
    %2335 = vmatprep.subr.mxu0 0.0
    %2336 = vmatpush1.xpose.msra.mxu0 0.0
    %2337 = vmatprep.subr.mxu0 0.0
    %2338 = vmatpush1.xpose.msra.mxu0 0.0
    %2339 = vmatprep.subr.mxu0 0.0
    %2340 = vmatpush1.xpose.msra.mxu0 0.0
    %2341 = vmatprep.subr.mxu0 0.0
    %2342 = vmatpush1.xpose.msra.mxu0 0.0
    %2343 = vmatprep.subr.mxu0 0.0
    %2344 = vmatpush1.xpose.msra.mxu0 0.0
    %2345 = vmatprep.subr.mxu0 0.0
    %2346 = vmatpush1.xpose.msra.mxu0 0.0
    %2347 = vmatprep.subr.mxu0 0.0
    %2348 = vmatpush1.xpose.msra.mxu0 0.0
    %2349 = vmatprep.subr.mxu0 0.0
    %2350 = vmatpush1.xpose.msra.mxu0 0.0
    %2351 = vmatprep.subr.mxu0 0.0
    %2352 = vmatpush1.xpose.msra.mxu0 0.0
    %2353 = vmatprep.subr.mxu0 0.0
    %2354 = vmatpush1.xpose.msra.mxu0 0.0
    %2355 = vmatprep.subr.mxu0 0.0
    %2356 = vmatpush1.xpose.msra.mxu0 0.0
    %2357 = vmatprep.subr.mxu0 0.0
    %2358 = vmatpush1.xpose.msra.mxu0 0.0
    %2359 = vmatprep.subr.mxu0 0.0
    %2360 = vmatpush1.xpose.msra.mxu0 0.0
    %2361 = vmatprep.subr.mxu0 0.0
    %2362 = vmatpush1.xpose.msra.mxu0 0.0
    %2363 = vmatprep.subr.mxu0 0.0
    %2364 = vmatpush1.xpose.msra.mxu0 0.0
    %2365 = vmatprep.subr.mxu0 0.0
    %2366 = vmatpush1.xpose.msra.mxu0 0.0
    %2367 = vmatprep.subr.mxu0 0.0
    %2368 = vmatpush1.xpose.msra.mxu0 0.0
    %2369 = vmatprep.subr.mxu0 0.0
    %2370 = vmatpush1.xpose.msra.mxu0 0.0
    %2371 = vmatprep.subr.mxu0 0.0
    %2372 = vmatpush1.xpose.msra.mxu0 0.0
    %2373 = vmatprep.subr.mxu0 0.0
    %2374 = vmatpush1.xpose.msra.mxu0 0.0
    %2375 = vmatprep.mubr.f32.mxu0 0.0
    %2376 = vmatmul.mubr.f32.gmra.mrb[0].mxu0 %v2303
    %v2377 = vpop.f32.mrb[0].mxu0
    %v2378 = vadd.f32 %v33, %v2377
    %v2379 = vpop.f32.mrb[0].mxu0
    %2380 = vmatprep.mubr.f32.mxu0 0.0
    %2381 = vmatmul.mubr.f32.gmra.mrb[0].mxu0 %v2305
    %v2382 = vpop.f32.mrb[0].mxu0
    %v2383 = vadd.f32 %v34, %v2382
    %v2384 = vpop.f32.mrb[0].mxu0
    %2385 = vdwg.mxu0
    %v2386 = vsel %vm224, %v2378, -inf
    %2387 = vmax.xlane.f32.xlu0 %v2386
    %v2388 = vpop.xlane.xlu0 %2387
    %v2389 = vsel %vm224, %v2383, -inf
    %2390 = vmax.xlane.f32.xlu0 %v2389
    %v2391 = vpop.xlane.xlu0 %2390
    %v2392 = vsub.f32 %v2378, %v2388
    %v2393 = vsub.f32 %v2383, %v2391
    %v2394 = vmul.f32 %v2392, 1.442695
    %v2395 = vpow.pop %v2394
    %v2396 = vmul.f32 %v2393, 1.442695
    %v2397 = vpow.pop %v2396
    %v2398 = vsel %vm224, %v2395, 0.0
    %2399 = vadd.xlane.f32.xlu0 %v2398
    %v2400 = vpop.xlane.xlu0 %2399
    %v2401 = vsel %vm224, %v2397, 0.0
    %2402 = vadd.xlane.f32.xlu0 %v2401
    %v2403 = vpop.xlane.xlu0 %2402
    %v2404 = vrcp.pop %v2400
    %v2405 = vrcp.pop %v2403
    %v2406 = vmul.f32 %v2395, %v2404
    %v2407 = vmul.f32 %v2397, %v2405
    %2408 = vrot.lane.b32.xlu0 %v1699, 48
    %v2409 = vpop.permute.xlu0 %2408
    %2410 = vrot.lane.b32.xlu0 %v1704, 48
    %v2411 = vpop.permute.xlu0 %2410
    %v2415 = vsel %vm224, %v2406, 0
    %v2418 = vsel %vm224, %v2407, 0
    %2420 = vmatprep.subr.mxu0 0.0
    %2421 = vmatpush1.msra.mxu0 %v2409
    %2422 = vmatprep.subr.mxu0 0.0
    %2423 = vmatpush1.msra.mxu0 %v2411
    %2424 = vmatprep.subr.mxu0 0.0
    %2425 = vmatpush1.msra.mxu0 0.0
    %2426 = vmatprep.subr.mxu0 0.0
    %2427 = vmatpush1.msra.mxu0 0.0
    %2428 = vmatprep.subr.mxu0 0.0
    %2429 = vmatpush1.msra.mxu0 0.0
    %2430 = vmatprep.subr.mxu0 0.0
    %2431 = vmatpush1.msra.mxu0 0.0
    %2432 = vmatprep.subr.mxu0 0.0
    %2433 = vmatpush1.msra.mxu0 0.0
    %2434 = vmatprep.subr.mxu0 0.0
    %2435 = vmatpush1.msra.mxu0 0.0
    %2436 = vmatprep.subr.mxu0 0.0
    %2437 = vmatpush1.msra.mxu0 0.0
    %2438 = vmatprep.subr.mxu0 0.0
    %2439 = vmatpush1.msra.mxu0 0.0
    %2440 = vmatprep.subr.mxu0 0.0
    %2441 = vmatpush1.msra.mxu0 0.0
    %2442 = vmatprep.subr.mxu0 0.0
    %2443 = vmatpush1.msra.mxu0 0.0
    %2444 = vmatprep.subr.mxu0 0.0
    %2445 = vmatpush1.msra.mxu0 0.0
    %2446 = vmatprep.subr.mxu0 0.0
    %2447 = vmatpush1.msra.mxu0 0.0
    %2448 = vmatprep.subr.mxu0 0.0
    %2449 = vmatpush1.msra.mxu0 0.0
    %2450 = vmatprep.subr.mxu0 0.0
    %2451 = vmatpush1.msra.mxu0 0.0
    %2452 = vmatprep.subr.mxu0 0.0
    %2453 = vmatpush1.msra.mxu0 0.0
    %2454 = vmatprep.subr.mxu0 0.0
    %2455 = vmatpush1.msra.mxu0 0.0
    %2456 = vmatprep.subr.mxu0 0.0
    %2457 = vmatpush1.msra.mxu0 0.0
    %2458 = vmatprep.subr.mxu0 0.0
    %2459 = vmatpush1.msra.mxu0 0.0
    %2460 = vmatprep.subr.mxu0 0.0
    %2461 = vmatpush1.msra.mxu0 0.0
    %2462 = vmatprep.subr.mxu0 0.0
    %2463 = vmatpush1.msra.mxu0 0.0
    %2464 = vmatprep.subr.mxu0 0.0
    %2465 = vmatpush1.msra.mxu0 0.0
    %2466 = vmatprep.subr.mxu0 0.0
    %2467 = vmatpush1.msra.mxu0 0.0
    %2468 = vmatprep.subr.mxu0 0.0
    %2469 = vmatpush1.msra.mxu0 0.0
    %2470 = vmatprep.subr.mxu0 0.0
    %2471 = vmatpush1.msra.mxu0 0.0
    %2472 = vmatprep.subr.mxu0 0.0
    %2473 = vmatpush1.msra.mxu0 0.0
    %2474 = vmatprep.subr.mxu0 0.0
    %2475 = vmatpush1.msra.mxu0 0.0
    %2476 = vmatprep.subr.mxu0 0.0
    %2477 = vmatpush1.msra.mxu0 0.0
    %2478 = vmatprep.subr.mxu0 0.0
    %2479 = vmatpush1.msra.mxu0 0.0
    %2480 = vmatprep.subr.mxu0 0.0
    %2481 = vmatpush1.msra.mxu0 0.0
    %2482 = vmatprep.subr.mxu0 0.0
    %2483 = vmatpush1.msra.mxu0 0.0
    %2484 = vmatprep.mubr.f32.mxu0 0.0
    %2485 = vmatmul.mubr.f32.gmra.mrb[0].mxu0 %v2415
    %v2486 = vpop.f32.mrb[0].mxu0
    %v2487 = vadd.f32 0.0, %v2486
    %v2488 = vpop.f32.mrb[0].mxu0
    %2489 = vmatprep.mubr.f32.mxu0 0.0
    %2490 = vmatmul.mubr.f32.gmra.mrb[0].mxu0 %v2418
    %v2491 = vpop.f32.mrb[0].mxu0
    %v2492 = vadd.f32 0.0, %v2491
    %v2493 = vpop.f32.mrb[0].mxu0
    %2494 = vdwg.mxu0
    %2496 = vrot.lane.b32.xlu0 %v1608, 32
    %v2497 = vpop.permute.xlu0 %2496
    %v2500 = vsel %vm140, %v2487, 0
    %v2503 = vsel %vm140, %v2492, 0
    %2505 = vmatprep.subr.mxu0 0.0
    %2506 = vmatpush1.msra.mxu0 %v2497
    %2507 = vmatprep.subr.mxu0 0.0
    %2508 = vmatpush1.msra.mxu0 0.0
    %2509 = vmatprep.subr.mxu0 0.0
    %2510 = vmatpush1.msra.mxu0 0.0
    %2511 = vmatprep.subr.mxu0 0.0
    %2512 = vmatpush1.msra.mxu0 0.0
    %2513 = vmatprep.subr.mxu0 0.0
    %2514 = vmatpush1.msra.mxu0 0.0
    %2515 = vmatprep.subr.mxu0 0.0
    %2516 = vmatpush1.msra.mxu0 0.0
    %2517 = vmatprep.subr.mxu0 0.0
    %2518 = vmatpush1.msra.mxu0 0.0
    %2519 = vmatprep.subr.mxu0 0.0
    %2520 = vmatpush1.msra.mxu0 0.0
    %2521 = vmatprep.subr.mxu0 0.0
    %2522 = vmatpush1.msra.mxu0 0.0
    %2523 = vmatprep.subr.mxu0 0.0
    %2524 = vmatpush1.msra.mxu0 0.0
    %2525 = vmatprep.subr.mxu0 0.0
    %2526 = vmatpush1.msra.mxu0 0.0
    %2527 = vmatprep.subr.mxu0 0.0
    %2528 = vmatpush1.msra.mxu0 0.0
    %2529 = vmatprep.subr.mxu0 0.0
    %2530 = vmatpush1.msra.mxu0 0.0
    %2531 = vmatprep.subr.mxu0 0.0
    %2532 = vmatpush1.msra.mxu0 0.0
    %2533 = vmatprep.subr.mxu0 0.0
    %2534 = vmatpush1.msra.mxu0 0.0
    %2535 = vmatprep.subr.mxu0 0.0
    %2536 = vmatpush1.msra.mxu0 0.0
    %2537 = vmatprep.subr.mxu0 0.0
    %2538 = vmatpush1.msra.mxu0 0.0
    %2539 = vmatprep.subr.mxu0 0.0
    %2540 = vmatpush1.msra.mxu0 0.0
    %2541 = vmatprep.subr.mxu0 0.0
    %2542 = vmatpush1.msra.mxu0 0.0
    %2543 = vmatprep.subr.mxu0 0.0
    %2544 = vmatpush1.msra.mxu0 0.0
    %2545 = vmatprep.subr.mxu0 0.0
    %2546 = vmatpush1.msra.mxu0 0.0
    %2547 = vmatprep.subr.mxu0 0.0
    %2548 = vmatpush1.msra.mxu0 0.0
    %2549 = vmatprep.subr.mxu0 0.0
    %2550 = vmatpush1.msra.mxu0 0.0
    %2551 = vmatprep.subr.mxu0 0.0
    %2552 = vmatpush1.msra.mxu0 0.0
    %2553 = vmatprep.subr.mxu0 0.0
    %2554 = vmatpush1.msra.mxu0 0.0
    %2555 = vmatprep.subr.mxu0 0.0
    %2556 = vmatpush1.msra.mxu0 0.0
    %2557 = vmatprep.subr.mxu0 0.0
    %2558 = vmatpush1.msra.mxu0 0.0
    %2559 = vmatprep.subr.mxu0 0.0
    %2560 = vmatpush1.msra.mxu0 0.0
    %2561 = vmatprep.subr.mxu0 0.0
    %2562 = vmatpush1.msra.mxu0 0.0
    %2563 = vmatprep.subr.mxu0 0.0
    %2564 = vmatpush1.msra.mxu0 0.0
    %2565 = vmatprep.subr.mxu0 0.0
    %2566 = vmatpush1.msra.mxu0 0.0
    %2567 = vmatprep.subr.mxu0 0.0
    %2568 = vmatpush1.msra.mxu0 0.0
    %2569 = vmatprep.mubr.f32.mxu0 0.0
    %2570 = vmatmul.mubr.f32.gmra.mrb[0].mxu0 %v2500
    %v2571 = vpop.f32.mrb[0].mxu0
    %v2572 = vadd.f32 0.0, %v2571
    %v2573 = vpop.f32.mrb[0].mxu0
    %2574 = vmatprep.mubr.f32.mxu0 0.0
    %2575 = vmatmul.mubr.f32.gmra.mrb[0].mxu0 %v2503
    %v2576 = vpop.f32.mrb[0].mxu0
    %v2577 = vadd.f32 0.0, %v2576
    %v2578 = vpop.f32.mrb[0].mxu0
    %2579 = vdwg.mxu0
    %2582 = vrot.lane.b32.xlu0 %v2572, 96
    %v2583 = vpop.permute.xlu0 %2582
    %2584 = vrot.lane.b32.xlu0 %v2577, 96
    %v2585 = vpop.permute.xlu0 %2584
    %v2588 = vadd.f32 %v2293, %v2583
    %v2589 = vadd.f32 %v2294, %v2585
    %2590 = vrot.lane.b32.xlu0 %v1699, 104
    %v2591 = vpop.permute.xlu0 %2590
    %2592 = vrot.lane.b32.xlu0 %v1704, 104
    %v2593 = vpop.permute.xlu0 %2592
    %2594 = vrot.lane.b32.xlu0 %v1699, 72
    %v2595 = vpop.permute.xlu0 %2594
    %2596 = vrot.lane.b32.xlu0 %v1704, 72
    %v2597 = vpop.permute.xlu0 %2596
    %v2598 = vsel %vm140, %v2591, 0
    %v2600 = vsel %vm140, %v2593, 0
    %v2602 = vsel %vm140, %v2595, 0
    %v2604 = vsel %vm140, %v2597, 0
    %2606 = vmatprep.subr.mxu0 0.0
    %2607 = vmatpush1.xpose.msra.mxu0 %v2602
    %2608 = vmatprep.subr.mxu0 0.0
    %2609 = vmatpush1.xpose.msra.mxu0 %v2604
    %2610 = vmatprep.subr.mxu0 0.0
    %2611 = vmatpush1.xpose.msra.mxu0 0.0
    %2612 = vmatprep.subr.mxu0 0.0
    %2613 = vmatpush1.xpose.msra.mxu0 0.0
    %2614 = vmatprep.subr.mxu0 0.0
    %2615 = vmatpush1.xpose.msra.mxu0 0.0
    %2616 = vmatprep.subr.mxu0 0.0
    %2617 = vmatpush1.xpose.msra.mxu0 0.0
    %2618 = vmatprep.subr.mxu0 0.0
    %2619 = vmatpush1.xpose.msra.mxu0 0.0
    %2620 = vmatprep.subr.mxu0 0.0
    %2621 = vmatpush1.xpose.msra.mxu0 0.0
    %2622 = vmatprep.subr.mxu0 0.0
    %2623 = vmatpush1.xpose.msra.mxu0 0.0
    %2624 = vmatprep.subr.mxu0 0.0
    %2625 = vmatpush1.xpose.msra.mxu0 0.0
    %2626 = vmatprep.subr.mxu0 0.0
    %2627 = vmatpush1.xpose.msra.mxu0 0.0
    %2628 = vmatprep.subr.mxu0 0.0
    %2629 = vmatpush1.xpose.msra.mxu0 0.0
    %2630 = vmatprep.subr.mxu0 0.0
    %2631 = vmatpush1.xpose.msra.mxu0 0.0
    %2632 = vmatprep.subr.mxu0 0.0
    %2633 = vmatpush1.xpose.msra.mxu0 0.0
    %2634 = vmatprep.subr.mxu0 0.0
    %2635 = vmatpush1.xpose.msra.mxu0 0.0
    %2636 = vmatprep.subr.mxu0 0.0
    %2637 = vmatpush1.xpose.msra.mxu0 0.0
    %2638 = vmatprep.subr.mxu0 0.0
    %2639 = vmatpush1.xpose.msra.mxu0 0.0
    %2640 = vmatprep.subr.mxu0 0.0
    %2641 = vmatpush1.xpose.msra.mxu0 0.0
    %2642 = vmatprep.subr.mxu0 0.0
    %2643 = vmatpush1.xpose.msra.mxu0 0.0
    %2644 = vmatprep.subr.mxu0 0.0
    %2645 = vmatpush1.xpose.msra.mxu0 0.0
    %2646 = vmatprep.subr.mxu0 0.0
    %2647 = vmatpush1.xpose.msra.mxu0 0.0
    %2648 = vmatprep.subr.mxu0 0.0
    %2649 = vmatpush1.xpose.msra.mxu0 0.0
    %2650 = vmatprep.subr.mxu0 0.0
    %2651 = vmatpush1.xpose.msra.mxu0 0.0
    %2652 = vmatprep.subr.mxu0 0.0
    %2653 = vmatpush1.xpose.msra.mxu0 0.0
    %2654 = vmatprep.subr.mxu0 0.0
    %2655 = vmatpush1.xpose.msra.mxu0 0.0
    %2656 = vmatprep.subr.mxu0 0.0
    %2657 = vmatpush1.xpose.msra.mxu0 0.0
    %2658 = vmatprep.subr.mxu0 0.0
    %2659 = vmatpush1.xpose.msra.mxu0 0.0
    %2660 = vmatprep.subr.mxu0 0.0
    %2661 = vmatpush1.xpose.msra.mxu0 0.0
    %2662 = vmatprep.subr.mxu0 0.0
    %2663 = vmatpush1.xpose.msra.mxu0 0.0
    %2664 = vmatprep.subr.mxu0 0.0
    %2665 = vmatpush1.xpose.msra.mxu0 0.0
    %2666 = vmatprep.subr.mxu0 0.0
    %2667 = vmatpush1.xpose.msra.mxu0 0.0
    %2668 = vmatprep.subr.mxu0 0.0
    %2669 = vmatpush1.xpose.msra.mxu0 0.0
    %2670 = vmatprep.mubr.f32.mxu0 0.0
    %2671 = vmatmul.mubr.f32.gmra.mrb[0].mxu0 %v2598
    %v2672 = vpop.f32.mrb[0].mxu0
    %v2673 = vadd.f32 %v33, %v2672
    %v2674 = vpop.f32.mrb[0].mxu0
    %2675 = vmatprep.mubr.f32.mxu0 0.0
    %2676 = vmatmul.mubr.f32.gmra.mrb[0].mxu0 %v2600
    %v2677 = vpop.f32.mrb[0].mxu0
    %v2678 = vadd.f32 %v34, %v2677
    %v2679 = vpop.f32.mrb[0].mxu0
    %2680 = vdwg.mxu0
    %v2681 = vsel %vm224, %v2673, -inf
    %2682 = vmax.xlane.f32.xlu0 %v2681
    %v2683 = vpop.xlane.xlu0 %2682
    %v2684 = vsel %vm224, %v2678, -inf
    %2685 = vmax.xlane.f32.xlu0 %v2684
    %v2686 = vpop.xlane.xlu0 %2685
    %v2687 = vsub.f32 %v2673, %v2683
    %v2688 = vsub.f32 %v2678, %v2686
    %v2689 = vmul.f32 %v2687, 1.442695
    %v2690 = vpow.pop %v2689
    %v2691 = vmul.f32 %v2688, 1.442695
    %v2692 = vpow.pop %v2691
    %v2693 = vsel %vm224, %v2690, 0.0
    %2694 = vadd.xlane.f32.xlu0 %v2693
    %v2695 = vpop.xlane.xlu0 %2694
    %v2696 = vsel %vm224, %v2692, 0.0
    %2697 = vadd.xlane.f32.xlu0 %v2696
    %v2698 = vpop.xlane.xlu0 %2697
    %v2699 = vrcp.pop %v2695
    %v2700 = vrcp.pop %v2698
    %v2701 = vmul.f32 %v2690, %v2699
    %v2702 = vmul.f32 %v2692, %v2700
    %2703 = vrot.lane.b32.xlu0 %v1699, 40
    %v2704 = vpop.permute.xlu0 %2703
    %2705 = vrot.lane.b32.xlu0 %v1704, 40
    %v2706 = vpop.permute.xlu0 %2705
    %v2710 = vsel %vm224, %v2701, 0
    %v2713 = vsel %vm224, %v2702, 0
    %2715 = vmatprep.subr.mxu0 0.0
    %2716 = vmatpush1.msra.mxu0 %v2704
    %2717 = vmatprep.subr.mxu0 0.0
    %2718 = vmatpush1.msra.mxu0 %v2706
    %2719 = vmatprep.subr.mxu0 0.0
    %2720 = vmatpush1.msra.mxu0 0.0
    %2721 = vmatprep.subr.mxu0 0.0
    %2722 = vmatpush1.msra.mxu0 0.0
    %2723 = vmatprep.subr.mxu0 0.0
    %2724 = vmatpush1.msra.mxu0 0.0
    %2725 = vmatprep.subr.mxu0 0.0
    %2726 = vmatpush1.msra.mxu0 0.0
    %2727 = vmatprep.subr.mxu0 0.0
    %2728 = vmatpush1.msra.mxu0 0.0
    %2729 = vmatprep.subr.mxu0 0.0
    %2730 = vmatpush1.msra.mxu0 0.0
    %2731 = vmatprep.subr.mxu0 0.0
    %2732 = vmatpush1.msra.mxu0 0.0
    %2733 = vmatprep.subr.mxu0 0.0
    %2734 = vmatpush1.msra.mxu0 0.0
    %2735 = vmatprep.subr.mxu0 0.0
    %2736 = vmatpush1.msra.mxu0 0.0
    %2737 = vmatprep.subr.mxu0 0.0
    %2738 = vmatpush1.msra.mxu0 0.0
    %2739 = vmatprep.subr.mxu0 0.0
    %2740 = vmatpush1.msra.mxu0 0.0
    %2741 = vmatprep.subr.mxu0 0.0
    %2742 = vmatpush1.msra.mxu0 0.0
    %2743 = vmatprep.subr.mxu0 0.0
    %2744 = vmatpush1.msra.mxu0 0.0
    %2745 = vmatprep.subr.mxu0 0.0
    %2746 = vmatpush1.msra.mxu0 0.0
    %2747 = vmatprep.subr.mxu0 0.0
    %2748 = vmatpush1.msra.mxu0 0.0
    %2749 = vmatprep.subr.mxu0 0.0
    %2750 = vmatpush1.msra.mxu0 0.0
    %2751 = vmatprep.subr.mxu0 0.0
    %2752 = vmatpush1.msra.mxu0 0.0
    %2753 = vmatprep.subr.mxu0 0.0
    %2754 = vmatpush1.msra.mxu0 0.0
    %2755 = vmatprep.subr.mxu0 0.0
    %2756 = vmatpush1.msra.mxu0 0.0
    %2757 = vmatprep.subr.mxu0 0.0
    %2758 = vmatpush1.msra.mxu0 0.0
    %2759 = vmatprep.subr.mxu0 0.0
    %2760 = vmatpush1.msra.mxu0 0.0
    %2761 = vmatprep.subr.mxu0 0.0
    %2762 = vmatpush1.msra.mxu0 0.0
    %2763 = vmatprep.subr.mxu0 0.0
    %2764 = vmatpush1.msra.mxu0 0.0
    %2765 = vmatprep.subr.mxu0 0.0
    %2766 = vmatpush1.msra.mxu0 0.0
    %2767 = vmatprep.subr.mxu0 0.0
    %2768 = vmatpush1.msra.mxu0 0.0
    %2769 = vmatprep.subr.mxu0 0.0
    %2770 = vmatpush1.msra.mxu0 0.0
    %2771 = vmatprep.subr.mxu0 0.0
    %2772 = vmatpush1.msra.mxu0 0.0
    %2773 = vmatprep.subr.mxu0 0.0
    %2774 = vmatpush1.msra.mxu0 0.0
    %2775 = vmatprep.subr.mxu0 0.0
    %2776 = vmatpush1.msra.mxu0 0.0
    %2777 = vmatprep.subr.mxu0 0.0
    %2778 = vmatpush1.msra.mxu0 0.0
    %2779 = vmatprep.mubr.f32.mxu0 0.0
    %2780 = vmatmul.mubr.f32.gmra.mrb[0].mxu0 %v2710
    %v2781 = vpop.f32.mrb[0].mxu0
    %v2782 = vadd.f32 0.0, %v2781
    %v2783 = vpop.f32.mrb[0].mxu0
    %2784 = vmatprep.mubr.f32.mxu0 0.0
    %2785 = vmatmul.mubr.f32.gmra.mrb[0].mxu0 %v2713
    %v2786 = vpop.f32.mrb[0].mxu0
    %v2787 = vadd.f32 0.0, %v2786
    %v2788 = vpop.f32.mrb[0].mxu0
    %2789 = vdwg.mxu0
    %2791 = vrot.lane.b32.xlu0 %v1609, 32
    %v2792 = vpop.permute.xlu0 %2791
    %v2795 = vsel %vm140, %v2782, 0
    %v2798 = vsel %vm140, %v2787, 0
    %2800 = vmatprep.subr.mxu0 0.0
    %2801 = vmatpush1.msra.mxu0 %v2792
    %2802 = vmatprep.subr.mxu0 0.0
    %2803 = vmatpush1.msra.mxu0 0.0
    %2804 = vmatprep.subr.mxu0 0.0
    %2805 = vmatpush1.msra.mxu0 0.0
    %2806 = vmatprep.subr.mxu0 0.0
    %2807 = vmatpush1.msra.mxu0 0.0
    %2808 = vmatprep.subr.mxu0 0.0
    %2809 = vmatpush1.msra.mxu0 0.0
    %2810 = vmatprep.subr.mxu0 0.0
    %2811 = vmatpush1.msra.mxu0 0.0
    %2812 = vmatprep.subr.mxu0 0.0
    %2813 = vmatpush1.msra.mxu0 0.0
    %2814 = vmatprep.subr.mxu0 0.0
    %2815 = vmatpush1.msra.mxu0 0.0
    %2816 = vmatprep.subr.mxu0 0.0
    %2817 = vmatpush1.msra.mxu0 0.0
    %2818 = vmatprep.subr.mxu0 0.0
    %2819 = vmatpush1.msra.mxu0 0.0
    %2820 = vmatprep.subr.mxu0 0.0
    %2821 = vmatpush1.msra.mxu0 0.0
    %2822 = vmatprep.subr.mxu0 0.0
    %2823 = vmatpush1.msra.mxu0 0.0
    %2824 = vmatprep.subr.mxu0 0.0
    %2825 = vmatpush1.msra.mxu0 0.0
    %2826 = vmatprep.subr.mxu0 0.0
    %2827 = vmatpush1.msra.mxu0 0.0
    %2828 = vmatprep.subr.mxu0 0.0
    %2829 = vmatpush1.msra.mxu0 0.0
    %2830 = vmatprep.subr.mxu0 0.0
    %2831 = vmatpush1.msra.mxu0 0.0
    %2832 = vmatprep.subr.mxu0 0.0
    %2833 = vmatpush1.msra.mxu0 0.0
    %2834 = vmatprep.subr.mxu0 0.0
    %2835 = vmatpush1.msra.mxu0 0.0
    %2836 = vmatprep.subr.mxu0 0.0
    %2837 = vmatpush1.msra.mxu0 0.0
    %2838 = vmatprep.subr.mxu0 0.0
    %2839 = vmatpush1.msra.mxu0 0.0
    %2840 = vmatprep.subr.mxu0 0.0
    %2841 = vmatpush1.msra.mxu0 0.0
    %2842 = vmatprep.subr.mxu0 0.0
    %2843 = vmatpush1.msra.mxu0 0.0
    %2844 = vmatprep.subr.mxu0 0.0
    %2845 = vmatpush1.msra.mxu0 0.0
    %2846 = vmatprep.subr.mxu0 0.0
    %2847 = vmatpush1.msra.mxu0 0.0
    %2848 = vmatprep.subr.mxu0 0.0
    %2849 = vmatpush1.msra.mxu0 0.0
    %2850 = vmatprep.subr.mxu0 0.0
    %2851 = vmatpush1.msra.mxu0 0.0
    %2852 = vmatprep.subr.mxu0 0.0
    %2853 = vmatpush1.msra.mxu0 0.0
    %2854 = vmatprep.subr.mxu0 0.0
    %2855 = vmatpush1.msra.mxu0 0.0
    %2856 = vmatprep.subr.mxu0 0.0
    %2857 = vmatpush1.msra.mxu0 0.0
    %2858 = vmatprep.subr.mxu0 0.0
    %2859 = vmatpush1.msra.mxu0 0.0
    %2860 = vmatprep.subr.mxu0 0.0
    %2861 = vmatpush1.msra.mxu0 0.0
    %2862 = vmatprep.subr.mxu0 0.0
    %2863 = vmatpush1.msra.mxu0 0.0
    %2864 = vmatprep.mubr.f32.mxu0 0.0
    %2865 = vmatmul.mubr.f32.gmra.mrb[0].mxu0 %v2795
    %v2866 = vpop.f32.mrb[0].mxu0
    %v2867 = vadd.f32 0.0, %v2866
    %v2868 = vpop.f32.mrb[0].mxu0
    %2869 = vmatprep.mubr.f32.mxu0 0.0
    %2870 = vmatmul.mubr.f32.gmra.mrb[0].mxu0 %v2798
    %v2871 = vpop.f32.mrb[0].mxu0
    %v2872 = vadd.f32 0.0, %v2871
    %v2873 = vpop.f32.mrb[0].mxu0
    %2874 = vdwg.mxu0
    %2877 = vrot.lane.b32.xlu0 %v2867, 96
    %v2878 = vpop.permute.xlu0 %2877
    %2879 = vrot.lane.b32.xlu0 %v2872, 96
    %v2880 = vpop.permute.xlu0 %2879
    %v2883 = vadd.f32 %v2588, %v2878
    %v2884 = vadd.f32 %v2589, %v2880
    %2887 = vrot.lane.b32.xlu0 %v2883, 32
    %v2888 = vpop.permute.xlu0 %2887
    %2889 = vrot.lane.b32.xlu0 %v2884, 32
    %v2890 = vpop.permute.xlu0 %2889
    %v2893 = vadd.f32 %v1604, %v2888
    %v2894 = vadd.f32 %v1605, %v2890
    %v2895 = vsel %vm52, %v2893, 0.0
    %2896 = vadd.xlane.f32.xlu0 %v2895
    %v2897 = vpop.xlane.xlu0 %2896
    %v2898 = vsel %vm52, %v2894, 0.0
    %2899 = vadd.xlane.f32.xlu0 %v2898
    %v2900 = vpop.xlane.xlu0 %2899
    %v2901 = vmul.f32 %v2897, %v1330
    %v2902 = vmul.f32 %v2900, %v1330
    %v2903 = vsub.f32 %v2893, %v2901
    %v2904 = vsub.f32 %v2894, %v2902
    %v2905 = vmul.f32 %v2903, %v2903
    %v2906 = vmul.f32 %v2904, %v2904
    %v2907 = vsel %vm52, %v2905, 0.0
    %2908 = vadd.xlane.f32.xlu0 %v2907
    %v2909 = vpop.xlane.xlu0 %2908
    %v2910 = vsel %vm52, %v2906, 0.0
    %2911 = vadd.xlane.f32.xlu0 %v2910
    %v2912 = vpop.xlane.xlu0 %2911
    %v2913 = vmul.f32 %v2909, %v1330
    %v2914 = vmul.f32 %v2912, %v1330
    %v2915 = vadd.f32 %v2913, 1e-05
    %v2916 = vadd.f32 %v2914, 1e-05
    %v2917 = vrsqrt.pop %v2915
    %v2918 = vrsqrt.pop %v2916
    %v2919 = vmul.f32 %v2903, %v2917
    %v2920 = vmul.f32 %v2904, %v2918
    %v2921 = vlaneseq
    %v2922 = vshrl.u32 %v2921, 7
    %v2923 = vsub.s32 4, %v2922
    %v2924 = vrot.slane %v35, %v2923
    %v2925 = vmul.f32 %v2919, %v2924
    %v2926 = vmul.f32 %v2920, %v2924
    %2928 = vrot.lane.b32.xlu0 %v2924, 96
    %v2929 = vpop.permute.xlu0 %2928
    %v2931 = vadd.f32 %v2925, %v2929
    %v2932 = vadd.f32 %v2926, %v2929
    %2933 = vrot.lane.b32.xlu0 %v2924, 64
    %v2934 = vpop.permute.xlu0 %2933
    %v2937 = vsel %vm52, %v2931, 0
    %v2940 = vsel %vm52, %v2932, 0
    %2942 = vmatprep.subr.mxu0 0.0
    %2943 = vmatpush1.msra.mxu0 %v1610
    %2944 = vmatprep.subr.mxu0 0.0
    %2945 = vmatpush1.msra.mxu0 %v1611
    %2946 = vmatprep.subr.mxu0 0.0
    %2947 = vmatpush1.msra.mxu0 %v1612
    %2948 = vmatprep.subr.mxu0 0.0
    %2949 = vmatpush1.msra.mxu0 %v1613
    %2950 = vmatprep.subr.mxu0 0.0
    %2951 = vmatpush1.msra.mxu0 0.0
    %2952 = vmatprep.subr.mxu0 0.0
    %2953 = vmatpush1.msra.mxu0 0.0
    %2954 = vmatprep.subr.mxu0 0.0
    %2955 = vmatpush1.msra.mxu0 0.0
    %2956 = vmatprep.subr.mxu0 0.0
    %2957 = vmatpush1.msra.mxu0 0.0
    %2958 = vmatprep.subr.mxu0 0.0
    %2959 = vmatpush1.msra.mxu0 0.0
    %2960 = vmatprep.subr.mxu0 0.0
    %2961 = vmatpush1.msra.mxu0 0.0
    %2962 = vmatprep.subr.mxu0 0.0
    %2963 = vmatpush1.msra.mxu0 0.0
    %2964 = vmatprep.subr.mxu0 0.0
    %2965 = vmatpush1.msra.mxu0 0.0
    %2966 = vmatprep.subr.mxu0 0.0
    %2967 = vmatpush1.msra.mxu0 0.0
    %2968 = vmatprep.subr.mxu0 0.0
    %2969 = vmatpush1.msra.mxu0 0.0
    %2970 = vmatprep.subr.mxu0 0.0
    %2971 = vmatpush1.msra.mxu0 0.0
    %2972 = vmatprep.subr.mxu0 0.0
    %2973 = vmatpush1.msra.mxu0 0.0
    %2974 = vmatprep.subr.mxu0 0.0
    %2975 = vmatpush1.msra.mxu0 0.0
    %2976 = vmatprep.subr.mxu0 0.0
    %2977 = vmatpush1.msra.mxu0 0.0
    %2978 = vmatprep.subr.mxu0 0.0
    %2979 = vmatpush1.msra.mxu0 0.0
    %2980 = vmatprep.subr.mxu0 0.0
    %2981 = vmatpush1.msra.mxu0 0.0
    %2982 = vmatprep.subr.mxu0 0.0
    %2983 = vmatpush1.msra.mxu0 0.0
    %2984 = vmatprep.subr.mxu0 0.0
    %2985 = vmatpush1.msra.mxu0 0.0
    %2986 = vmatprep.subr.mxu0 0.0
    %2987 = vmatpush1.msra.mxu0 0.0
    %2988 = vmatprep.subr.mxu0 0.0
    %2989 = vmatpush1.msra.mxu0 0.0
    %2990 = vmatprep.subr.mxu0 0.0
    %2991 = vmatpush1.msra.mxu0 0.0
    %2992 = vmatprep.subr.mxu0 0.0
    %2993 = vmatpush1.msra.mxu0 0.0
    %2994 = vmatprep.subr.mxu0 0.0
    %2995 = vmatpush1.msra.mxu0 0.0
    %2996 = vmatprep.subr.mxu0 0.0
    %2997 = vmatpush1.msra.mxu0 0.0
    %2998 = vmatprep.subr.mxu0 0.0
    %2999 = vmatpush1.msra.mxu0 0.0
    %3000 = vmatprep.subr.mxu0 0.0
    %3001 = vmatpush1.msra.mxu0 0.0
    %3002 = vmatprep.subr.mxu0 0.0
    %3003 = vmatpush1.msra.mxu0 0.0
    %3004 = vmatprep.subr.mxu0 0.0
    %3005 = vmatpush1.msra.mxu0 0.0
    %3006 = vmatprep.mubr.f32.mxu0 0.0
    %3007 = vmatmul.mubr.f32.gmra.mrb[0].mxu0 %v2937
    %v3008 = vpop.f32.mrb[0].mxu0
    %v3009 = vadd.f32 %v2934, %v3008
    %v3010 = vpop.f32.mrb[0].mxu0
    %3011 = vmatprep.mubr.f32.mxu0 0.0
    %3012 = vmatmul.mubr.f32.gmra.mrb[0].mxu0 %v2940
    %v3013 = vpop.f32.mrb[0].mxu0
    %v3014 = vadd.f32 %v2934, %v3013
    %v3015 = vpop.f32.mrb[0].mxu0
    %3016 = vdwg.mxu0
    %v3017 = vmax.f32 %v3009, 0.0
    %v3018 = vmax.f32 %v3014, 0.0
    %v3019 = vlaneseq
    %v3020 = vshrl.u32 %v3019, 7
    %v3021 = vsub.s32 5, %v3020
    %v3022 = vrot.slane %v35, %v3021
    %3031 = vrot.lane.b32.xlu0 %v1614, 64
    %v3032 = vpop.permute.xlu0 %3031
    %3033 = vrot.lane.b32.xlu0 %v1615, 64
    %v3034 = vpop.permute.xlu0 %3033
    %3035 = vrot.lane.b32.xlu0 %v1616, 64
    %v3036 = vpop.permute.xlu0 %3035
    %3037 = vrot.lane.b32.xlu0 %v1617, 64
    %v3038 = vpop.permute.xlu0 %3037
    %3039 = vrot.lane.b32.xlu0 %v1618, 64
    %v3040 = vpop.permute.xlu0 %3039
    %3041 = vrot.lane.b32.xlu0 %v1619, 64
    %v3042 = vpop.permute.xlu0 %3041
    %3043 = vrot.lane.b32.xlu0 %v1620, 64
    %v3044 = vpop.permute.xlu0 %3043
    %3045 = vrot.lane.b32.xlu0 %v1621, 64
    %v3046 = vpop.permute.xlu0 %3045
    %v3056 = vsel %vm1485, %v3017, 0
    %v3059 = vsel %vm1485, %v3018, 0
    %3061 = vmatprep.subr.mxu0 0.0
    %3062 = vmatpush1.msra.mxu0 %v3032
    %3063 = vmatprep.subr.mxu0 0.0
    %3064 = vmatpush1.msra.mxu0 %v3034
    %3065 = vmatprep.subr.mxu0 0.0
    %3066 = vmatpush1.msra.mxu0 %v3036
    %3067 = vmatprep.subr.mxu0 0.0
    %3068 = vmatpush1.msra.mxu0 %v3038
    %3069 = vmatprep.subr.mxu0 0.0
    %3070 = vmatpush1.msra.mxu0 %v3040
    %3071 = vmatprep.subr.mxu0 0.0
    %3072 = vmatpush1.msra.mxu0 %v3042
    %3073 = vmatprep.subr.mxu0 0.0
    %3074 = vmatpush1.msra.mxu0 %v3044
    %3075 = vmatprep.subr.mxu0 0.0
    %3076 = vmatpush1.msra.mxu0 %v3046
    %3077 = vmatprep.subr.mxu0 0.0
    %3078 = vmatpush1.msra.mxu0 0.0
    %3079 = vmatprep.subr.mxu0 0.0
    %3080 = vmatpush1.msra.mxu0 0.0
    %3081 = vmatprep.subr.mxu0 0.0
    %3082 = vmatpush1.msra.mxu0 0.0
    %3083 = vmatprep.subr.mxu0 0.0
    %3084 = vmatpush1.msra.mxu0 0.0
    %3085 = vmatprep.subr.mxu0 0.0
    %3086 = vmatpush1.msra.mxu0 0.0
    %3087 = vmatprep.subr.mxu0 0.0
    %3088 = vmatpush1.msra.mxu0 0.0
    %3089 = vmatprep.subr.mxu0 0.0
    %3090 = vmatpush1.msra.mxu0 0.0
    %3091 = vmatprep.subr.mxu0 0.0
    %3092 = vmatpush1.msra.mxu0 0.0
    %3093 = vmatprep.subr.mxu0 0.0
    %3094 = vmatpush1.msra.mxu0 0.0
    %3095 = vmatprep.subr.mxu0 0.0
    %3096 = vmatpush1.msra.mxu0 0.0
    %3097 = vmatprep.subr.mxu0 0.0
    %3098 = vmatpush1.msra.mxu0 0.0
    %3099 = vmatprep.subr.mxu0 0.0
    %3100 = vmatpush1.msra.mxu0 0.0
    %3101 = vmatprep.subr.mxu0 0.0
    %3102 = vmatpush1.msra.mxu0 0.0
    %3103 = vmatprep.subr.mxu0 0.0
    %3104 = vmatpush1.msra.mxu0 0.0
    %3105 = vmatprep.subr.mxu0 0.0
    %3106 = vmatpush1.msra.mxu0 0.0
    %3107 = vmatprep.subr.mxu0 0.0
    %3108 = vmatpush1.msra.mxu0 0.0
    %3109 = vmatprep.subr.mxu0 0.0
    %3110 = vmatpush1.msra.mxu0 0.0
    %3111 = vmatprep.subr.mxu0 0.0
    %3112 = vmatpush1.msra.mxu0 0.0
    %3113 = vmatprep.subr.mxu0 0.0
    %3114 = vmatpush1.msra.mxu0 0.0
    %3115 = vmatprep.subr.mxu0 0.0
    %3116 = vmatpush1.msra.mxu0 0.0
    %3117 = vmatprep.subr.mxu0 0.0
    %3118 = vmatpush1.msra.mxu0 0.0
    %3119 = vmatprep.subr.mxu0 0.0
    %3120 = vmatpush1.msra.mxu0 0.0
    %3121 = vmatprep.subr.mxu0 0.0
    %3122 = vmatpush1.msra.mxu0 0.0
    %3123 = vmatprep.subr.mxu0 0.0
    %3124 = vmatpush1.msra.mxu0 0.0
    %3125 = vmatprep.mubr.f32.mxu0 0.0
    %3126 = vmatmul.mubr.f32.gmra.mrb[0].mxu0 %v3056
    %v3127 = vpop.f32.mrb[0].mxu0
    %v3128 = vadd.f32 %v3022, %v3127
    %v3129 = vpop.f32.mrb[0].mxu0
    %3130 = vmatprep.mubr.f32.mxu0 0.0
    %3131 = vmatmul.mubr.f32.gmra.mrb[0].mxu0 %v3059
    %v3132 = vpop.f32.mrb[0].mxu0
    %v3133 = vadd.f32 %v3022, %v3132
    %v3134 = vpop.f32.mrb[0].mxu0
    %3135 = vdwg.mxu0
    %v3136 = vadd.f32 %v2931, %v3128
    %v3137 = vadd.f32 %v2932, %v3133
    %v3138 = vsel %vm52, %v3136, 0.0
    %3139 = vadd.xlane.f32.xlu0 %v3138
    %v3140 = vpop.xlane.xlu0 %3139
    %v3141 = vsel %vm52, %v3137, 0.0
    %3142 = vadd.xlane.f32.xlu0 %v3141
    %v3143 = vpop.xlane.xlu0 %3142
    %v3144 = vmul.f32 %v3140, %v1330
    %v3145 = vmul.f32 %v3143, %v1330
    %v3146 = vsub.f32 %v3136, %v3144
    %v3147 = vsub.f32 %v3137, %v3145
    %v3148 = vmul.f32 %v3146, %v3146
    %v3149 = vmul.f32 %v3147, %v3147
    %v3150 = vsel %vm52, %v3148, 0.0
    %3151 = vadd.xlane.f32.xlu0 %v3150
    %v3152 = vpop.xlane.xlu0 %3151
    %v3153 = vsel %vm52, %v3149, 0.0
    %3154 = vadd.xlane.f32.xlu0 %v3153
    %v3155 = vpop.xlane.xlu0 %3154
    %v3156 = vmul.f32 %v3152, %v1330
    %v3157 = vmul.f32 %v3155, %v1330
    %v3158 = vadd.f32 %v3156, 1e-05
    %v3159 = vadd.f32 %v3157, 1e-05
    %v3160 = vrsqrt.pop %v3158
    %v3161 = vrsqrt.pop %v3159
    %v3162 = vmul.f32 %v3146, %v3160
    %v3163 = vmul.f32 %v3147, %v3161
    %3165 = vrot.lane.b32.xlu0 %v3022, 96
    %v3166 = vpop.permute.xlu0 %3165
    %v3168 = vmul.f32 %v3162, %v3166
    %v3169 = vmul.f32 %v3163, %v3166
    %3170 = vrot.lane.b32.xlu0 %v3022, 64
    %v3171 = vpop.permute.xlu0 %3170
    %v3173 = vadd.f32 %v3168, %v3171
    %v3174 = vadd.f32 %v3169, %v3171
    %v3175 = vsel %vm52, %v3173, 0.0
    %3176 = vadd.xlane.f32.xlu0 %v3175
    %v3177 = vpop.xlane.xlu0 %3176
    %v3178 = vsel %vm52, %v3174, 0.0
    %3179 = vadd.xlane.f32.xlu0 %v3178
    %v3180 = vpop.xlane.xlu0 %3179
    %v3181 = vmul.f32 %v3177, %v1330
    %v3182 = vmul.f32 %v3180, %v1330
    %v3183 = vsub.f32 %v3173, %v3181
    %v3184 = vsub.f32 %v3174, %v3182
    %v3185 = vmul.f32 %v3183, %v3183
    %v3186 = vmul.f32 %v3184, %v3184
    %v3187 = vsel %vm52, %v3185, 0.0
    %3188 = vadd.xlane.f32.xlu0 %v3187
    %v3189 = vpop.xlane.xlu0 %3188
    %v3190 = vsel %vm52, %v3186, 0.0
    %3191 = vadd.xlane.f32.xlu0 %v3190
    %v3192 = vpop.xlane.xlu0 %3191
    %v3193 = vmul.f32 %v3189, %v1330
    %v3194 = vmul.f32 %v3192, %v1330
    %v3195 = vadd.f32 %v3193, 1e-05
    %v3196 = vadd.f32 %v3194, 1e-05
    %v3197 = vrsqrt.pop %v3195
    %v3198 = vrsqrt.pop %v3196
    %v3199 = vmul.f32 %v3183, %v3197
    %v3200 = vmul.f32 %v3184, %v3198
    %v3201 = vlaneseq
    %v3202 = vshrl.u32 %v3201, 7
    %v3203 = vsub.s32 6, %v3202
    %v3204 = vrot.slane %v35, %v3203
    %v3205 = vmul.f32 %v3199, %v3204
    %v3206 = vmul.f32 %v3200, %v3204
    %3208 = vrot.lane.b32.xlu0 %v3204, 96
    %v3209 = vpop.permute.xlu0 %3208
    %v3211 = vadd.f32 %v3205, %v3209
    %v3212 = vadd.f32 %v3206, %v3209
    %3213 = vst.msk [vmem:[%s4] sm:$0xff] %vm52, %v3211
    %3214 = vst.msk [vmem:[%s4 + $0x8] sm:$0xff] %vm52, %v3212
    // Predicated region
    $region22: #{transformer_forward.1} parent=1 // pred_check
      _
    $region23: #{transformer_forward.1} parent=1 // pred_check_branch
      %3216 = sbr.rel (0) target = $region25
    $region24: #{transformer_forward.1} parent=1 // pred_region
      _
    $region25: #{transformer_forward.1} parent=1 // pred_fallthru
      _
    // Predicated region
    $region26: #{transformer_forward.1} parent=1 // pred_check
      _
    $region27: #{transformer_forward.1} parent=1 // pred_check_branch
      %3218 = sbr.rel (0) target = $region29
    $region28: #{transformer_forward.1} parent=1 // pred_region
      _
    $region29: #{transformer_forward.1} parent=1 // pred_fallthru
      _
    %3219 = vsyncpa [#allocation3], 1

</llo_original>
